<compile_context>
chip_gen: v7x
topology: tpu7x:2x2x1
jax: 0.10.0
libtpu: 0.0.40
codegen_flags: <defaults>
</compile_context>

<pallas_src>
import functools

import jax
import jax.numpy as jnp
import numpy as np
from jax import lax
from jax.experimental import pallas as pl
from jax.experimental.pallas import tpu as pltpu

# ----- model dimensions (small, tile-friendly) --------------------------------
SENT_DIM = 768          # sentence_embedding_dim
RANK     = 128          # tkbc_model.rank
TKBC_DIM = 2 * RANK     # tkbc_embedding_dim = 2 * rank
NUM_ENT  = 256          # num_entities
NUM_TIME = 128          # num_times
VOCAB    = NUM_ENT + NUM_TIME
BATCH    = 128          # amortize weight DMA / per-call overhead (feedback #3)
BATCH_TILE = 64         # batch tile -> grid=(B/TB,), "parallel" for v7x 2 TCs
BN_EPS   = 1e-5


# ============================ fused scoring kernel =============================
def _score_kernel(heads_ref,                      # SMEM (B,) int32, prefetched
                  rel_ref, w1_ref, b1_ref, emb_ref,   # VMEM inputs
                  out_ref,                        # VMEM output (TB, V)
                  head_sc,                        # VMEM scratch (TB, 2R) f32
                  *, batch_tile):
    R = RANK
    tile = pl.program_id(0)

    # linear1 with eval-BN folded into weight/bias: bf16 x bf16 on the MXU,
    # f32 accumulation; bias add and everything downstream in f32.
    rel1 = jnp.dot(rel_ref[...].astype(jnp.bfloat16), w1_ref[...],
                   preferred_element_type=jnp.float32) + b1_ref[...]
    # dropout(p=0.3) is identity in eval mode.

    # head-embedding gather: indices live in SMEM (scalar prefetch); copy the
    # selected rows of the already-VMEM-resident table into scratch.
    # heads index the entity rows, i.e. always < NUM_ENT (< VOCAB).
    base = tile * batch_tile
    for b in range(batch_tile):                    # static store row, dynamic load row
        h = heads_ref[base + b]
        head_sc[b, :] = emb_ref[h, :]

    head_e = head_sc[...]                          # (TB, 2R) f32
    l0, l1 = head_e[:, :R], head_e[:, R:]
    r0, r1 = rel1[:, :R], rel1[:, R:]
    x = jnp.concatenate([l0 * r0 - l1 * r1, l0 * r1 + l1 * r0], axis=1)  # (TB, 2R)

    # single K=2R contraction against the un-transposed table:  x @ emb.T
    # output (TB, V) is lane-dense (V = 384 = 3 * 128).
    out_ref[...] = lax.dot_general(
        x, emb_ref[...], (((1,), (1,)), ((), ())),
        preferred_element_type=jnp.float32)


# ============================ parameter prep (one-time) ========================
def prepare_params(raw):
    """One-time prep: transposes, eval-BN folding, bf16 weight casts."""
    g, be, m, v = raw["bn1"]                              # each (2R,)
    scale = g / jnp.sqrt(v + BN_EPS)
    return {
        "wq_t": raw["Wq"].T.astype(jnp.bfloat16),                     # (768, 2R) bf16
        "bq":   raw["bq"][None, :],                                   # (1, 2R)  f32
        "w1_t": (raw["W1"].T * scale[None, :]).astype(jnp.bfloat16),  # (2R, 2R) bf16, BN folded
        "b1":   ((raw["b1"] - m) * scale + be)[None, :],              # (1, 2R)  f32
        "emb":  raw["entity_time_embedding"],                         # (V, 2R)  f32
    }


# ============================ forward wrapper ==================================
def qa_embedkgqa_forward(prep, question_embedding, heads, *, batch_tile=BATCH_TILE):
    B = question_embedding.shape[0]
    V, D2 = prep["emb"].shape
    tb = min(batch_tile, B)
    assert B % tb == 0, "batch must be a multiple of the batch tile"

    # 768-wide projection in plain XLA (fuses next to the LM encoder output in
    # the full model): bf16 weight, f32 accumulation, bias in f32.  Keeps the
    # 768-wide weight off the kernel's critical DMA path (feedback #2a).
    rel = jnp.dot(question_embedding.astype(jnp.bfloat16), prep["wq_t"],
                  preferred_element_type=jnp.float32) + prep["bq"]      # (B, 2R) f32

    heads = heads.astype(jnp.int32)

    grid_spec = pltpu.PrefetchScalarGridSpec(
        num_scalar_prefetch=1,                     # heads -> SMEM
        grid=(B // tb,),
        in_specs=[
            pl.BlockSpec((tb, D2), lambda i, hd: (i, 0)),   # rel   (per batch tile)
            pl.BlockSpec((D2, D2), lambda i, hd: (0, 0)),   # w1_t  (resident)
            pl.BlockSpec((1, D2),  lambda i, hd: (0, 0)),   # b1    (resident)
            pl.BlockSpec((V, D2),  lambda i, hd: (0, 0)),   # emb   (resident)
        ],
        out_specs=pl.BlockSpec((tb, V), lambda i, hd: (i, 0)),
        scratch_shapes=[pltpu.VMEM((tb, D2), jnp.float32)],
    )
    kernel = functools.partial(_score_kernel, batch_tile=tb)
    return pl.pallas_call(
        kernel,
        grid_spec=grid_spec,
        out_shape=jax.ShapeDtypeStruct((B, V), jnp.float32),
        compiler_params=pltpu.CompilerParams(
            dimension_semantics=("parallel",)),    # batch tiles -> both TCs on v7x
    )(heads, rel, prep["w1_t"], prep["b1"], prep["emb"])


# ============================ pure-JAX reference ===============================
def _reference(raw, q, heads):
    """Eval-mode module semantics with the same bf16 weight rounding as the
    kernel path (weights rounded to bf16, all accumulation in f32)."""
    g, be, m, v = raw["bn1"]
    scale = g / jnp.sqrt(v + BN_EPS)
    wq_t = raw["Wq"].T.astype(jnp.bfloat16).astype(jnp.float32)
    w1_t = (raw["W1"].T * scale[None, :]).astype(jnp.bfloat16).astype(jnp.float32)
    b1f  = (raw["b1"] - m) * scale + be
    emb  = raw["entity_time_embedding"]

    head_e = emb[heads]                                    # heads < NUM_ENT
    rel = jnp.dot(q.astype(jnp.bfloat16).astype(jnp.float32), wq_t,
                  precision=lax.Precision.HIGHEST) + raw["bq"]
    rel1 = jnp.dot(rel.astype(jnp.bfloat16).astype(jnp.float32), w1_t,
                   precision=lax.Precision.HIGHEST) + b1f  # BN folded; dropout=id
    R = RANK
    l0, l1 = head_e[:, :R], head_e[:, R:]
    r0, r1 = rel1[:, :R], rel1[:, R:]
    e0, e1 = emb[:, :R], emb[:, R:]
    return (jnp.dot(l0 * r0 - l1 * r1, e0.T, precision=lax.Precision.HIGHEST)
            + jnp.dot(l0 * r1 + l1 * r0, e1.T, precision=lax.Precision.HIGHEST))


# ============================ main =============================================
if __name__ == "__main__":
    key = jax.random.PRNGKey(0)
    ks = jax.random.split(key, 11)

    # deterministic synthetic parameters (no checkpoint loading)
    raw = {
        "entity_time_embedding": 0.05 * jax.random.normal(
            ks[0], (VOCAB, TKBC_DIM), jnp.float32),
        "Wq": 0.02 * jax.random.normal(ks[1], (TKBC_DIM, SENT_DIM), jnp.float32),
        "bq": 0.01 * jax.random.normal(ks[2], (TKBC_DIM,), jnp.float32),
        "W1": 0.02 * jax.random.normal(ks[3], (TKBC_DIM, TKBC_DIM), jnp.float32),
        "b1": 0.01 * jax.random.normal(ks[4], (TKBC_DIM,), jnp.float32),
        # bn1 rows: [gamma, beta, running_mean, running_var]
        "bn1": jnp.stack([
            1.0 + 0.1 * jax.random.normal(ks[5], (TKBC_DIM,), jnp.float32),
            0.1 * jax.random.normal(ks[6], (TKBC_DIM,), jnp.float32),
            0.1 * jax.random.normal(ks[7], (TKBC_DIM,), jnp.float32),
            1.0 + 0.1 * jax.random.uniform(ks[8], (TKBC_DIM,), jnp.float32),
        ]),
    }
    prep = prepare_params(raw)     # one-time: transposes, BN folding, bf16 casts

    # deterministic synthetic inputs
    question_embedding = jax.random.normal(ks[9], (BATCH, SENT_DIM), jnp.float32)
    heads = jax.random.randint(ks[10], (BATCH,), 0, NUM_ENT)

    fwd = jax.jit(qa_embedkgqa_forward)
    scores = fwd(prep, question_embedding, heads)
    scores = jax.block_until_ready(scores)
    assert scores.shape == (BATCH, VOCAB), scores.shape

    ref = _reference(raw, question_embedding, heads)
    np.testing.assert_allclose(np.asarray(scores), np.asarray(ref),
                               rtol=1e-3, atol=1e-4)
    print("KERNEL_OK")
</pallas_src>

<mosaic_0001>
module attributes {stable_mosaic.version = 11 : i64} {
  func.func @_score_kernel(%arg0: i32, %arg1: memref<128xi32, #tpu.memory_space<smem>>, %arg2: memref<64x256xf32, #tpu.memory_space<vmem>>, %arg3: memref<256x256xbf16, #tpu.memory_space<vmem>>, %arg4: memref<1x256xf32, #tpu.memory_space<vmem>>, %arg5: memref<384x256xf32, #tpu.memory_space<vmem>>, %arg6: memref<64x384xf32, #tpu.memory_space<vmem>>, %arg7: memref<64x256xf32, #tpu.memory_space<vmem>>) attributes {dimension_semantics = [#tpu.dimension_semantics<parallel>], iteration_bounds = array<i64: 2>, scalar_prefetch = 1 : i64, scratch_operands = 1 : i64, tpu.core_type = #tpu.core_type<tc>, window_params = [{transform_indices = @transform_0, window_bounds = array<i64: 64, 256>}, {pipeline_mode = #tpu.pipeline_mode<synchronous>, transform_indices = @transform_1, window_bounds = array<i64: 256, 256>}, {pipeline_mode = #tpu.pipeline_mode<synchronous>, transform_indices = @transform_2, window_bounds = array<i64: 1, 256>}, {pipeline_mode = #tpu.pipeline_mode<synchronous>, transform_indices = @transform_3, window_bounds = array<i64: 384, 256>}, {transform_indices = @transform_4, window_bounds = array<i64: 64, 384>}]} {
    %c0 = arith.constant 0 : index
    %c0_0 = arith.constant 0 : index
    %0 = vector.load %arg2[%c0, %c0_0] : memref<64x256xf32, #tpu.memory_space<vmem>>, vector<64x256xf32>
    %1 = arith.truncf %0 : vector<64x256xf32> to vector<64x256xbf16>
    %c0_1 = arith.constant 0 : index
    %c0_2 = arith.constant 0 : index
    %2 = vector.load %arg3[%c0_1, %c0_2] : memref<256x256xbf16, #tpu.memory_space<vmem>>, vector<256x256xbf16>
    %cst = arith.constant dense<0.000000e+00> : vector<64x256xf32>
    %3 = tpu.matmul %1, %2, %cst {dimension_numbers = #tpu.dot_dimension_numbers<[1], [0], [0], [1], [0, 0, 1, 1], [], []>} : vector<64x256xbf16>, vector<256x256xbf16>, vector<64x256xf32> -> vector<64x256xf32>
    %c0_3 = arith.constant 0 : index
    %c0_4 = arith.constant 0 : index
    %4 = vector.load %arg4[%c0_3, %c0_4] : memref<1x256xf32, #tpu.memory_space<vmem>>, vector<1x256xf32>
    %5 = vector.broadcast %4 : vector<1x256xf32> to vector<64x256xf32>
    %6 = arith.addf %3, %5 : vector<64x256xf32>
    %c64_i32 = arith.constant 64 : i32
    %7 = arith.muli %arg0, %c64_i32 : i32
    %c0_i32 = arith.constant 0 : i32
    %8 = arith.addi %7, %c0_i32 : i32
    %9 = arith.index_cast %8 : i32 to index
    %10 = memref.load %arg1[%9] : memref<128xi32, #tpu.memory_space<smem>>
    %11 = arith.index_cast %10 : i32 to index
    %c0_5 = arith.constant 0 : index
    %12 = vector.load %arg5[%11, %c0_5] : memref<384x256xf32, #tpu.memory_space<vmem>>, vector<1x256xf32>
    %13 = vector.shape_cast %12 : vector<1x256xf32> to vector<256xf32>
    %c0_6 = arith.constant 0 : index
    %c0_7 = arith.constant 0 : index
    %14 = vector.load %arg7[%c0_6, %c0_7] : memref<64x256xf32, #tpu.memory_space<vmem>>, vector<1x256xf32>
    %15 = vector.shape_cast %14 : vector<1x256xf32> to vector<256xf32>
    %16 = vector.shape_cast %13 : vector<256xf32> to vector<1x256xf32>
    tpu.vector_store %arg7[%c0_6, %c0_7], %16 {strides = array<i32>} : memref<64x256xf32, #tpu.memory_space<vmem>>, vector<1x256xf32>,
    %c1_i32 = arith.constant 1 : i32
    %17 = arith.addi %7, %c1_i32 : i32
    %18 = arith.index_cast %17 : i32 to index
    %19 = memref.load %arg1[%18] : memref<128xi32, #tpu.memory_space<smem>>
    %20 = arith.index_cast %19 : i32 to index
    %c0_8 = arith.constant 0 : index
    %21 = vector.load %arg5[%20, %c0_8] : memref<384x256xf32, #tpu.memory_space<vmem>>, vector<1x256xf32>
    %22 = vector.shape_cast %21 : vector<1x256xf32> to vector<256xf32>
    %c1 = arith.constant 1 : index
    %c0_9 = arith.constant 0 : index
    %23 = vector.load %arg7[%c1, %c0_9] : memref<64x256xf32, #tpu.memory_space<vmem>>, vector<1x256xf32>
    %24 = vector.shape_cast %23 : vector<1x256xf32> to vector<256xf32>
    %25 = vector.shape_cast %22 : vector<256xf32> to vector<1x256xf32>
    tpu.vector_store %arg7[%c1, %c0_9], %25 {strides = array<i32>} : memref<64x256xf32, #tpu.memory_space<vmem>>, vector<1x256xf32>,
    %c2_i32 = arith.constant 2 : i32
    %26 = arith.addi %7, %c2_i32 : i32
    %27 = arith.index_cast %26 : i32 to index
    %28 = memref.load %arg1[%27] : memref<128xi32, #tpu.memory_space<smem>>
    %29 = arith.index_cast %28 : i32 to index
    %c0_10 = arith.constant 0 : index
    %30 = vector.load %arg5[%29, %c0_10] : memref<384x256xf32, #tpu.memory_space<vmem>>, vector<1x256xf32>
    %31 = vector.shape_cast %30 : vector<1x256xf32> to vector<256xf32>
    %c2 = arith.constant 2 : index
    %c0_11 = arith.constant 0 : index
    %32 = vector.load %arg7[%c2, %c0_11] : memref<64x256xf32, #tpu.memory_space<vmem>>, vector<1x256xf32>
    %33 = vector.shape_cast %32 : vector<1x256xf32> to vector<256xf32>
    %34 = vector.shape_cast %31 : vector<256xf32> to vector<1x256xf32>
    tpu.vector_store %arg7[%c2, %c0_11], %34 {strides = array<i32>} : memref<64x256xf32, #tpu.memory_space<vmem>>, vector<1x256xf32>,
    %c3_i32 = arith.constant 3 : i32
    %35 = arith.addi %7, %c3_i32 : i32
    %36 = arith.index_cast %35 : i32 to index
    %37 = memref.load %arg1[%36] : memref<128xi32, #tpu.memory_space<smem>>
    %38 = arith.index_cast %37 : i32 to index
    %c0_12 = arith.constant 0 : index
    %39 = vector.load %arg5[%38, %c0_12] : memref<384x256xf32, #tpu.memory_space<vmem>>, vector<1x256xf32>
    %40 = vector.shape_cast %39 : vector<1x256xf32> to vector<256xf32>
    %c3 = arith.constant 3 : index
    %c0_13 = arith.constant 0 : index
    %41 = vector.load %arg7[%c3, %c0_13] : memref<64x256xf32, #tpu.memory_space<vmem>>, vector<1x256xf32>
    %42 = vector.shape_cast %41 : vector<1x256xf32> to vector<256xf32>
    %43 = vector.shape_cast %40 : vector<256xf32> to vector<1x256xf32>
    tpu.vector_store %arg7[%c3, %c0_13], %43 {strides = array<i32>} : memref<64x256xf32, #tpu.memory_space<vmem>>, vector<1x256xf32>,
    %c4_i32 = arith.constant 4 : i32
    %44 = arith.addi %7, %c4_i32 : i32
    %45 = arith.index_cast %44 : i32 to index
    %46 = memref.load %arg1[%45] : memref<128xi32, #tpu.memory_space<smem>>
    %47 = arith.index_cast %46 : i32 to index
    %c0_14 = arith.constant 0 : index
    %48 = vector.load %arg5[%47, %c0_14] : memref<384x256xf32, #tpu.memory_space<vmem>>, vector<1x256xf32>
    %49 = vector.shape_cast %48 : vector<1x256xf32> to vector<256xf32>
    %c4 = arith.constant 4 : index
    %c0_15 = arith.constant 0 : index
    %50 = vector.load %arg7[%c4, %c0_15] : memref<64x256xf32, #tpu.memory_space<vmem>>, vector<1x256xf32>
    %51 = vector.shape_cast %50 : vector<1x256xf32> to vector<256xf32>
    %52 = vector.shape_cast %49 : vector<256xf32> to vector<1x256xf32>
    tpu.vector_store %arg7[%c4, %c0_15], %52 {strides = array<i32>} : memref<64x256xf32, #tpu.memory_space<vmem>>, vector<1x256xf32>,
    %c5_i32 = arith.constant 5 : i32
    %53 = arith.addi %7, %c5_i32 : i32
    %54 = arith.index_cast %53 : i32 to index
    %55 = memref.load %arg1[%54] : memref<128xi32, #tpu.memory_space<smem>>
    %56 = arith.index_cast %55 : i32 to index
    %c0_16 = arith.constant 0 : index
    %57 = vector.load %arg5[%56, %c0_16] : memref<384x256xf32, #tpu.memory_space<vmem>>, vector<1x256xf32>
    %58 = vector.shape_cast %57 : vector<1x256xf32> to vector<256xf32>
    %c5 = arith.constant 5 : index
    %c0_17 = arith.constant 0 : index
    %59 = vector.load %arg7[%c5, %c0_17] : memref<64x256xf32, #tpu.memory_space<vmem>>, vector<1x256xf32>
    %60 = vector.shape_cast %59 : vector<1x256xf32> to vector<256xf32>
    %61 = vector.shape_cast %58 : vector<256xf32> to vector<1x256xf32>
    tpu.vector_store %arg7[%c5, %c0_17], %61 {strides = array<i32>} : memref<64x256xf32, #tpu.memory_space<vmem>>, vector<1x256xf32>,
    %c6_i32 = arith.constant 6 : i32
    %62 = arith.addi %7, %c6_i32 : i32
    %63 = arith.index_cast %62 : i32 to index
    %64 = memref.load %arg1[%63] : memref<128xi32, #tpu.memory_space<smem>>
    %65 = arith.index_cast %64 : i32 to index
    %c0_18 = arith.constant 0 : index
    %66 = vector.load %arg5[%65, %c0_18] : memref<384x256xf32, #tpu.memory_space<vmem>>, vector<1x256xf32>
    %67 = vector.shape_cast %66 : vector<1x256xf32> to vector<256xf32>
    %c6 = arith.constant 6 : index
    %c0_19 = arith.constant 0 : index
    %68 = vector.load %arg7[%c6, %c0_19] : memref<64x256xf32, #tpu.memory_space<vmem>>, vector<1x256xf32>
    %69 = vector.shape_cast %68 : vector<1x256xf32> to vector<256xf32>
    %70 = vector.shape_cast %67 : vector<256xf32> to vector<1x256xf32>
    tpu.vector_store %arg7[%c6, %c0_19], %70 {strides = array<i32>} : memref<64x256xf32, #tpu.memory_space<vmem>>, vector<1x256xf32>,
    %c7_i32 = arith.constant 7 : i32
    %71 = arith.addi %7, %c7_i32 : i32
    %72 = arith.index_cast %71 : i32 to index
    %73 = memref.load %arg1[%72] : memref<128xi32, #tpu.memory_space<smem>>
    %74 = arith.index_cast %73 : i32 to index
    %c0_20 = arith.constant 0 : index
    %75 = vector.load %arg5[%74, %c0_20] : memref<384x256xf32, #tpu.memory_space<vmem>>, vector<1x256xf32>
    %76 = vector.shape_cast %75 : vector<1x256xf32> to vector<256xf32>
    %c7 = arith.constant 7 : index
    %c0_21 = arith.constant 0 : index
    %77 = vector.load %arg7[%c7, %c0_21] : memref<64x256xf32, #tpu.memory_space<vmem>>, vector<1x256xf32>
    %78 = vector.shape_cast %77 : vector<1x256xf32> to vector<256xf32>
    %79 = vector.shape_cast %76 : vector<256xf32> to vector<1x256xf32>
    tpu.vector_store %arg7[%c7, %c0_21], %79 {strides = array<i32>} : memref<64x256xf32, #tpu.memory_space<vmem>>, vector<1x256xf32>,
    %c8_i32 = arith.constant 8 : i32
    %80 = arith.addi %7, %c8_i32 : i32
    %81 = arith.index_cast %80 : i32 to index
    %82 = memref.load %arg1[%81] : memref<128xi32, #tpu.memory_space<smem>>
    %83 = arith.index_cast %82 : i32 to index
    %c0_22 = arith.constant 0 : index
    %84 = vector.load %arg5[%83, %c0_22] : memref<384x256xf32, #tpu.memory_space<vmem>>, vector<1x256xf32>
    %85 = vector.shape_cast %84 : vector<1x256xf32> to vector<256xf32>
    %c8 = arith.constant 8 : index
    %c0_23 = arith.constant 0 : index
    %86 = vector.load %arg7[%c8, %c0_23] : memref<64x256xf32, #tpu.memory_space<vmem>>, vector<1x256xf32>
    %87 = vector.shape_cast %86 : vector<1x256xf32> to vector<256xf32>
    %88 = vector.shape_cast %85 : vector<256xf32> to vector<1x256xf32>
    tpu.vector_store %arg7[%c8, %c0_23], %88 {strides = array<i32>} : memref<64x256xf32, #tpu.memory_space<vmem>>, vector<1x256xf32>,
    %c9_i32 = arith.constant 9 : i32
    %89 = arith.addi %7, %c9_i32 : i32
    %90 = arith.index_cast %89 : i32 to index
    %91 = memref.load %arg1[%90] : memref<128xi32, #tpu.memory_space<smem>>
    %92 = arith.index_cast %91 : i32 to index
    %c0_24 = arith.constant 0 : index
    %93 = vector.load %arg5[%92, %c0_24] : memref<384x256xf32, #tpu.memory_space<vmem>>, vector<1x256xf32>
    %94 = vector.shape_cast %93 : vector<1x256xf32> to vector<256xf32>
    %c9 = arith.constant 9 : index
    %c0_25 = arith.constant 0 : index
    %95 = vector.load %arg7[%c9, %c0_25] : memref<64x256xf32, #tpu.memory_space<vmem>>, vector<1x256xf32>
    %96 = vector.shape_cast %95 : vector<1x256xf32> to vector<256xf32>
    %97 = vector.shape_cast %94 : vector<256xf32> to vector<1x256xf32>
    tpu.vector_store %arg7[%c9, %c0_25], %97 {strides = array<i32>} : memref<64x256xf32, #tpu.memory_space<vmem>>, vector<1x256xf32>,
    %c10_i32 = arith.constant 10 : i32
    %98 = arith.addi %7, %c10_i32 : i32
    %99 = arith.index_cast %98 : i32 to index
    %100 = memref.load %arg1[%99] : memref<128xi32, #tpu.memory_space<smem>>
    %101 = arith.index_cast %100 : i32 to index
    %c0_26 = arith.constant 0 : index
    %102 = vector.load %arg5[%101, %c0_26] : memref<384x256xf32, #tpu.memory_space<vmem>>, vector<1x256xf32>
    %103 = vector.shape_cast %102 : vector<1x256xf32> to vector<256xf32>
    %c10 = arith.constant 10 : index
    %c0_27 = arith.constant 0 : index
    %104 = vector.load %arg7[%c10, %c0_27] : memref<64x256xf32, #tpu.memory_space<vmem>>, vector<1x256xf32>
    %105 = vector.shape_cast %104 : vector<1x256xf32> to vector<256xf32>
    %106 = vector.shape_cast %103 : vector<256xf32> to vector<1x256xf32>
    tpu.vector_store %arg7[%c10, %c0_27], %106 {strides = array<i32>} : memref<64x256xf32, #tpu.memory_space<vmem>>, vector<1x256xf32>,
    %c11_i32 = arith.constant 11 : i32
    %107 = arith.addi %7, %c11_i32 : i32
    %108 = arith.index_cast %107 : i32 to index
    %109 = memref.load %arg1[%108] : memref<128xi32, #tpu.memory_space<smem>>
    %110 = arith.index_cast %109 : i32 to index
    %c0_28 = arith.constant 0 : index
    %111 = vector.load %arg5[%110, %c0_28] : memref<384x256xf32, #tpu.memory_space<vmem>>, vector<1x256xf32>
    %112 = vector.shape_cast %111 : vector<1x256xf32> to vector<256xf32>
    %c11 = arith.constant 11 : index
    %c0_29 = arith.constant 0 : index
    %113 = vector.load %arg7[%c11, %c0_29] : memref<64x256xf32, #tpu.memory_space<vmem>>, vector<1x256xf32>
    %114 = vector.shape_cast %113 : vector<1x256xf32> to vector<256xf32>
    %115 = vector.shape_cast %112 : vector<256xf32> to vector<1x256xf32>
    tpu.vector_store %arg7[%c11, %c0_29], %115 {strides = array<i32>} : memref<64x256xf32, #tpu.memory_space<vmem>>, vector<1x256xf32>,
    %c12_i32 = arith.constant 12 : i32
    %116 = arith.addi %7, %c12_i32 : i32
    %117 = arith.index_cast %116 : i32 to index
    %118 = memref.load %arg1[%117] : memref<128xi32, #tpu.memory_space<smem>>
    %119 = arith.index_cast %118 : i32 to index
    %c0_30 = arith.constant 0 : index
    %120 = vector.load %arg5[%119, %c0_30] : memref<384x256xf32, #tpu.memory_space<vmem>>, vector<1x256xf32>
    %121 = vector.shape_cast %120 : vector<1x256xf32> to vector<256xf32>
    %c12 = arith.constant 12 : index
    %c0_31 = arith.constant 0 : index
    %122 = vector.load %arg7[%c12, %c0_31] : memref<64x256xf32, #tpu.memory_space<vmem>>, vector<1x256xf32>
    %123 = vector.shape_cast %122 : vector<1x256xf32> to vector<256xf32>
    %124 = vector.shape_cast %121 : vector<256xf32> to vector<1x256xf32>
    tpu.vector_store %arg7[%c12, %c0_31], %124 {strides = array<i32>} : memref<64x256xf32, #tpu.memory_space<vmem>>, vector<1x256xf32>,
    %c13_i32 = arith.constant 13 : i32
    %125 = arith.addi %7, %c13_i32 : i32
    %126 = arith.index_cast %125 : i32 to index
    %127 = memref.load %arg1[%126] : memref<128xi32, #tpu.memory_space<smem>>
    %128 = arith.index_cast %127 : i32 to index
    %c0_32 = arith.constant 0 : index
    %129 = vector.load %arg5[%128, %c0_32] : memref<384x256xf32, #tpu.memory_space<vmem>>, vector<1x256xf32>
    %130 = vector.shape_cast %129 : vector<1x256xf32> to vector<256xf32>
    %c13 = arith.constant 13 : index
    %c0_33 = arith.constant 0 : index
    %131 = vector.load %arg7[%c13, %c0_33] : memref<64x256xf32, #tpu.memory_space<vmem>>, vector<1x256xf32>
    %132 = vector.shape_cast %131 : vector<1x256xf32> to vector<256xf32>
    %133 = vector.shape_cast %130 : vector<256xf32> to vector<1x256xf32>
    tpu.vector_store %arg7[%c13, %c0_33], %133 {strides = array<i32>} : memref<64x256xf32, #tpu.memory_space<vmem>>, vector<1x256xf32>,
    %c14_i32 = arith.constant 14 : i32
    %134 = arith.addi %7, %c14_i32 : i32
    %135 = arith.index_cast %134 : i32 to index
    %136 = memref.load %arg1[%135] : memref<128xi32, #tpu.memory_space<smem>>
    %137 = arith.index_cast %136 : i32 to index
    %c0_34 = arith.constant 0 : index
    %138 = vector.load %arg5[%137, %c0_34] : memref<384x256xf32, #tpu.memory_space<vmem>>, vector<1x256xf32>
    %139 = vector.shape_cast %138 : vector<1x256xf32> to vector<256xf32>
    %c14 = arith.constant 14 : index
    %c0_35 = arith.constant 0 : index
    %140 = vector.load %arg7[%c14, %c0_35] : memref<64x256xf32, #tpu.memory_space<vmem>>, vector<1x256xf32>
    %141 = vector.shape_cast %140 : vector<1x256xf32> to vector<256xf32>
    %142 = vector.shape_cast %139 : vector<256xf32> to vector<1x256xf32>
    tpu.vector_store %arg7[%c14, %c0_35], %142 {strides = array<i32>} : memref<64x256xf32, #tpu.memory_space<vmem>>, vector<1x256xf32>,
    %c15_i32 = arith.constant 15 : i32
    %143 = arith.addi %7, %c15_i32 : i32
    %144 = arith.index_cast %143 : i32 to index
    %145 = memref.load %arg1[%144] : memref<128xi32, #tpu.memory_space<smem>>
    %146 = arith.index_cast %145 : i32 to index
    %c0_36 = arith.constant 0 : index
    %147 = vector.load %arg5[%146, %c0_36] : memref<384x256xf32, #tpu.memory_space<vmem>>, vector<1x256xf32>
    %148 = vector.shape_cast %147 : vector<1x256xf32> to vector<256xf32>
    %c15 = arith.constant 15 : index
    %c0_37 = arith.constant 0 : index
    %149 = vector.load %arg7[%c15, %c0_37] : memref<64x256xf32, #tpu.memory_space<vmem>>, vector<1x256xf32>
    %150 = vector.shape_cast %149 : vector<1x256xf32> to vector<256xf32>
    %151 = vector.shape_cast %148 : vector<256xf32> to vector<1x256xf32>
    tpu.vector_store %arg7[%c15, %c0_37], %151 {strides = array<i32>} : memref<64x256xf32, #tpu.memory_space<vmem>>, vector<1x256xf32>,
    %c16_i32 = arith.constant 16 : i32
    %152 = arith.addi %7, %c16_i32 : i32
    %153 = arith.index_cast %152 : i32 to index
    %154 = memref.load %arg1[%153] : memref<128xi32, #tpu.memory_space<smem>>
    %155 = arith.index_cast %154 : i32 to index
    %c0_38 = arith.constant 0 : index
    %156 = vector.load %arg5[%155, %c0_38] : memref<384x256xf32, #tpu.memory_space<vmem>>, vector<1x256xf32>
    %157 = vector.shape_cast %156 : vector<1x256xf32> to vector<256xf32>
    %c16 = arith.constant 16 : index
    %c0_39 = arith.constant 0 : index
    %158 = vector.load %arg7[%c16, %c0_39] : memref<64x256xf32, #tpu.memory_space<vmem>>, vector<1x256xf32>
    %159 = vector.shape_cast %158 : vector<1x256xf32> to vector<256xf32>
    %160 = vector.shape_cast %157 : vector<256xf32> to vector<1x256xf32>
    tpu.vector_store %arg7[%c16, %c0_39], %160 {strides = array<i32>} : memref<64x256xf32, #tpu.memory_space<vmem>>, vector<1x256xf32>,
    %c17_i32 = arith.constant 17 : i32
    %161 = arith.addi %7, %c17_i32 : i32
    %162 = arith.index_cast %161 : i32 to index
    %163 = memref.load %arg1[%162] : memref<128xi32, #tpu.memory_space<smem>>
    %164 = arith.index_cast %163 : i32 to index
    %c0_40 = arith.constant 0 : index
    %165 = vector.load %arg5[%164, %c0_40] : memref<384x256xf32, #tpu.memory_space<vmem>>, vector<1x256xf32>
    %166 = vector.shape_cast %165 : vector<1x256xf32> to vector<256xf32>
    %c17 = arith.constant 17 : index
    %c0_41 = arith.constant 0 : index
    %167 = vector.load %arg7[%c17, %c0_41] : memref<64x256xf32, #tpu.memory_space<vmem>>, vector<1x256xf32>
    %168 = vector.shape_cast %167 : vector<1x256xf32> to vector<256xf32>
    %169 = vector.shape_cast %166 : vector<256xf32> to vector<1x256xf32>
    tpu.vector_store %arg7[%c17, %c0_41], %169 {strides = array<i32>} : memref<64x256xf32, #tpu.memory_space<vmem>>, vector<1x256xf32>,
    %c18_i32 = arith.constant 18 : i32
    %170 = arith.addi %7, %c18_i32 : i32
    %171 = arith.index_cast %170 : i32 to index
    %172 = memref.load %arg1[%171] : memref<128xi32, #tpu.memory_space<smem>>
    %173 = arith.index_cast %172 : i32 to index
    %c0_42 = arith.constant 0 : index
    %174 = vector.load %arg5[%173, %c0_42] : memref<384x256xf32, #tpu.memory_space<vmem>>, vector<1x256xf32>
    %175 = vector.shape_cast %174 : vector<1x256xf32> to vector<256xf32>
    %c18 = arith.constant 18 : index
    %c0_43 = arith.constant 0 : index
    %176 = vector.load %arg7[%c18, %c0_43] : memref<64x256xf32, #tpu.memory_space<vmem>>, vector<1x256xf32>
    %177 = vector.shape_cast %176 : vector<1x256xf32> to vector<256xf32>
    %178 = vector.shape_cast %175 : vector<256xf32> to vector<1x256xf32>
    tpu.vector_store %arg7[%c18, %c0_43], %178 {strides = array<i32>} : memref<64x256xf32, #tpu.memory_space<vmem>>, vector<1x256xf32>,
    %c19_i32 = arith.constant 19 : i32
    %179 = arith.addi %7, %c19_i32 : i32
    %180 = arith.index_cast %179 : i32 to index
    %181 = memref.load %arg1[%180] : memref<128xi32, #tpu.memory_space<smem>>
    %182 = arith.index_cast %181 : i32 to index
    %c0_44 = arith.constant 0 : index
    %183 = vector.load %arg5[%182, %c0_44] : memref<384x256xf32, #tpu.memory_space<vmem>>, vector<1x256xf32>
    %184 = vector.shape_cast %183 : vector<1x256xf32> to vector<256xf32>
    %c19 = arith.constant 19 : index
    %c0_45 = arith.constant 0 : index
    %185 = vector.load %arg7[%c19, %c0_45] : memref<64x256xf32, #tpu.memory_space<vmem>>, vector<1x256xf32>
    %186 = vector.shape_cast %185 : vector<1x256xf32> to vector<256xf32>
    %187 = vector.shape_cast %184 : vector<256xf32> to vector<1x256xf32>
    tpu.vector_store %arg7[%c19, %c0_45], %187 {strides = array<i32>} : memref<64x256xf32, #tpu.memory_space<vmem>>, vector<1x256xf32>,
    %c20_i32 = arith.constant 20 : i32
    %188 = arith.addi %7, %c20_i32 : i32
    %189 = arith.index_cast %188 : i32 to index
    %190 = memref.load %arg1[%189] : memref<128xi32, #tpu.memory_space<smem>>
    %191 = arith.index_cast %190 : i32 to index
    %c0_46 = arith.constant 0 : index
    %192 = vector.load %arg5[%191, %c0_46] : memref<384x256xf32, #tpu.memory_space<vmem>>, vector<1x256xf32>
    %193 = vector.shape_cast %192 : vector<1x256xf32> to vector<256xf32>
    %c20 = arith.constant 20 : index
    %c0_47 = arith.constant 0 : index
    %194 = vector.load %arg7[%c20, %c0_47] : memref<64x256xf32, #tpu.memory_space<vmem>>, vector<1x256xf32>
    %195 = vector.shape_cast %194 : vector<1x256xf32> to vector<256xf32>
    %196 = vector.shape_cast %193 : vector<256xf32> to vector<1x256xf32>
    tpu.vector_store %arg7[%c20, %c0_47], %196 {strides = array<i32>} : memref<64x256xf32, #tpu.memory_space<vmem>>, vector<1x256xf32>,
    %c21_i32 = arith.constant 21 : i32
    %197 = arith.addi %7, %c21_i32 : i32
    %198 = arith.index_cast %197 : i32 to index
    %199 = memref.load %arg1[%198] : memref<128xi32, #tpu.memory_space<smem>>
    %200 = arith.index_cast %199 : i32 to index
    %c0_48 = arith.constant 0 : index
    %201 = vector.load %arg5[%200, %c0_48] : memref<384x256xf32, #tpu.memory_space<vmem>>, vector<1x256xf32>
    %202 = vector.shape_cast %201 : vector<1x256xf32> to vector<256xf32>
    %c21 = arith.constant 21 : index
    %c0_49 = arith.constant 0 : index
    %203 = vector.load %arg7[%c21, %c0_49] : memref<64x256xf32, #tpu.memory_space<vmem>>, vector<1x256xf32>
    %204 = vector.shape_cast %203 : vector<1x256xf32> to vector<256xf32>
    %205 = vector.shape_cast %202 : vector<256xf32> to vector<1x256xf32>
    tpu.vector_store %arg7[%c21, %c0_49], %205 {strides = array<i32>} : memref<64x256xf32, #tpu.memory_space<vmem>>, vector<1x256xf32>,
    %c22_i32 = arith.constant 22 : i32
    %206 = arith.addi %7, %c22_i32 : i32
    %207 = arith.index_cast %206 : i32 to index
    %208 = memref.load %arg1[%207] : memref<128xi32, #tpu.memory_space<smem>>
    %209 = arith.index_cast %208 : i32 to index
    %c0_50 = arith.constant 0 : index
    %210 = vector.load %arg5[%209, %c0_50] : memref<384x256xf32, #tpu.memory_space<vmem>>, vector<1x256xf32>
    %211 = vector.shape_cast %210 : vector<1x256xf32> to vector<256xf32>
    %c22 = arith.constant 22 : index
    %c0_51 = arith.constant 0 : index
    %212 = vector.load %arg7[%c22, %c0_51] : memref<64x256xf32, #tpu.memory_space<vmem>>, vector<1x256xf32>
    %213 = vector.shape_cast %212 : vector<1x256xf32> to vector<256xf32>
    %214 = vector.shape_cast %211 : vector<256xf32> to vector<1x256xf32>
    tpu.vector_store %arg7[%c22, %c0_51], %214 {strides = array<i32>} : memref<64x256xf32, #tpu.memory_space<vmem>>, vector<1x256xf32>,
    %c23_i32 = arith.constant 23 : i32
    %215 = arith.addi %7, %c23_i32 : i32
    %216 = arith.index_cast %215 : i32 to index
    %217 = memref.load %arg1[%216] : memref<128xi32, #tpu.memory_space<smem>>
    %218 = arith.index_cast %217 : i32 to index
    %c0_52 = arith.constant 0 : index
    %219 = vector.load %arg5[%218, %c0_52] : memref<384x256xf32, #tpu.memory_space<vmem>>, vector<1x256xf32>
    %220 = vector.shape_cast %219 : vector<1x256xf32> to vector<256xf32>
    %c23 = arith.constant 23 : index
    %c0_53 = arith.constant 0 : index
    %221 = vector.load %arg7[%c23, %c0_53] : memref<64x256xf32, #tpu.memory_space<vmem>>, vector<1x256xf32>
    %222 = vector.shape_cast %221 : vector<1x256xf32> to vector<256xf32>
    %223 = vector.shape_cast %220 : vector<256xf32> to vector<1x256xf32>
    tpu.vector_store %arg7[%c23, %c0_53], %223 {strides = array<i32>} : memref<64x256xf32, #tpu.memory_space<vmem>>, vector<1x256xf32>,
    %c24_i32 = arith.constant 24 : i32
    %224 = arith.addi %7, %c24_i32 : i32
    %225 = arith.index_cast %224 : i32 to index
    %226 = memref.load %arg1[%225] : memref<128xi32, #tpu.memory_space<smem>>
    %227 = arith.index_cast %226 : i32 to index
    %c0_54 = arith.constant 0 : index
    %228 = vector.load %arg5[%227, %c0_54] : memref<384x256xf32, #tpu.memory_space<vmem>>, vector<1x256xf32>
    %229 = vector.shape_cast %228 : vector<1x256xf32> to vector<256xf32>
    %c24 = arith.constant 24 : index
    %c0_55 = arith.constant 0 : index
    %230 = vector.load %arg7[%c24, %c0_55] : memref<64x256xf32, #tpu.memory_space<vmem>>, vector<1x256xf32>
    %231 = vector.shape_cast %230 : vector<1x256xf32> to vector<256xf32>
    %232 = vector.shape_cast %229 : vector<256xf32> to vector<1x256xf32>
    tpu.vector_store %arg7[%c24, %c0_55], %232 {strides = array<i32>} : memref<64x256xf32, #tpu.memory_space<vmem>>, vector<1x256xf32>,
    %c25_i32 = arith.constant 25 : i32
    %233 = arith.addi %7, %c25_i32 : i32
    %234 = arith.index_cast %233 : i32 to index
    %235 = memref.load %arg1[%234] : memref<128xi32, #tpu.memory_space<smem>>
    %236 = arith.index_cast %235 : i32 to index
    %c0_56 = arith.constant 0 : index
    %237 = vector.load %arg5[%236, %c0_56] : memref<384x256xf32, #tpu.memory_space<vmem>>, vector<1x256xf32>
    %238 = vector.shape_cast %237 : vector<1x256xf32> to vector<256xf32>
    %c25 = arith.constant 25 : index
    %c0_57 = arith.constant 0 : index
    %239 = vector.load %arg7[%c25, %c0_57] : memref<64x256xf32, #tpu.memory_space<vmem>>, vector<1x256xf32>
    %240 = vector.shape_cast %239 : vector<1x256xf32> to vector<256xf32>
    %241 = vector.shape_cast %238 : vector<256xf32> to vector<1x256xf32>
    tpu.vector_store %arg7[%c25, %c0_57], %241 {strides = array<i32>} : memref<64x256xf32, #tpu.memory_space<vmem>>, vector<1x256xf32>,
    %c26_i32 = arith.constant 26 : i32
    %242 = arith.addi %7, %c26_i32 : i32
    %243 = arith.index_cast %242 : i32 to index
    %244 = memref.load %arg1[%243] : memref<128xi32, #tpu.memory_space<smem>>
    %245 = arith.index_cast %244 : i32 to index
    %c0_58 = arith.constant 0 : index
    %246 = vector.load %arg5[%245, %c0_58] : memref<384x256xf32, #tpu.memory_space<vmem>>, vector<1x256xf32>
    %247 = vector.shape_cast %246 : vector<1x256xf32> to vector<256xf32>
    %c26 = arith.constant 26 : index
    %c0_59 = arith.constant 0 : index
    %248 = vector.load %arg7[%c26, %c0_59] : memref<64x256xf32, #tpu.memory_space<vmem>>, vector<1x256xf32>
    %249 = vector.shape_cast %248 : vector<1x256xf32> to vector<256xf32>
    %250 = vector.shape_cast %247 : vector<256xf32> to vector<1x256xf32>
    tpu.vector_store %arg7[%c26, %c0_59], %250 {strides = array<i32>} : memref<64x256xf32, #tpu.memory_space<vmem>>, vector<1x256xf32>,
    %c27_i32 = arith.constant 27 : i32
    %251 = arith.addi %7, %c27_i32 : i32
    %252 = arith.index_cast %251 : i32 to index
    %253 = memref.load %arg1[%252] : memref<128xi32, #tpu.memory_space<smem>>
    %254 = arith.index_cast %253 : i32 to index
    %c0_60 = arith.constant 0 : index
    %255 = vector.load %arg5[%254, %c0_60] : memref<384x256xf32, #tpu.memory_space<vmem>>, vector<1x256xf32>
    %256 = vector.shape_cast %255 : vector<1x256xf32> to vector<256xf32>
    %c27 = arith.constant 27 : index
    %c0_61 = arith.constant 0 : index
    %257 = vector.load %arg7[%c27, %c0_61] : memref<64x256xf32, #tpu.memory_space<vmem>>, vector<1x256xf32>
    %258 = vector.shape_cast %257 : vector<1x256xf32> to vector<256xf32>
    %259 = vector.shape_cast %256 : vector<256xf32> to vector<1x256xf32>
    tpu.vector_store %arg7[%c27, %c0_61], %259 {strides = array<i32>} : memref<64x256xf32, #tpu.memory_space<vmem>>, vector<1x256xf32>,
    %c28_i32 = arith.constant 28 : i32
    %260 = arith.addi %7, %c28_i32 : i32
    %261 = arith.index_cast %260 : i32 to index
    %262 = memref.load %arg1[%261] : memref<128xi32, #tpu.memory_space<smem>>
    %263 = arith.index_cast %262 : i32 to index
    %c0_62 = arith.constant 0 : index
    %264 = vector.load %arg5[%263, %c0_62] : memref<384x256xf32, #tpu.memory_space<vmem>>, vector<1x256xf32>
    %265 = vector.shape_cast %264 : vector<1x256xf32> to vector<256xf32>
    %c28 = arith.constant 28 : index
    %c0_63 = arith.constant 0 : index
    %266 = vector.load %arg7[%c28, %c0_63] : memref<64x256xf32, #tpu.memory_space<vmem>>, vector<1x256xf32>
    %267 = vector.shape_cast %266 : vector<1x256xf32> to vector<256xf32>
    %268 = vector.shape_cast %265 : vector<256xf32> to vector<1x256xf32>
    tpu.vector_store %arg7[%c28, %c0_63], %268 {strides = array<i32>} : memref<64x256xf32, #tpu.memory_space<vmem>>, vector<1x256xf32>,
    %c29_i32 = arith.constant 29 : i32
    %269 = arith.addi %7, %c29_i32 : i32
    %270 = arith.index_cast %269 : i32 to index
    %271 = memref.load %arg1[%270] : memref<128xi32, #tpu.memory_space<smem>>
    %272 = arith.index_cast %271 : i32 to index
    %c0_64 = arith.constant 0 : index
    %273 = vector.load %arg5[%272, %c0_64] : memref<384x256xf32, #tpu.memory_space<vmem>>, vector<1x256xf32>
    %274 = vector.shape_cast %273 : vector<1x256xf32> to vector<256xf32>
    %c29 = arith.constant 29 : index
    %c0_65 = arith.constant 0 : index
    %275 = vector.load %arg7[%c29, %c0_65] : memref<64x256xf32, #tpu.memory_space<vmem>>, vector<1x256xf32>
    %276 = vector.shape_cast %275 : vector<1x256xf32> to vector<256xf32>
    %277 = vector.shape_cast %274 : vector<256xf32> to vector<1x256xf32>
    tpu.vector_store %arg7[%c29, %c0_65], %277 {strides = array<i32>} : memref<64x256xf32, #tpu.memory_space<vmem>>, vector<1x256xf32>,
    %c30_i32 = arith.constant 30 : i32
    %278 = arith.addi %7, %c30_i32 : i32
    %279 = arith.index_cast %278 : i32 to index
    %280 = memref.load %arg1[%279] : memref<128xi32, #tpu.memory_space<smem>>
    %281 = arith.index_cast %280 : i32 to index
    %c0_66 = arith.constant 0 : index
    %282 = vector.load %arg5[%281, %c0_66] : memref<384x256xf32, #tpu.memory_space<vmem>>, vector<1x256xf32>
    %283 = vector.shape_cast %282 : vector<1x256xf32> to vector<256xf32>
    %c30 = arith.constant 30 : index
    %c0_67 = arith.constant 0 : index
    %284 = vector.load %arg7[%c30, %c0_67] : memref<64x256xf32, #tpu.memory_space<vmem>>, vector<1x256xf32>
    %285 = vector.shape_cast %284 : vector<1x256xf32> to vector<256xf32>
    %286 = vector.shape_cast %283 : vector<256xf32> to vector<1x256xf32>
    tpu.vector_store %arg7[%c30, %c0_67], %286 {strides = array<i32>} : memref<64x256xf32, #tpu.memory_space<vmem>>, vector<1x256xf32>,
    %c31_i32 = arith.constant 31 : i32
    %287 = arith.addi %7, %c31_i32 : i32
    %288 = arith.index_cast %287 : i32 to index
    %289 = memref.load %arg1[%288] : memref<128xi32, #tpu.memory_space<smem>>
    %290 = arith.index_cast %289 : i32 to index
    %c0_68 = arith.constant 0 : index
    %291 = vector.load %arg5[%290, %c0_68] : memref<384x256xf32, #tpu.memory_space<vmem>>, vector<1x256xf32>
    %292 = vector.shape_cast %291 : vector<1x256xf32> to vector<256xf32>
    %c31 = arith.constant 31 : index
    %c0_69 = arith.constant 0 : index
    %293 = vector.load %arg7[%c31, %c0_69] : memref<64x256xf32, #tpu.memory_space<vmem>>, vector<1x256xf32>
    %294 = vector.shape_cast %293 : vector<1x256xf32> to vector<256xf32>
    %295 = vector.shape_cast %292 : vector<256xf32> to vector<1x256xf32>
    tpu.vector_store %arg7[%c31, %c0_69], %295 {strides = array<i32>} : memref<64x256xf32, #tpu.memory_space<vmem>>, vector<1x256xf32>,
    %c32_i32 = arith.constant 32 : i32
    %296 = arith.addi %7, %c32_i32 : i32
    %297 = arith.index_cast %296 : i32 to index
    %298 = memref.load %arg1[%297] : memref<128xi32, #tpu.memory_space<smem>>
    %299 = arith.index_cast %298 : i32 to index
    %c0_70 = arith.constant 0 : index
    %300 = vector.load %arg5[%299, %c0_70] : memref<384x256xf32, #tpu.memory_space<vmem>>, vector<1x256xf32>
    %301 = vector.shape_cast %300 : vector<1x256xf32> to vector<256xf32>
    %c32 = arith.constant 32 : index
    %c0_71 = arith.constant 0 : index
    %302 = vector.load %arg7[%c32, %c0_71] : memref<64x256xf32, #tpu.memory_space<vmem>>, vector<1x256xf32>
    %303 = vector.shape_cast %302 : vector<1x256xf32> to vector<256xf32>
    %304 = vector.shape_cast %301 : vector<256xf32> to vector<1x256xf32>
    tpu.vector_store %arg7[%c32, %c0_71], %304 {strides = array<i32>} : memref<64x256xf32, #tpu.memory_space<vmem>>, vector<1x256xf32>,
    %c33_i32 = arith.constant 33 : i32
    %305 = arith.addi %7, %c33_i32 : i32
    %306 = arith.index_cast %305 : i32 to index
    %307 = memref.load %arg1[%306] : memref<128xi32, #tpu.memory_space<smem>>
    %308 = arith.index_cast %307 : i32 to index
    %c0_72 = arith.constant 0 : index
    %309 = vector.load %arg5[%308, %c0_72] : memref<384x256xf32, #tpu.memory_space<vmem>>, vector<1x256xf32>
    %310 = vector.shape_cast %309 : vector<1x256xf32> to vector<256xf32>
    %c33 = arith.constant 33 : index
    %c0_73 = arith.constant 0 : index
    %311 = vector.load %arg7[%c33, %c0_73] : memref<64x256xf32, #tpu.memory_space<vmem>>, vector<1x256xf32>
    %312 = vector.shape_cast %311 : vector<1x256xf32> to vector<256xf32>
    %313 = vector.shape_cast %310 : vector<256xf32> to vector<1x256xf32>
    tpu.vector_store %arg7[%c33, %c0_73], %313 {strides = array<i32>} : memref<64x256xf32, #tpu.memory_space<vmem>>, vector<1x256xf32>,
    %c34_i32 = arith.constant 34 : i32
    %314 = arith.addi %7, %c34_i32 : i32
    %315 = arith.index_cast %314 : i32 to index
    %316 = memref.load %arg1[%315] : memref<128xi32, #tpu.memory_space<smem>>
    %317 = arith.index_cast %316 : i32 to index
    %c0_74 = arith.constant 0 : index
    %318 = vector.load %arg5[%317, %c0_74] : memref<384x256xf32, #tpu.memory_space<vmem>>, vector<1x256xf32>
    %319 = vector.shape_cast %318 : vector<1x256xf32> to vector<256xf32>
    %c34 = arith.constant 34 : index
    %c0_75 = arith.constant 0 : index
    %320 = vector.load %arg7[%c34, %c0_75] : memref<64x256xf32, #tpu.memory_space<vmem>>, vector<1x256xf32>
    %321 = vector.shape_cast %320 : vector<1x256xf32> to vector<256xf32>
    %322 = vector.shape_cast %319 : vector<256xf32> to vector<1x256xf32>
    tpu.vector_store %arg7[%c34, %c0_75], %322 {strides = array<i32>} : memref<64x256xf32, #tpu.memory_space<vmem>>, vector<1x256xf32>,
    %c35_i32 = arith.constant 35 : i32
    %323 = arith.addi %7, %c35_i32 : i32
    %324 = arith.index_cast %323 : i32 to index
    %325 = memref.load %arg1[%324] : memref<128xi32, #tpu.memory_space<smem>>
    %326 = arith.index_cast %325 : i32 to index
    %c0_76 = arith.constant 0 : index
    %327 = vector.load %arg5[%326, %c0_76] : memref<384x256xf32, #tpu.memory_space<vmem>>, vector<1x256xf32>
    %328 = vector.shape_cast %327 : vector<1x256xf32> to vector<256xf32>
    %c35 = arith.constant 35 : index
    %c0_77 = arith.constant 0 : index
    %329 = vector.load %arg7[%c35, %c0_77] : memref<64x256xf32, #tpu.memory_space<vmem>>, vector<1x256xf32>
    %330 = vector.shape_cast %329 : vector<1x256xf32> to vector<256xf32>
    %331 = vector.shape_cast %328 : vector<256xf32> to vector<1x256xf32>
    tpu.vector_store %arg7[%c35, %c0_77], %331 {strides = array<i32>} : memref<64x256xf32, #tpu.memory_space<vmem>>, vector<1x256xf32>,
    %c36_i32 = arith.constant 36 : i32
    %332 = arith.addi %7, %c36_i32 : i32
    %333 = arith.index_cast %332 : i32 to index
    %334 = memref.load %arg1[%333] : memref<128xi32, #tpu.memory_space<smem>>
    %335 = arith.index_cast %334 : i32 to index
    %c0_78 = arith.constant 0 : index
    %336 = vector.load %arg5[%335, %c0_78] : memref<384x256xf32, #tpu.memory_space<vmem>>, vector<1x256xf32>
    %337 = vector.shape_cast %336 : vector<1x256xf32> to vector<256xf32>
    %c36 = arith.constant 36 : index
    %c0_79 = arith.constant 0 : index
    %338 = vector.load %arg7[%c36, %c0_79] : memref<64x256xf32, #tpu.memory_space<vmem>>, vector<1x256xf32>
    %339 = vector.shape_cast %338 : vector<1x256xf32> to vector<256xf32>
    %340 = vector.shape_cast %337 : vector<256xf32> to vector<1x256xf32>
    tpu.vector_store %arg7[%c36, %c0_79], %340 {strides = array<i32>} : memref<64x256xf32, #tpu.memory_space<vmem>>, vector<1x256xf32>,
    %c37_i32 = arith.constant 37 : i32
    %341 = arith.addi %7, %c37_i32 : i32
    %342 = arith.index_cast %341 : i32 to index
    %343 = memref.load %arg1[%342] : memref<128xi32, #tpu.memory_space<smem>>
    %344 = arith.index_cast %343 : i32 to index
    %c0_80 = arith.constant 0 : index
    %345 = vector.load %arg5[%344, %c0_80] : memref<384x256xf32, #tpu.memory_space<vmem>>, vector<1x256xf32>
    %346 = vector.shape_cast %345 : vector<1x256xf32> to vector<256xf32>
    %c37 = arith.constant 37 : index
    %c0_81 = arith.constant 0 : index
    %347 = vector.load %arg7[%c37, %c0_81] : memref<64x256xf32, #tpu.memory_space<vmem>>, vector<1x256xf32>
    %348 = vector.shape_cast %347 : vector<1x256xf32> to vector<256xf32>
    %349 = vector.shape_cast %346 : vector<256xf32> to vector<1x256xf32>
    tpu.vector_store %arg7[%c37, %c0_81], %349 {strides = array<i32>} : memref<64x256xf32, #tpu.memory_space<vmem>>, vector<1x256xf32>,
    %c38_i32 = arith.constant 38 : i32
    %350 = arith.addi %7, %c38_i32 : i32
    %351 = arith.index_cast %350 : i32 to index
    %352 = memref.load %arg1[%351] : memref<128xi32, #tpu.memory_space<smem>>
    %353 = arith.index_cast %352 : i32 to index
    %c0_82 = arith.constant 0 : index
    %354 = vector.load %arg5[%353, %c0_82] : memref<384x256xf32, #tpu.memory_space<vmem>>, vector<1x256xf32>
    %355 = vector.shape_cast %354 : vector<1x256xf32> to vector<256xf32>
    %c38 = arith.constant 38 : index
    %c0_83 = arith.constant 0 : index
    %356 = vector.load %arg7[%c38, %c0_83] : memref<64x256xf32, #tpu.memory_space<vmem>>, vector<1x256xf32>
    %357 = vector.shape_cast %356 : vector<1x256xf32> to vector<256xf32>
    %358 = vector.shape_cast %355 : vector<256xf32> to vector<1x256xf32>
    tpu.vector_store %arg7[%c38, %c0_83], %358 {strides = array<i32>} : memref<64x256xf32, #tpu.memory_space<vmem>>, vector<1x256xf32>,
    %c39_i32 = arith.constant 39 : i32
    %359 = arith.addi %7, %c39_i32 : i32
    %360 = arith.index_cast %359 : i32 to index
    %361 = memref.load %arg1[%360] : memref<128xi32, #tpu.memory_space<smem>>
    %362 = arith.index_cast %361 : i32 to index
    %c0_84 = arith.constant 0 : index
    %363 = vector.load %arg5[%362, %c0_84] : memref<384x256xf32, #tpu.memory_space<vmem>>, vector<1x256xf32>
    %364 = vector.shape_cast %363 : vector<1x256xf32> to vector<256xf32>
    %c39 = arith.constant 39 : index
    %c0_85 = arith.constant 0 : index
    %365 = vector.load %arg7[%c39, %c0_85] : memref<64x256xf32, #tpu.memory_space<vmem>>, vector<1x256xf32>
    %366 = vector.shape_cast %365 : vector<1x256xf32> to vector<256xf32>
    %367 = vector.shape_cast %364 : vector<256xf32> to vector<1x256xf32>
    tpu.vector_store %arg7[%c39, %c0_85], %367 {strides = array<i32>} : memref<64x256xf32, #tpu.memory_space<vmem>>, vector<1x256xf32>,
    %c40_i32 = arith.constant 40 : i32
    %368 = arith.addi %7, %c40_i32 : i32
    %369 = arith.index_cast %368 : i32 to index
    %370 = memref.load %arg1[%369] : memref<128xi32, #tpu.memory_space<smem>>
    %371 = arith.index_cast %370 : i32 to index
    %c0_86 = arith.constant 0 : index
    %372 = vector.load %arg5[%371, %c0_86] : memref<384x256xf32, #tpu.memory_space<vmem>>, vector<1x256xf32>
    %373 = vector.shape_cast %372 : vector<1x256xf32> to vector<256xf32>
    %c40 = arith.constant 40 : index
    %c0_87 = arith.constant 0 : index
    %374 = vector.load %arg7[%c40, %c0_87] : memref<64x256xf32, #tpu.memory_space<vmem>>, vector<1x256xf32>
    %375 = vector.shape_cast %374 : vector<1x256xf32> to vector<256xf32>
    %376 = vector.shape_cast %373 : vector<256xf32> to vector<1x256xf32>
    tpu.vector_store %arg7[%c40, %c0_87], %376 {strides = array<i32>} : memref<64x256xf32, #tpu.memory_space<vmem>>, vector<1x256xf32>,
    %c41_i32 = arith.constant 41 : i32
    %377 = arith.addi %7, %c41_i32 : i32
    %378 = arith.index_cast %377 : i32 to index
    %379 = memref.load %arg1[%378] : memref<128xi32, #tpu.memory_space<smem>>
    %380 = arith.index_cast %379 : i32 to index
    %c0_88 = arith.constant 0 : index
    %381 = vector.load %arg5[%380, %c0_88] : memref<384x256xf32, #tpu.memory_space<vmem>>, vector<1x256xf32>
    %382 = vector.shape_cast %381 : vector<1x256xf32> to vector<256xf32>
    %c41 = arith.constant 41 : index
    %c0_89 = arith.constant 0 : index
    %383 = vector.load %arg7[%c41, %c0_89] : memref<64x256xf32, #tpu.memory_space<vmem>>, vector<1x256xf32>
    %384 = vector.shape_cast %383 : vector<1x256xf32> to vector<256xf32>
    %385 = vector.shape_cast %382 : vector<256xf32> to vector<1x256xf32>
    tpu.vector_store %arg7[%c41, %c0_89], %385 {strides = array<i32>} : memref<64x256xf32, #tpu.memory_space<vmem>>, vector<1x256xf32>,
    %c42_i32 = arith.constant 42 : i32
    %386 = arith.addi %7, %c42_i32 : i32
    %387 = arith.index_cast %386 : i32 to index
    %388 = memref.load %arg1[%387] : memref<128xi32, #tpu.memory_space<smem>>
    %389 = arith.index_cast %388 : i32 to index
    %c0_90 = arith.constant 0 : index
    %390 = vector.load %arg5[%389, %c0_90] : memref<384x256xf32, #tpu.memory_space<vmem>>, vector<1x256xf32>
    %391 = vector.shape_cast %390 : vector<1x256xf32> to vector<256xf32>
    %c42 = arith.constant 42 : index
    %c0_91 = arith.constant 0 : index
    %392 = vector.load %arg7[%c42, %c0_91] : memref<64x256xf32, #tpu.memory_space<vmem>>, vector<1x256xf32>
    %393 = vector.shape_cast %392 : vector<1x256xf32> to vector<256xf32>
    %394 = vector.shape_cast %391 : vector<256xf32> to vector<1x256xf32>
    tpu.vector_store %arg7[%c42, %c0_91], %394 {strides = array<i32>} : memref<64x256xf32, #tpu.memory_space<vmem>>, vector<1x256xf32>,
    %c43_i32 = arith.constant 43 : i32
    %395 = arith.addi %7, %c43_i32 : i32
    %396 = arith.index_cast %395 : i32 to index
    %397 = memref.load %arg1[%396] : memref<128xi32, #tpu.memory_space<smem>>
    %398 = arith.index_cast %397 : i32 to index
    %c0_92 = arith.constant 0 : index
    %399 = vector.load %arg5[%398, %c0_92] : memref<384x256xf32, #tpu.memory_space<vmem>>, vector<1x256xf32>
    %400 = vector.shape_cast %399 : vector<1x256xf32> to vector<256xf32>
    %c43 = arith.constant 43 : index
    %c0_93 = arith.constant 0 : index
    %401 = vector.load %arg7[%c43, %c0_93] : memref<64x256xf32, #tpu.memory_space<vmem>>, vector<1x256xf32>
    %402 = vector.shape_cast %401 : vector<1x256xf32> to vector<256xf32>
    %403 = vector.shape_cast %400 : vector<256xf32> to vector<1x256xf32>
    tpu.vector_store %arg7[%c43, %c0_93], %403 {strides = array<i32>} : memref<64x256xf32, #tpu.memory_space<vmem>>, vector<1x256xf32>,
    %c44_i32 = arith.constant 44 : i32
    %404 = arith.addi %7, %c44_i32 : i32
    %405 = arith.index_cast %404 : i32 to index
    %406 = memref.load %arg1[%405] : memref<128xi32, #tpu.memory_space<smem>>
    %407 = arith.index_cast %406 : i32 to index
    %c0_94 = arith.constant 0 : index
    %408 = vector.load %arg5[%407, %c0_94] : memref<384x256xf32, #tpu.memory_space<vmem>>, vector<1x256xf32>
    %409 = vector.shape_cast %408 : vector<1x256xf32> to vector<256xf32>
    %c44 = arith.constant 44 : index
    %c0_95 = arith.constant 0 : index
    %410 = vector.load %arg7[%c44, %c0_95] : memref<64x256xf32, #tpu.memory_space<vmem>>, vector<1x256xf32>
    %411 = vector.shape_cast %410 : vector<1x256xf32> to vector<256xf32>
    %412 = vector.shape_cast %409 : vector<256xf32> to vector<1x256xf32>
    tpu.vector_store %arg7[%c44, %c0_95], %412 {strides = array<i32>} : memref<64x256xf32, #tpu.memory_space<vmem>>, vector<1x256xf32>,
    %c45_i32 = arith.constant 45 : i32
    %413 = arith.addi %7, %c45_i32 : i32
    %414 = arith.index_cast %413 : i32 to index
    %415 = memref.load %arg1[%414] : memref<128xi32, #tpu.memory_space<smem>>
    %416 = arith.index_cast %415 : i32 to index
    %c0_96 = arith.constant 0 : index
    %417 = vector.load %arg5[%416, %c0_96] : memref<384x256xf32, #tpu.memory_space<vmem>>, vector<1x256xf32>
    %418 = vector.shape_cast %417 : vector<1x256xf32> to vector<256xf32>
    %c45 = arith.constant 45 : index
    %c0_97 = arith.constant 0 : index
    %419 = vector.load %arg7[%c45, %c0_97] : memref<64x256xf32, #tpu.memory_space<vmem>>, vector<1x256xf32>
    %420 = vector.shape_cast %419 : vector<1x256xf32> to vector<256xf32>
    %421 = vector.shape_cast %418 : vector<256xf32> to vector<1x256xf32>
    tpu.vector_store %arg7[%c45, %c0_97], %421 {strides = array<i32>} : memref<64x256xf32, #tpu.memory_space<vmem>>, vector<1x256xf32>,
    %c46_i32 = arith.constant 46 : i32
    %422 = arith.addi %7, %c46_i32 : i32
    %423 = arith.index_cast %422 : i32 to index
    %424 = memref.load %arg1[%423] : memref<128xi32, #tpu.memory_space<smem>>
    %425 = arith.index_cast %424 : i32 to index
    %c0_98 = arith.constant 0 : index
    %426 = vector.load %arg5[%425, %c0_98] : memref<384x256xf32, #tpu.memory_space<vmem>>, vector<1x256xf32>
    %427 = vector.shape_cast %426 : vector<1x256xf32> to vector<256xf32>
    %c46 = arith.constant 46 : index
    %c0_99 = arith.constant 0 : index
    %428 = vector.load %arg7[%c46, %c0_99] : memref<64x256xf32, #tpu.memory_space<vmem>>, vector<1x256xf32>
    %429 = vector.shape_cast %428 : vector<1x256xf32> to vector<256xf32>
    %430 = vector.shape_cast %427 : vector<256xf32> to vector<1x256xf32>
    tpu.vector_store %arg7[%c46, %c0_99], %430 {strides = array<i32>} : memref<64x256xf32, #tpu.memory_space<vmem>>, vector<1x256xf32>,
    %c47_i32 = arith.constant 47 : i32
    %431 = arith.addi %7, %c47_i32 : i32
    %432 = arith.index_cast %431 : i32 to index
    %433 = memref.load %arg1[%432] : memref<128xi32, #tpu.memory_space<smem>>
    %434 = arith.index_cast %433 : i32 to index
    %c0_100 = arith.constant 0 : index
    %435 = vector.load %arg5[%434, %c0_100] : memref<384x256xf32, #tpu.memory_space<vmem>>, vector<1x256xf32>
    %436 = vector.shape_cast %435 : vector<1x256xf32> to vector<256xf32>
    %c47 = arith.constant 47 : index
    %c0_101 = arith.constant 0 : index
    %437 = vector.load %arg7[%c47, %c0_101] : memref<64x256xf32, #tpu.memory_space<vmem>>, vector<1x256xf32>
    %438 = vector.shape_cast %437 : vector<1x256xf32> to vector<256xf32>
    %439 = vector.shape_cast %436 : vector<256xf32> to vector<1x256xf32>
    tpu.vector_store %arg7[%c47, %c0_101], %439 {strides = array<i32>} : memref<64x256xf32, #tpu.memory_space<vmem>>, vector<1x256xf32>,
    %c48_i32 = arith.constant 48 : i32
    %440 = arith.addi %7, %c48_i32 : i32
    %441 = arith.index_cast %440 : i32 to index
    %442 = memref.load %arg1[%441] : memref<128xi32, #tpu.memory_space<smem>>
    %443 = arith.index_cast %442 : i32 to index
    %c0_102 = arith.constant 0 : index
    %444 = vector.load %arg5[%443, %c0_102] : memref<384x256xf32, #tpu.memory_space<vmem>>, vector<1x256xf32>
    %445 = vector.shape_cast %444 : vector<1x256xf32> to vector<256xf32>
    %c48 = arith.constant 48 : index
    %c0_103 = arith.constant 0 : index
    %446 = vector.load %arg7[%c48, %c0_103] : memref<64x256xf32, #tpu.memory_space<vmem>>, vector<1x256xf32>
    %447 = vector.shape_cast %446 : vector<1x256xf32> to vector<256xf32>
    %448 = vector.shape_cast %445 : vector<256xf32> to vector<1x256xf32>
    tpu.vector_store %arg7[%c48, %c0_103], %448 {strides = array<i32>} : memref<64x256xf32, #tpu.memory_space<vmem>>, vector<1x256xf32>,
    %c49_i32 = arith.constant 49 : i32
    %449 = arith.addi %7, %c49_i32 : i32
    %450 = arith.index_cast %449 : i32 to index
    %451 = memref.load %arg1[%450] : memref<128xi32, #tpu.memory_space<smem>>
    %452 = arith.index_cast %451 : i32 to index
    %c0_104 = arith.constant 0 : index
    %453 = vector.load %arg5[%452, %c0_104] : memref<384x256xf32, #tpu.memory_space<vmem>>, vector<1x256xf32>
    %454 = vector.shape_cast %453 : vector<1x256xf32> to vector<256xf32>
    %c49 = arith.constant 49 : index
    %c0_105 = arith.constant 0 : index
    %455 = vector.load %arg7[%c49, %c0_105] : memref<64x256xf32, #tpu.memory_space<vmem>>, vector<1x256xf32>
    %456 = vector.shape_cast %455 : vector<1x256xf32> to vector<256xf32>
    %457 = vector.shape_cast %454 : vector<256xf32> to vector<1x256xf32>
    tpu.vector_store %arg7[%c49, %c0_105], %457 {strides = array<i32>} : memref<64x256xf32, #tpu.memory_space<vmem>>, vector<1x256xf32>,
    %c50_i32 = arith.constant 50 : i32
    %458 = arith.addi %7, %c50_i32 : i32
    %459 = arith.index_cast %458 : i32 to index
    %460 = memref.load %arg1[%459] : memref<128xi32, #tpu.memory_space<smem>>
    %461 = arith.index_cast %460 : i32 to index
    %c0_106 = arith.constant 0 : index
    %462 = vector.load %arg5[%461, %c0_106] : memref<384x256xf32, #tpu.memory_space<vmem>>, vector<1x256xf32>
    %463 = vector.shape_cast %462 : vector<1x256xf32> to vector<256xf32>
    %c50 = arith.constant 50 : index
    %c0_107 = arith.constant 0 : index
    %464 = vector.load %arg7[%c50, %c0_107] : memref<64x256xf32, #tpu.memory_space<vmem>>, vector<1x256xf32>
    %465 = vector.shape_cast %464 : vector<1x256xf32> to vector<256xf32>
    %466 = vector.shape_cast %463 : vector<256xf32> to vector<1x256xf32>
    tpu.vector_store %arg7[%c50, %c0_107], %466 {strides = array<i32>} : memref<64x256xf32, #tpu.memory_space<vmem>>, vector<1x256xf32>,
    %c51_i32 = arith.constant 51 : i32
    %467 = arith.addi %7, %c51_i32 : i32
    %468 = arith.index_cast %467 : i32 to index
    %469 = memref.load %arg1[%468] : memref<128xi32, #tpu.memory_space<smem>>
    %470 = arith.index_cast %469 : i32 to index
    %c0_108 = arith.constant 0 : index
    %471 = vector.load %arg5[%470, %c0_108] : memref<384x256xf32, #tpu.memory_space<vmem>>, vector<1x256xf32>
    %472 = vector.shape_cast %471 : vector<1x256xf32> to vector<256xf32>
    %c51 = arith.constant 51 : index
    %c0_109 = arith.constant 0 : index
    %473 = vector.load %arg7[%c51, %c0_109] : memref<64x256xf32, #tpu.memory_space<vmem>>, vector<1x256xf32>
    %474 = vector.shape_cast %473 : vector<1x256xf32> to vector<256xf32>
    %475 = vector.shape_cast %472 : vector<256xf32> to vector<1x256xf32>
    tpu.vector_store %arg7[%c51, %c0_109], %475 {strides = array<i32>} : memref<64x256xf32, #tpu.memory_space<vmem>>, vector<1x256xf32>,
    %c52_i32 = arith.constant 52 : i32
    %476 = arith.addi %7, %c52_i32 : i32
    %477 = arith.index_cast %476 : i32 to index
    %478 = memref.load %arg1[%477] : memref<128xi32, #tpu.memory_space<smem>>
    %479 = arith.index_cast %478 : i32 to index
    %c0_110 = arith.constant 0 : index
    %480 = vector.load %arg5[%479, %c0_110] : memref<384x256xf32, #tpu.memory_space<vmem>>, vector<1x256xf32>
    %481 = vector.shape_cast %480 : vector<1x256xf32> to vector<256xf32>
    %c52 = arith.constant 52 : index
    %c0_111 = arith.constant 0 : index
    %482 = vector.load %arg7[%c52, %c0_111] : memref<64x256xf32, #tpu.memory_space<vmem>>, vector<1x256xf32>
    %483 = vector.shape_cast %482 : vector<1x256xf32> to vector<256xf32>
    %484 = vector.shape_cast %481 : vector<256xf32> to vector<1x256xf32>
    tpu.vector_store %arg7[%c52, %c0_111], %484 {strides = array<i32>} : memref<64x256xf32, #tpu.memory_space<vmem>>, vector<1x256xf32>,
    %c53_i32 = arith.constant 53 : i32
    %485 = arith.addi %7, %c53_i32 : i32
    %486 = arith.index_cast %485 : i32 to index
    %487 = memref.load %arg1[%486] : memref<128xi32, #tpu.memory_space<smem>>
    %488 = arith.index_cast %487 : i32 to index
    %c0_112 = arith.constant 0 : index
    %489 = vector.load %arg5[%488, %c0_112] : memref<384x256xf32, #tpu.memory_space<vmem>>, vector<1x256xf32>
    %490 = vector.shape_cast %489 : vector<1x256xf32> to vector<256xf32>
    %c53 = arith.constant 53 : index
    %c0_113 = arith.constant 0 : index
    %491 = vector.load %arg7[%c53, %c0_113] : memref<64x256xf32, #tpu.memory_space<vmem>>, vector<1x256xf32>
    %492 = vector.shape_cast %491 : vector<1x256xf32> to vector<256xf32>
    %493 = vector.shape_cast %490 : vector<256xf32> to vector<1x256xf32>
    tpu.vector_store %arg7[%c53, %c0_113], %493 {strides = array<i32>} : memref<64x256xf32, #tpu.memory_space<vmem>>, vector<1x256xf32>,
    %c54_i32 = arith.constant 54 : i32
    %494 = arith.addi %7, %c54_i32 : i32
    %495 = arith.index_cast %494 : i32 to index
    %496 = memref.load %arg1[%495] : memref<128xi32, #tpu.memory_space<smem>>
    %497 = arith.index_cast %496 : i32 to index
    %c0_114 = arith.constant 0 : index
    %498 = vector.load %arg5[%497, %c0_114] : memref<384x256xf32, #tpu.memory_space<vmem>>, vector<1x256xf32>
    %499 = vector.shape_cast %498 : vector<1x256xf32> to vector<256xf32>
    %c54 = arith.constant 54 : index
    %c0_115 = arith.constant 0 : index
    %500 = vector.load %arg7[%c54, %c0_115] : memref<64x256xf32, #tpu.memory_space<vmem>>, vector<1x256xf32>
    %501 = vector.shape_cast %500 : vector<1x256xf32> to vector<256xf32>
    %502 = vector.shape_cast %499 : vector<256xf32> to vector<1x256xf32>
    tpu.vector_store %arg7[%c54, %c0_115], %502 {strides = array<i32>} : memref<64x256xf32, #tpu.memory_space<vmem>>, vector<1x256xf32>,
    %c55_i32 = arith.constant 55 : i32
    %503 = arith.addi %7, %c55_i32 : i32
    %504 = arith.index_cast %503 : i32 to index
    %505 = memref.load %arg1[%504] : memref<128xi32, #tpu.memory_space<smem>>
    %506 = arith.index_cast %505 : i32 to index
    %c0_116 = arith.constant 0 : index
    %507 = vector.load %arg5[%506, %c0_116] : memref<384x256xf32, #tpu.memory_space<vmem>>, vector<1x256xf32>
    %508 = vector.shape_cast %507 : vector<1x256xf32> to vector<256xf32>
    %c55 = arith.constant 55 : index
    %c0_117 = arith.constant 0 : index
    %509 = vector.load %arg7[%c55, %c0_117] : memref<64x256xf32, #tpu.memory_space<vmem>>, vector<1x256xf32>
    %510 = vector.shape_cast %509 : vector<1x256xf32> to vector<256xf32>
    %511 = vector.shape_cast %508 : vector<256xf32> to vector<1x256xf32>
    tpu.vector_store %arg7[%c55, %c0_117], %511 {strides = array<i32>} : memref<64x256xf32, #tpu.memory_space<vmem>>, vector<1x256xf32>,
    %c56_i32 = arith.constant 56 : i32
    %512 = arith.addi %7, %c56_i32 : i32
    %513 = arith.index_cast %512 : i32 to index
    %514 = memref.load %arg1[%513] : memref<128xi32, #tpu.memory_space<smem>>
    %515 = arith.index_cast %514 : i32 to index
    %c0_118 = arith.constant 0 : index
    %516 = vector.load %arg5[%515, %c0_118] : memref<384x256xf32, #tpu.memory_space<vmem>>, vector<1x256xf32>
    %517 = vector.shape_cast %516 : vector<1x256xf32> to vector<256xf32>
    %c56 = arith.constant 56 : index
    %c0_119 = arith.constant 0 : index
    %518 = vector.load %arg7[%c56, %c0_119] : memref<64x256xf32, #tpu.memory_space<vmem>>, vector<1x256xf32>
    %519 = vector.shape_cast %518 : vector<1x256xf32> to vector<256xf32>
    %520 = vector.shape_cast %517 : vector<256xf32> to vector<1x256xf32>
    tpu.vector_store %arg7[%c56, %c0_119], %520 {strides = array<i32>} : memref<64x256xf32, #tpu.memory_space<vmem>>, vector<1x256xf32>,
    %c57_i32 = arith.constant 57 : i32
    %521 = arith.addi %7, %c57_i32 : i32
    %522 = arith.index_cast %521 : i32 to index
    %523 = memref.load %arg1[%522] : memref<128xi32, #tpu.memory_space<smem>>
    %524 = arith.index_cast %523 : i32 to index
    %c0_120 = arith.constant 0 : index
    %525 = vector.load %arg5[%524, %c0_120] : memref<384x256xf32, #tpu.memory_space<vmem>>, vector<1x256xf32>
    %526 = vector.shape_cast %525 : vector<1x256xf32> to vector<256xf32>
    %c57 = arith.constant 57 : index
    %c0_121 = arith.constant 0 : index
    %527 = vector.load %arg7[%c57, %c0_121] : memref<64x256xf32, #tpu.memory_space<vmem>>, vector<1x256xf32>
    %528 = vector.shape_cast %527 : vector<1x256xf32> to vector<256xf32>
    %529 = vector.shape_cast %526 : vector<256xf32> to vector<1x256xf32>
    tpu.vector_store %arg7[%c57, %c0_121], %529 {strides = array<i32>} : memref<64x256xf32, #tpu.memory_space<vmem>>, vector<1x256xf32>,
    %c58_i32 = arith.constant 58 : i32
    %530 = arith.addi %7, %c58_i32 : i32
    %531 = arith.index_cast %530 : i32 to index
    %532 = memref.load %arg1[%531] : memref<128xi32, #tpu.memory_space<smem>>
    %533 = arith.index_cast %532 : i32 to index
    %c0_122 = arith.constant 0 : index
    %534 = vector.load %arg5[%533, %c0_122] : memref<384x256xf32, #tpu.memory_space<vmem>>, vector<1x256xf32>
    %535 = vector.shape_cast %534 : vector<1x256xf32> to vector<256xf32>
    %c58 = arith.constant 58 : index
    %c0_123 = arith.constant 0 : index
    %536 = vector.load %arg7[%c58, %c0_123] : memref<64x256xf32, #tpu.memory_space<vmem>>, vector<1x256xf32>
    %537 = vector.shape_cast %536 : vector<1x256xf32> to vector<256xf32>
    %538 = vector.shape_cast %535 : vector<256xf32> to vector<1x256xf32>
    tpu.vector_store %arg7[%c58, %c0_123], %538 {strides = array<i32>} : memref<64x256xf32, #tpu.memory_space<vmem>>, vector<1x256xf32>,
    %c59_i32 = arith.constant 59 : i32
    %539 = arith.addi %7, %c59_i32 : i32
    %540 = arith.index_cast %539 : i32 to index
    %541 = memref.load %arg1[%540] : memref<128xi32, #tpu.memory_space<smem>>
    %542 = arith.index_cast %541 : i32 to index
    %c0_124 = arith.constant 0 : index
    %543 = vector.load %arg5[%542, %c0_124] : memref<384x256xf32, #tpu.memory_space<vmem>>, vector<1x256xf32>
    %544 = vector.shape_cast %543 : vector<1x256xf32> to vector<256xf32>
    %c59 = arith.constant 59 : index
    %c0_125 = arith.constant 0 : index
    %545 = vector.load %arg7[%c59, %c0_125] : memref<64x256xf32, #tpu.memory_space<vmem>>, vector<1x256xf32>
    %546 = vector.shape_cast %545 : vector<1x256xf32> to vector<256xf32>
    %547 = vector.shape_cast %544 : vector<256xf32> to vector<1x256xf32>
    tpu.vector_store %arg7[%c59, %c0_125], %547 {strides = array<i32>} : memref<64x256xf32, #tpu.memory_space<vmem>>, vector<1x256xf32>,
    %c60_i32 = arith.constant 60 : i32
    %548 = arith.addi %7, %c60_i32 : i32
    %549 = arith.index_cast %548 : i32 to index
    %550 = memref.load %arg1[%549] : memref<128xi32, #tpu.memory_space<smem>>
    %551 = arith.index_cast %550 : i32 to index
    %c0_126 = arith.constant 0 : index
    %552 = vector.load %arg5[%551, %c0_126] : memref<384x256xf32, #tpu.memory_space<vmem>>, vector<1x256xf32>
    %553 = vector.shape_cast %552 : vector<1x256xf32> to vector<256xf32>
    %c60 = arith.constant 60 : index
    %c0_127 = arith.constant 0 : index
    %554 = vector.load %arg7[%c60, %c0_127] : memref<64x256xf32, #tpu.memory_space<vmem>>, vector<1x256xf32>
    %555 = vector.shape_cast %554 : vector<1x256xf32> to vector<256xf32>
    %556 = vector.shape_cast %553 : vector<256xf32> to vector<1x256xf32>
    tpu.vector_store %arg7[%c60, %c0_127], %556 {strides = array<i32>} : memref<64x256xf32, #tpu.memory_space<vmem>>, vector<1x256xf32>,
    %c61_i32 = arith.constant 61 : i32
    %557 = arith.addi %7, %c61_i32 : i32
    %558 = arith.index_cast %557 : i32 to index
    %559 = memref.load %arg1[%558] : memref<128xi32, #tpu.memory_space<smem>>
    %560 = arith.index_cast %559 : i32 to index
    %c0_128 = arith.constant 0 : index
    %561 = vector.load %arg5[%560, %c0_128] : memref<384x256xf32, #tpu.memory_space<vmem>>, vector<1x256xf32>
    %562 = vector.shape_cast %561 : vector<1x256xf32> to vector<256xf32>
    %c61 = arith.constant 61 : index
    %c0_129 = arith.constant 0 : index
    %563 = vector.load %arg7[%c61, %c0_129] : memref<64x256xf32, #tpu.memory_space<vmem>>, vector<1x256xf32>
    %564 = vector.shape_cast %563 : vector<1x256xf32> to vector<256xf32>
    %565 = vector.shape_cast %562 : vector<256xf32> to vector<1x256xf32>
    tpu.vector_store %arg7[%c61, %c0_129], %565 {strides = array<i32>} : memref<64x256xf32, #tpu.memory_space<vmem>>, vector<1x256xf32>,
    %c62_i32 = arith.constant 62 : i32
    %566 = arith.addi %7, %c62_i32 : i32
    %567 = arith.index_cast %566 : i32 to index
    %568 = memref.load %arg1[%567] : memref<128xi32, #tpu.memory_space<smem>>
    %569 = arith.index_cast %568 : i32 to index
    %c0_130 = arith.constant 0 : index
    %570 = vector.load %arg5[%569, %c0_130] : memref<384x256xf32, #tpu.memory_space<vmem>>, vector<1x256xf32>
    %571 = vector.shape_cast %570 : vector<1x256xf32> to vector<256xf32>
    %c62 = arith.constant 62 : index
    %c0_131 = arith.constant 0 : index
    %572 = vector.load %arg7[%c62, %c0_131] : memref<64x256xf32, #tpu.memory_space<vmem>>, vector<1x256xf32>
    %573 = vector.shape_cast %572 : vector<1x256xf32> to vector<256xf32>
    %574 = vector.shape_cast %571 : vector<256xf32> to vector<1x256xf32>
    tpu.vector_store %arg7[%c62, %c0_131], %574 {strides = array<i32>} : memref<64x256xf32, #tpu.memory_space<vmem>>, vector<1x256xf32>,
    %c63_i32 = arith.constant 63 : i32
    %575 = arith.addi %7, %c63_i32 : i32
    %576 = arith.index_cast %575 : i32 to index
    %577 = memref.load %arg1[%576] : memref<128xi32, #tpu.memory_space<smem>>
    %578 = arith.index_cast %577 : i32 to index
    %c0_132 = arith.constant 0 : index
    %579 = vector.load %arg5[%578, %c0_132] : memref<384x256xf32, #tpu.memory_space<vmem>>, vector<1x256xf32>
    %580 = vector.shape_cast %579 : vector<1x256xf32> to vector<256xf32>
    %c63 = arith.constant 63 : index
    %c0_133 = arith.constant 0 : index
    %581 = vector.load %arg7[%c63, %c0_133] : memref<64x256xf32, #tpu.memory_space<vmem>>, vector<1x256xf32>
    %582 = vector.shape_cast %581 : vector<1x256xf32> to vector<256xf32>
    %583 = vector.shape_cast %580 : vector<256xf32> to vector<1x256xf32>
    tpu.vector_store %arg7[%c63, %c0_133], %583 {strides = array<i32>} : memref<64x256xf32, #tpu.memory_space<vmem>>, vector<1x256xf32>,
    %c0_134 = arith.constant 0 : index
    %c0_135 = arith.constant 0 : index
    %584 = vector.load %arg7[%c0_134, %c0_135] : memref<64x256xf32, #tpu.memory_space<vmem>>, vector<64x256xf32>
    %585 = vector.extract_strided_slice %584 {offsets = [0, 0], sizes = [64, 128], strides = [1, 1]} : vector<64x256xf32> to vector<64x128xf32>
    %586 = vector.extract_strided_slice %584 {offsets = [0, 128], sizes = [64, 128], strides = [1, 1]} : vector<64x256xf32> to vector<64x128xf32>
    %587 = vector.extract_strided_slice %6 {offsets = [0, 0], sizes = [64, 128], strides = [1, 1]} : vector<64x256xf32> to vector<64x128xf32>
    %588 = vector.extract_strided_slice %6 {offsets = [0, 128], sizes = [64, 128], strides = [1, 1]} : vector<64x256xf32> to vector<64x128xf32>
    %589 = arith.mulf %585, %587 : vector<64x128xf32>
    %590 = arith.mulf %586, %588 : vector<64x128xf32>
    %591 = arith.subf %589, %590 : vector<64x128xf32>
    %592 = arith.mulf %585, %588 : vector<64x128xf32>
    %593 = arith.mulf %586, %587 : vector<64x128xf32>
    %594 = arith.addf %592, %593 : vector<64x128xf32>
    %595 = tpu.concatenate %591, %594 in 1 : vector<64x128xf32>, vector<64x128xf32> -> vector<64x256xf32>
    %c0_136 = arith.constant 0 : index
    %c0_137 = arith.constant 0 : index
    %596 = vector.load %arg5[%c0_136, %c0_137] : memref<384x256xf32, #tpu.memory_space<vmem>>, vector<384x256xf32>
    %cst_138 = arith.constant dense<0.000000e+00> : vector<64x384xf32>
    %597 = tpu.matmul %595, %596, %cst_138 {dimension_numbers = #tpu.dot_dimension_numbers<[1], [1], [0], [0], [0, 0, 1, 0], [], []>} : vector<64x256xf32>, vector<384x256xf32>, vector<64x384xf32> -> vector<64x384xf32>
    %c0_139 = arith.constant 0 : index
    %c0_140 = arith.constant 0 : index
    %598 = vector.load %arg6[%c0_139, %c0_140] : memref<64x384xf32, #tpu.memory_space<vmem>>, vector<64x384xf32>
    tpu.vector_store %arg6[%c0_139, %c0_140], %597 {strides = array<i32>} : memref<64x384xf32, #tpu.memory_space<vmem>>, vector<64x384xf32>,
    return
  }
  func.func @transform_0(%arg0: i32, %arg1: memref<128xi32, #tpu.memory_space<smem>>) -> (i32, i32) {
    %c0_i32 = arith.constant 0 : i32
    %c0_i32_0 = arith.constant 0 : i32
    return %arg0, %c0_i32 : i32, i32
  }
  func.func @transform_1(%arg0: i32, %arg1: memref<128xi32, #tpu.memory_space<smem>>) -> (i32, i32) {
    %c0_i32 = arith.constant 0 : i32
    %c0_i32_0 = arith.constant 0 : i32
    %c0_i32_1 = arith.constant 0 : i32
    return %c0_i32, %c0_i32_0 : i32, i32
  }
  func.func @transform_2(%arg0: i32, %arg1: memref<128xi32, #tpu.memory_space<smem>>) -> (i32, i32) {
    %c0_i32 = arith.constant 0 : i32
    %c0_i32_0 = arith.constant 0 : i32
    %c0_i32_1 = arith.constant 0 : i32
    return %c0_i32, %c0_i32_0 : i32, i32
  }
  func.func @transform_3(%arg0: i32, %arg1: memref<128xi32, #tpu.memory_space<smem>>) -> (i32, i32) {
    %c0_i32 = arith.constant 0 : i32
    %c0_i32_0 = arith.constant 0 : i32
    %c0_i32_1 = arith.constant 0 : i32
    return %c0_i32, %c0_i32_0 : i32, i32
  }
  func.func @transform_4(%arg0: i32, %arg1: memref<128xi32, #tpu.memory_space<smem>>) -> (i32, i32) {
    %c0_i32 = arith.constant 0 : i32
    %c0_i32_0 = arith.constant 0 : i32
    return %arg0, %c0_i32 : i32, i32
  }
}

</mosaic_0001>

<llo_original>
// kernel: qa_embedkgqa_forward.1
$region0: #{qa_embedkgqa_forward.1}
  #allocation0 [shape = 'u32[]', space=smem, size = 0x4, offset = 0x4, fixed_abs, tag = 'smem constant byte address 0x4 - core index']
  #allocation1 [shape = 'u32[144,128]{1,0:T(1,128)}', space=vmem, size = 0x12000, scoped, tag = 'internal scratch']
  #allocation2 [shape = 'f32[64,256]{1,0:T(8,128)}', space=vmem, size = 0x10000, scoped, tag = 'scratch operand']
  #allocation3 [shape = 's32[1]{0}', space=sflag, size = 0x4, scoped, tag = 'scoped memory for qa_embedkgqa_forward.1']
  #allocation4 [shape = 'u8[512]{0}', space=smem, size = 0x200, scoped, tag = 'prefetched SMEM operand 0']
  %s0 = inlined_call_operand.vmem [shape: s32[128], index: 0, kind: input, shape index: {}]
  %s1 = inlined_call_operand.vmem [shape: f32[128,256], index: 1, kind: input, shape index: {}]
  %s2 = inlined_call_operand.vmem [shape: bf16[256,256], index: 2, kind: input, shape index: {}]
  %s3 = inlined_call_operand.vmem [shape: f32[1,256], index: 3, kind: input, shape index: {}]
  %s4 = inlined_call_operand.vmem [shape: f32[384,256], index: 4, kind: input, shape index: {}]
  %s5 = inlined_call_operand.hbm [shape: f32[128,384], index: 5, kind: output, shape index: {}]
  %s6 = sld [smem:[#allocation0]]
  $region49: #{qa_embedkgqa_forward.1} parent=0
    _
  %s8 = ssub.s32 1, %s6
  %s9 = scalar_select 0, %s8, %s6
  %s10 = sshll.u32 %s0, 4
  %s11 = int_to_ptr.vmem [resolvable:$true] %s10
  %13 = dma.vmem_to_smem %s11, 16, [#allocation4], [#allocation3]
  %14 = dma.done [#allocation3], 16
  %15 = sfence
  $region1: #{qa_embedkgqa_forward.1} parent=0
    #allocation5 [shape = 'u8[196608]{0}', space=vmem, size = 0x30000, scoped, tag = 'output window, operand 0']
    #allocation6 [shape = 's32[2]{0}', space=sflag, size = 0x8, scoped, tag = 'scoped memory for qa_embedkgqa_forward.1']
    %16 = vsyncpa [#allocation6], 0
    %s17 = scalar_lea.sflag [#allocation6], 1
    %18 = vsyncpa %s17, 0
    loop: start=0, step=1, limit=4
    $region2: #{qa_embedkgqa_forward.1} parent=1 // loop_pre_header
      _
    $region3: #{qa_embedkgqa_forward.1} parent=1 // loop_header
      %s20 = sphi 0, %s24
      %p21 = scmp.ge.s32.totalorder %s20, 4
      %s30 = sphi 0, %s32
      %s33 = sphi 0, %s30
      %s34 = sphi 0, %s33
      %s50 = sphi 0, %s34
      %s54 = sphi 0, %s54
      %s56 = sphi 0, %s54
      %s57 = sphi 0, %s56
      %s71 = sphi 0, %s57
      %s75 = sphi 0, %s75
      %s77 = sphi 0, %s75
      %s78 = sphi 0, %s77
      %s92 = sphi 0, %s78
      %s96 = sphi 0, %s96
      %s98 = sphi 0, %s96
      %s99 = sphi 0, %s98
      %s113 = sphi 0, %s99
      %s119 = sphi 0, %s121
      %s122 = sphi 0, %s119
      %s123 = sphi 0, %s122
      %s139 = sphi 0, %s123
    $region4: #{qa_embedkgqa_forward.1} parent=1 // loop_header_branch
      %23 = sbr.rel (%p21) target = $region8
    $region5: #{qa_embedkgqa_forward.1} parent=1 // loop_body
      %s25 = ssub.s32 %s20, 1
      %s26 = ssub.s32 %s20, 2
      %s27 = sadd.s32 %s20, 1
      %s28 = ssub.s32 %s20, %s27
      %p29 = scmp.eq.s32.totalorder %s28, 0
      %s31 = sadd.s32 %s30, 1
      %s32 = scalar_select %p29, %s30, %s31
      %p35 = pneg %p29
      %p36 = scmp.eq.s32.totalorder %s20, 1
      %p37 = por %p35, %p36
      %p38 = scmp.ne.s32.totalorder %s30, %s33
      %p39 = scmp.eq.s32.totalorder %s20, 0
      %p40 = por %p38, %p39
      %p41 = scmp.ne.s32.totalorder %s30, %s33
      %p42 = scmp.eq.s32.totalorder %s25, 1
      %p43 = por %p41, %p42
      %p44 = scmp.ne.s32.totalorder %s33, %s34
      %p45 = scmp.eq.s32.totalorder %s25, 0
      %p46 = por %p44, %p45
      %p47 = scmp.ne.s32.totalorder %s33, %s34
      %p48 = scmp.eq.s32.totalorder %s26, 1
      %p49 = por %p47, %p48
      %p51 = scmp.ne.s32.totalorder %s34, %s50
      %p52 = scmp.eq.s32.totalorder %s26, 0
      %p53 = por %p51, %p52
      %s55 = sadd.s32 %s54, 1
      %p58 = scmp.eq.s32.totalorder %s20, 1
      %p59 = scmp.ne.s32.totalorder %s54, %s56
      %p60 = scmp.eq.s32.totalorder %s20, 0
      %p61 = por %p59, %p60
      %p62 = scmp.ne.s32.totalorder %s54, %s56
      %p63 = scmp.eq.s32.totalorder %s25, 1
      %p64 = por %p62, %p63
      %p65 = scmp.ne.s32.totalorder %s56, %s57
      %p66 = scmp.eq.s32.totalorder %s25, 0
      %p67 = por %p65, %p66
      %p68 = scmp.ne.s32.totalorder %s56, %s57
      %p69 = scmp.eq.s32.totalorder %s26, 1
      %p70 = por %p68, %p69
      %p72 = scmp.ne.s32.totalorder %s57, %s71
      %p73 = scmp.eq.s32.totalorder %s26, 0
      %p74 = por %p72, %p73
      %s76 = sadd.s32 %s75, 1
      %p79 = scmp.eq.s32.totalorder %s20, 1
      %p80 = scmp.ne.s32.totalorder %s75, %s77
      %p81 = scmp.eq.s32.totalorder %s20, 0
      %p82 = por %p80, %p81
      %p83 = scmp.ne.s32.totalorder %s75, %s77
      %p84 = scmp.eq.s32.totalorder %s25, 1
      %p85 = por %p83, %p84
      %p86 = scmp.ne.s32.totalorder %s77, %s78
      %p87 = scmp.eq.s32.totalorder %s25, 0
      %p88 = por %p86, %p87
      %p89 = scmp.ne.s32.totalorder %s77, %s78
      %p90 = scmp.eq.s32.totalorder %s26, 1
      %p91 = por %p89, %p90
      %p93 = scmp.ne.s32.totalorder %s78, %s92
      %p94 = scmp.eq.s32.totalorder %s26, 0
      %p95 = por %p93, %p94
      %s97 = sadd.s32 %s96, 1
      %p100 = scmp.eq.s32.totalorder %s20, 1
      %p101 = scmp.ne.s32.totalorder %s96, %s98
      %p102 = scmp.eq.s32.totalorder %s20, 0
      %p103 = por %p101, %p102
      %p104 = scmp.ne.s32.totalorder %s96, %s98
      %p105 = scmp.eq.s32.totalorder %s25, 1
      %p106 = por %p104, %p105
      %p107 = scmp.ne.s32.totalorder %s98, %s99
      %p108 = scmp.eq.s32.totalorder %s25, 0
      %p109 = por %p107, %p108
      %p110 = scmp.ne.s32.totalorder %s98, %s99
      %p111 = scmp.eq.s32.totalorder %s26, 1
      %p112 = por %p110, %p111
      %p114 = scmp.ne.s32.totalorder %s99, %s113
      %p115 = scmp.eq.s32.totalorder %s26, 0
      %p116 = por %p114, %p115
      %s117 = ssub.s32 %s20, %s27
      %p118 = scmp.eq.s32.totalorder %s117, 0
      %s120 = sadd.s32 %s119, 1
      %s121 = scalar_select %p118, %s119, %s120
      %p124 = pneg %p118
      %p125 = scmp.eq.s32.totalorder %s20, 1
      %p126 = por %p124, %p125
      %p127 = scmp.ne.s32.totalorder %s119, %s122
      %p128 = scmp.eq.s32.totalorder %s20, 0
      %p129 = por %p127, %p128
      %p130 = scmp.ne.s32.totalorder %s119, %s122
      %p131 = scmp.eq.s32.totalorder %s25, 1
      %p132 = por %p130, %p131
      %p133 = scmp.ne.s32.totalorder %s122, %s123
      %p134 = scmp.eq.s32.totalorder %s25, 0
      %p135 = por %p133, %p134
      %p136 = scmp.ne.s32.totalorder %s122, %s123
      %p137 = scmp.eq.s32.totalorder %s26, 1
      %p138 = por %p136, %p137
      %p140 = scmp.ne.s32.totalorder %s123, %s139
      %p141 = scmp.eq.s32.totalorder %s26, 0
      %p142 = por %p140, %p141
      %p143 = scmp.le.s32.totalorder 1, %s20
      %p144 = scmp.lt.s32.totalorder %s20, 3
      %p145 = pnand %p143, %p144
      %p146 = pneg %p145
      // Predicated region
      $region9: #{qa_embedkgqa_forward.1} parent=5 // pred_check
        _
      $region10: #{qa_embedkgqa_forward.1} parent=5 // pred_check_branch
        %148 = sbr.rel (%p145) target = $region12
      $region11: #{qa_embedkgqa_forward.1} parent=5 // pred_region
        %s149 = ssub.s32 %s20, 1
        // Predicated region
        $region13: #{qa_embedkgqa_forward.1} parent=11 // pred_check
          %p150 = pneg %p67
        $region14: #{qa_embedkgqa_forward.1} parent=11 // pred_check_branch
          %152 = sbr.rel (%p150) target = $region16
        $region15: #{qa_embedkgqa_forward.1} parent=11 // pred_region
          _
        $region16: #{qa_embedkgqa_forward.1} parent=11 // pred_fallthru
          _
        // Predicated region
        $region17: #{qa_embedkgqa_forward.1} parent=11 // pred_check
          %p153 = pneg %p88
        $region18: #{qa_embedkgqa_forward.1} parent=11 // pred_check_branch
          %155 = sbr.rel (%p153) target = $region20
        $region19: #{qa_embedkgqa_forward.1} parent=11 // pred_region
          _
        $region20: #{qa_embedkgqa_forward.1} parent=11 // pred_fallthru
          _
        // Predicated region
        $region21: #{qa_embedkgqa_forward.1} parent=11 // pred_check
          %p156 = pneg %p109
        $region22: #{qa_embedkgqa_forward.1} parent=11 // pred_check_branch
          %158 = sbr.rel (%p156) target = $region24
        $region23: #{qa_embedkgqa_forward.1} parent=11 // pred_region
          _
        $region24: #{qa_embedkgqa_forward.1} parent=11 // pred_fallthru
          _
      $region12: #{qa_embedkgqa_forward.1} parent=5 // pred_fallthru
        _
      %p159 = scmp.lt.s32.totalorder %s20, 2
      // Predicated region
      $region25: #{qa_embedkgqa_forward.1} parent=5 // pred_check
        %p160 = pneg %p159
      $region26: #{qa_embedkgqa_forward.1} parent=5 // pred_check_branch
        %162 = sbr.rel (%p160) target = $region28
      $region27: #{qa_embedkgqa_forward.1} parent=5 // pred_region
        // Predicated region
        $region29: #{qa_embedkgqa_forward.1} parent=27 // pred_check
          %p163 = pneg %p40
        $region30: #{qa_embedkgqa_forward.1} parent=27 // pred_check_branch
          %165 = sbr.rel (%p163) target = $region32
        $region31: #{qa_embedkgqa_forward.1} parent=27 // pred_region
          %s166 = smul.u32 8, %s20
          %p167 = scmp.lt.s32.totalorder %s166, 15
          %s168 = scalar_select %p167, %s166, 15
          %s169 = smul.addr %s168, 2
          %s170 = smul.addr %s169, 8
          %s171 = scalar_lea.vmem %s1, %s170
          %s172 = smul.u32 8, %s20
        $region32: #{qa_embedkgqa_forward.1} parent=27 // pred_fallthru
          _
      $region28: #{qa_embedkgqa_forward.1} parent=5 // pred_fallthru
        _
      %p173 = scmp.le.s32.totalorder 1, %s20
      %p174 = scmp.lt.s32.totalorder %s20, 3
      %p175 = pnand %p173, %p174
      %p176 = pneg %p175
      // Predicated region
      $region33: #{qa_embedkgqa_forward.1} parent=5 // pred_check
        _
      $region34: #{qa_embedkgqa_forward.1} parent=5 // pred_check_branch
        %178 = sbr.rel (%p175) target = $region36
      $region35: #{qa_embedkgqa_forward.1} parent=5 // pred_region
        %s179 = ssub.s32 %s20, 1
        %s180 = smul.u32 8, %s25
        %p181 = scmp.lt.s32.totalorder %s180, 15
        %s182 = scalar_select %p181, %s180, 15
        %s183 = smul.addr %s182, 2
        %s184 = smul.addr %s183, 8
        %s185 = scalar_lea.vmem %s1, %s184
        %p186 = pneg %p46
        %p187 = pneg %p43
        %p188 = pneg %p67
        %p189 = pneg %p64
        %p190 = pneg %p88
        %p191 = pneg %p85
        %p192 = pneg %p109
        %p193 = pneg %p106
        %p194 = pneg %p135
        %p195 = pneg %p132
        %s196 = sand.u32 %s122, 1
        %s197 = scalar_lea.sflag [#allocation6], %s196
        %s198 = sand.u32 %s122, 1
        %s199 = smul.addr %s198, 192
        %s200 = scalar_lea.vmem [#allocation5], %s199
        %s201 = smul.u32 8, %s25
        %p202 = scmp.lt.s32.totalorder %s201, 15
        %s203 = scalar_select %p202, %s201, 15
        %s204 = smul.addr %s203, 2
        %s205 = smul.addr %s204, 8
        %s206 = scalar_lea.vmem %s1, %s205
        %s207 = smul.u32 8, %s25
        %s208 = smul.u32 8, %s25
        %v209 = vld [vmem:[%s206] sm:$0xff]
        %v210 = vld [vmem:[%s206 + $0x8] sm:$0xff]
        %v211 = vld [vmem:[%s206 + $0x10] sm:$0xff]
        %v212 = vld [vmem:[%s206 + $0x18] sm:$0xff]
        %v213 = vld [vmem:[%s206 + $0x20] sm:$0xff]
        %v214 = vld [vmem:[%s206 + $0x28] sm:$0xff]
        %v215 = vld [vmem:[%s206 + $0x30] sm:$0xff]
        %v216 = vld [vmem:[%s206 + $0x38] sm:$0xff]
        %v217 = vld [vmem:[%s206 + $0x40] sm:$0xff]
        %v218 = vld [vmem:[%s206 + $0x48] sm:$0xff]
        %v219 = vld [vmem:[%s206 + $0x50] sm:$0xff]
        %v220 = vld [vmem:[%s206 + $0x58] sm:$0xff]
        %v221 = vld [vmem:[%s206 + $0x60] sm:$0xff]
        %v222 = vld [vmem:[%s206 + $0x68] sm:$0xff]
        %v223 = vld [vmem:[%s206 + $0x70] sm:$0xff]
        %v224 = vld [vmem:[%s206 + $0x78] sm:$0xff]
        %v225 = vpack.c.bf16 %v211, %v209
        %v226 = vpack.c.bf16 %v212, %v210
        %v227 = vpack.c.bf16 %v215, %v213
        %v228 = vpack.c.bf16 %v216, %v214
        %v229 = vpack.c.bf16 %v219, %v217
        %v230 = vpack.c.bf16 %v220, %v218
        %v231 = vpack.c.bf16 %v223, %v221
        %v232 = vpack.c.bf16 %v224, %v222
        %v233 = vld [vmem:[%s2] sm:$0xff]
        %v234 = vld [vmem:[%s2 + $0x8] sm:$0xff]
        %v235 = vld [vmem:[%s2 + $0x10] sm:$0xff]
        %v236 = vld [vmem:[%s2 + $0x18] sm:$0xff]
        %v237 = vld [vmem:[%s2 + $0x20] sm:$0xff]
        %v238 = vld [vmem:[%s2 + $0x28] sm:$0xff]
        %v239 = vld [vmem:[%s2 + $0x30] sm:$0xff]
        %v240 = vld [vmem:[%s2 + $0x38] sm:$0xff]
        %v241 = vld [vmem:[%s2 + $0x40] sm:$0xff]
        %v242 = vld [vmem:[%s2 + $0x48] sm:$0xff]
        %v243 = vld [vmem:[%s2 + $0x50] sm:$0xff]
        %v244 = vld [vmem:[%s2 + $0x58] sm:$0xff]
        %v245 = vld [vmem:[%s2 + $0x60] sm:$0xff]
        %v246 = vld [vmem:[%s2 + $0x68] sm:$0xff]
        %v247 = vld [vmem:[%s2 + $0x70] sm:$0xff]
        %v248 = vld [vmem:[%s2 + $0x78] sm:$0xff]
        %v249 = vld [vmem:[%s2 + $0x80] sm:$0xff]
        %v250 = vld [vmem:[%s2 + $0x88] sm:$0xff]
        %v251 = vld [vmem:[%s2 + $0x90] sm:$0xff]
        %v252 = vld [vmem:[%s2 + $0x98] sm:$0xff]
        %v253 = vld [vmem:[%s2 + $0xa0] sm:$0xff]
        %v254 = vld [vmem:[%s2 + $0xa8] sm:$0xff]
        %v255 = vld [vmem:[%s2 + $0xb0] sm:$0xff]
        %v256 = vld [vmem:[%s2 + $0xb8] sm:$0xff]
        %v257 = vld [vmem:[%s2 + $0xc0] sm:$0xff]
        %v258 = vld [vmem:[%s2 + $0xc8] sm:$0xff]
        %v259 = vld [vmem:[%s2 + $0xd0] sm:$0xff]
        %v260 = vld [vmem:[%s2 + $0xd8] sm:$0xff]
        %v261 = vld [vmem:[%s2 + $0xe0] sm:$0xff]
        %v262 = vld [vmem:[%s2 + $0xe8] sm:$0xff]
        %v263 = vld [vmem:[%s2 + $0xf0] sm:$0xff]
        %v264 = vld [vmem:[%s2 + $0xf8] sm:$0xff]
        %v265 = vld [vmem:[%s3] sm:$0x3]
        %v267 = vlaneseq
        %v268 = vshrl.u32 %v267, 7
        %v269 = vsub.s32 0, %v268
        %v270 = vrot.slane %v265, %v269
        %v271 = vlaneseq
        %v272 = vshrl.u32 %v271, 7
        %v273 = vsub.s32 1, %v272
        %v274 = vrot.slane %v265, %v273
        %v309 = vunpack.c.l.b16 %v233
        %v310 = vunpack.c.h.b16 %v233
        %v311 = vunpack.c.l.b16 %v234
        %v312 = vunpack.c.h.b16 %v234
        %v313 = vunpack.c.l.b16 %v235
        %v314 = vunpack.c.h.b16 %v235
        %v315 = vunpack.c.l.b16 %v236
        %v316 = vunpack.c.h.b16 %v236
        %v317 = vunpack.c.l.b16 %v237
        %v318 = vunpack.c.h.b16 %v237
        %v319 = vunpack.c.l.b16 %v238
        %v320 = vunpack.c.h.b16 %v238
        %v321 = vunpack.c.l.b16 %v239
        %v322 = vunpack.c.h.b16 %v239
        %v323 = vunpack.c.l.b16 %v240
        %v324 = vunpack.c.h.b16 %v240
        %v325 = vunpack.c.l.b16 %v241
        %v326 = vunpack.c.h.b16 %v241
        %v327 = vunpack.c.l.b16 %v242
        %v328 = vunpack.c.h.b16 %v242
        %v329 = vunpack.c.l.b16 %v243
        %v330 = vunpack.c.h.b16 %v243
        %v331 = vunpack.c.l.b16 %v244
        %v332 = vunpack.c.h.b16 %v244
        %v333 = vunpack.c.l.b16 %v245
        %v334 = vunpack.c.h.b16 %v245
        %v335 = vunpack.c.l.b16 %v246
        %v336 = vunpack.c.h.b16 %v246
        %v337 = vunpack.c.l.b16 %v247
        %v338 = vunpack.c.h.b16 %v247
        %v339 = vunpack.c.l.b16 %v248
        %v340 = vunpack.c.h.b16 %v248
        %v341 = vunpack.c.l.b16 %v249
        %v342 = vunpack.c.h.b16 %v249
        %v343 = vunpack.c.l.b16 %v250
        %v344 = vunpack.c.h.b16 %v250
        %v345 = vunpack.c.l.b16 %v251
        %v346 = vunpack.c.h.b16 %v251
        %v347 = vunpack.c.l.b16 %v252
        %v348 = vunpack.c.h.b16 %v252
        %v349 = vunpack.c.l.b16 %v253
        %v350 = vunpack.c.h.b16 %v253
        %v351 = vunpack.c.l.b16 %v254
        %v352 = vunpack.c.h.b16 %v254
        %v353 = vunpack.c.l.b16 %v255
        %v354 = vunpack.c.h.b16 %v255
        %v355 = vunpack.c.l.b16 %v256
        %v356 = vunpack.c.h.b16 %v256
        %v357 = vunpack.c.l.b16 %v257
        %v358 = vunpack.c.h.b16 %v257
        %v359 = vunpack.c.l.b16 %v258
        %v360 = vunpack.c.h.b16 %v258
        %v361 = vunpack.c.l.b16 %v259
        %v362 = vunpack.c.h.b16 %v259
        %v363 = vunpack.c.l.b16 %v260
        %v364 = vunpack.c.h.b16 %v260
        %v365 = vunpack.c.l.b16 %v261
        %v366 = vunpack.c.h.b16 %v261
        %v367 = vunpack.c.l.b16 %v262
        %v368 = vunpack.c.h.b16 %v262
        %v369 = vunpack.c.l.b16 %v263
        %v370 = vunpack.c.h.b16 %v263
        %v371 = vunpack.c.l.b16 %v264
        %v372 = vunpack.c.h.b16 %v264
        %v373 = vpack.c.b16 %v311, %v309
        %v374 = vpack.c.b16 %v312, %v310
        %v375 = vpack.c.b16 %v315, %v313
        %v376 = vpack.c.b16 %v316, %v314
        %v377 = vpack.c.b16 %v319, %v317
        %v378 = vpack.c.b16 %v320, %v318
        %v379 = vpack.c.b16 %v323, %v321
        %v380 = vpack.c.b16 %v324, %v322
        %v381 = vpack.c.b16 %v327, %v325
        %v382 = vpack.c.b16 %v328, %v326
        %v383 = vpack.c.b16 %v331, %v329
        %v384 = vpack.c.b16 %v332, %v330
        %v385 = vpack.c.b16 %v335, %v333
        %v386 = vpack.c.b16 %v336, %v334
        %v387 = vpack.c.b16 %v339, %v337
        %v388 = vpack.c.b16 %v340, %v338
        %v389 = vpack.c.b16 %v343, %v341
        %v390 = vpack.c.b16 %v344, %v342
        %v391 = vpack.c.b16 %v347, %v345
        %v392 = vpack.c.b16 %v348, %v346
        %v393 = vpack.c.b16 %v351, %v349
        %v394 = vpack.c.b16 %v352, %v350
        %v395 = vpack.c.b16 %v355, %v353
        %v396 = vpack.c.b16 %v356, %v354
        %v397 = vpack.c.b16 %v359, %v357
        %v398 = vpack.c.b16 %v360, %v358
        %v399 = vpack.c.b16 %v363, %v361
        %v400 = vpack.c.b16 %v364, %v362
        %v401 = vpack.c.b16 %v367, %v365
        %v402 = vpack.c.b16 %v368, %v366
        %v403 = vpack.c.b16 %v371, %v369
        %v404 = vpack.c.b16 %v372, %v370
        %437 = vmatprep.subr.bf16.mxu0 %v374
        %438 = vmatpush1.bf16.msra.mxu0 %v373
        %439 = vmatprep.subr.bf16.mxu0 %v376
        %440 = vmatpush1.bf16.msra.mxu0 %v375
        %441 = vmatprep.subr.bf16.mxu0 %v378
        %442 = vmatpush1.bf16.msra.mxu0 %v377
        %443 = vmatprep.subr.bf16.mxu0 %v380
        %444 = vmatpush1.bf16.msra.mxu0 %v379
        %445 = vmatprep.subr.bf16.mxu0 %v382
        %446 = vmatpush1.bf16.msra.mxu0 %v381
        %447 = vmatprep.subr.bf16.mxu0 %v384
        %448 = vmatpush1.bf16.msra.mxu0 %v383
        %449 = vmatprep.subr.bf16.mxu0 %v386
        %450 = vmatpush1.bf16.msra.mxu0 %v385
        %451 = vmatprep.subr.bf16.mxu0 %v388
        %452 = vmatpush1.bf16.msra.mxu0 %v387
        %453 = vmatprep.subr.bf16.mxu0 %v390
        %454 = vmatpush1.bf16.msra.mxu0 %v389
        %455 = vmatprep.subr.bf16.mxu0 %v392
        %456 = vmatpush1.bf16.msra.mxu0 %v391
        %457 = vmatprep.subr.bf16.mxu0 %v394
        %458 = vmatpush1.bf16.msra.mxu0 %v393
        %459 = vmatprep.subr.bf16.mxu0 %v396
        %460 = vmatpush1.bf16.msra.mxu0 %v395
        %461 = vmatprep.subr.bf16.mxu0 %v398
        %462 = vmatpush1.bf16.msra.mxu0 %v397
        %463 = vmatprep.subr.bf16.mxu0 %v400
        %464 = vmatpush1.bf16.msra.mxu0 %v399
        %465 = vmatprep.subr.bf16.mxu0 %v402
        %466 = vmatpush1.bf16.msra.mxu0 %v401
        %467 = vmatprep.subr.bf16.mxu0 %v404
        %468 = vmatpush1.bf16.msra.mxu0 %v403
        %469 = vmatprep.mubr.bf16.mxu0 %v226
        %470 = vmatmul.mubr.bf16.gmra.mrb[0].mxu0 %v225
        %v471 = vpop.f32.mrb[0].mxu0
        %v472 = vadd.f32 %v270, %v471
        %v473 = vpop.f32.mrb[0].mxu0
        %v474 = vadd.f32 %v274, %v473
        %v475 = vpop.f32.mrb[0].mxu0
        %v476 = vadd.f32 %v270, %v475
        %v477 = vpop.f32.mrb[0].mxu0
        %v478 = vadd.f32 %v274, %v477
        %479 = vmatprep.mubr.bf16.mxu0 %v228
        %480 = vmatmul.mubr.bf16.gmra.mrb[0].mxu0 %v227
        %v481 = vpop.f32.mrb[0].mxu0
        %v482 = vadd.f32 %v270, %v481
        %v483 = vpop.f32.mrb[0].mxu0
        %v484 = vadd.f32 %v274, %v483
        %v485 = vpop.f32.mrb[0].mxu0
        %v486 = vadd.f32 %v270, %v485
        %v487 = vpop.f32.mrb[0].mxu0
        %v488 = vadd.f32 %v274, %v487
        %489 = vmatprep.mubr.bf16.mxu0 %v230
        %490 = vmatmul.mubr.bf16.gmra.mrb[0].mxu0 %v229
        %v491 = vpop.f32.mrb[0].mxu0
        %v492 = vadd.f32 %v270, %v491
        %v493 = vpop.f32.mrb[0].mxu0
        %v494 = vadd.f32 %v274, %v493
        %v495 = vpop.f32.mrb[0].mxu0
        %v496 = vadd.f32 %v270, %v495
        %v497 = vpop.f32.mrb[0].mxu0
        %v498 = vadd.f32 %v274, %v497
        %499 = vmatprep.mubr.bf16.mxu0 %v232
        %500 = vmatmul.mubr.bf16.gmra.mrb[0].mxu0 %v231
        %v501 = vpop.f32.mrb[0].mxu0
        %v502 = vadd.f32 %v270, %v501
        %v503 = vpop.f32.mrb[0].mxu0
        %v504 = vadd.f32 %v274, %v503
        %v505 = vpop.f32.mrb[0].mxu0
        %v506 = vadd.f32 %v270, %v505
        %v507 = vpop.f32.mrb[0].mxu0
        %v508 = vadd.f32 %v274, %v507
        %509 = vdwg.mxu0
        %s510 = smul.u32 %s25, 64
        %s511 = sld [smem:[#allocation4 + %s510]]
        %s512 = sshra.s32 %s511, 3
        %s513 = sand.u32 %s511, 7
        %s514 = sshra.s32 %s511, 3
        %s515 = sand.u32 %s511, 7
        %s516 = smul.u32 %s512, 2
        %s517 = smul.u32 %s516, 8
        %s518 = sadd.s32 %s517, %s515
        %s519 = scalar_lea.vmem %s4, %s518
        %v520 = vld [vmem:[%s519] ss:$8 sm:$0x3]
        %v521 = vlaneseq
        %vm522 = vcmp.ge.s32.totalorder %v521, 0
        %vm523 = vcmp.lt.s32.totalorder %v521, 256
        %vm524 = vmand %vm522, %vm523
        %525 = vst.msk [vmem:[#allocation2] ss:$8 sm:$0x3] %vm524, %v520
        %526 = vst.msk [vmem:[#allocation2] ss:$8 sm:$0x0] %vm524, %v520
        %s527 = sadd.s32 %s510, 1
        %s528 = sld [smem:[#allocation4 + %s527]]
        %s529 = sshra.s32 %s528, 3
        %s530 = sand.u32 %s528, 7
        %s531 = sshra.s32 %s528, 3
        %s532 = sand.u32 %s528, 7
        %s533 = smul.u32 %s529, 2
        %s534 = smul.u32 %s533, 8
        %s535 = sadd.s32 %s534, %s532
        %s536 = scalar_lea.vmem %s4, %s535
        %v537 = vld [vmem:[%s536] ss:$8 sm:$0x3]
        %s538 = scalar_lea.vmem [#allocation2], 1
        %539 = vst.msk [vmem:[%s538] ss:$8 sm:$0x3] %vm524, %v537
        %540 = vst.msk [vmem:[%s538] ss:$8 sm:$0x0] %vm524, %v537
        %s541 = sadd.s32 %s510, 2
        %s542 = sld [smem:[#allocation4 + %s541]]
        %s543 = sshra.s32 %s542, 3
        %s544 = sand.u32 %s542, 7
        %s545 = sshra.s32 %s542, 3
        %s546 = sand.u32 %s542, 7
        %s547 = smul.u32 %s543, 2
        %s548 = smul.u32 %s547, 8
        %s549 = sadd.s32 %s548, %s546
        %s550 = scalar_lea.vmem %s4, %s549
        %v551 = vld [vmem:[%s550] ss:$8 sm:$0x3]
        %s552 = scalar_lea.vmem [#allocation2], 2
        %553 = vst.msk [vmem:[%s552] ss:$8 sm:$0x3] %vm524, %v551
        %554 = vst.msk [vmem:[%s552] ss:$8 sm:$0x0] %vm524, %v551
        %s555 = sadd.s32 %s510, 3
        %s556 = sld [smem:[#allocation4 + %s555]]
        %s557 = sshra.s32 %s556, 3
        %s558 = sand.u32 %s556, 7
        %s559 = sshra.s32 %s556, 3
        %s560 = sand.u32 %s556, 7
        %s561 = smul.u32 %s557, 2
        %s562 = smul.u32 %s561, 8
        %s563 = sadd.s32 %s562, %s560
        %s564 = scalar_lea.vmem %s4, %s563
        %v565 = vld [vmem:[%s564] ss:$8 sm:$0x3]
        %s566 = scalar_lea.vmem [#allocation2], 3
        %567 = vst.msk [vmem:[%s566] ss:$8 sm:$0x3] %vm524, %v565
        %568 = vst.msk [vmem:[%s566] ss:$8 sm:$0x0] %vm524, %v565
        %s569 = sadd.s32 %s510, 4
        %s570 = sld [smem:[#allocation4 + %s569]]
        %s571 = sshra.s32 %s570, 3
        %s572 = sand.u32 %s570, 7
        %s573 = sshra.s32 %s570, 3
        %s574 = sand.u32 %s570, 7
        %s575 = smul.u32 %s571, 2
        %s576 = smul.u32 %s575, 8
        %s577 = sadd.s32 %s576, %s574
        %s578 = scalar_lea.vmem %s4, %s577
        %v579 = vld [vmem:[%s578] ss:$8 sm:$0x3]
        %s580 = scalar_lea.vmem [#allocation2], 4
        %581 = vst.msk [vmem:[%s580] ss:$8 sm:$0x3] %vm524, %v579
        %582 = vst.msk [vmem:[%s580] ss:$8 sm:$0x0] %vm524, %v579
        %s583 = sadd.s32 %s510, 5
        %s584 = sld [smem:[#allocation4 + %s583]]
        %s585 = sshra.s32 %s584, 3
        %s586 = sand.u32 %s584, 7
        %s587 = sshra.s32 %s584, 3
        %s588 = sand.u32 %s584, 7
        %s589 = smul.u32 %s585, 2
        %s590 = smul.u32 %s589, 8
        %s591 = sadd.s32 %s590, %s588
        %s592 = scalar_lea.vmem %s4, %s591
        %v593 = vld [vmem:[%s592] ss:$8 sm:$0x3]
        %s594 = scalar_lea.vmem [#allocation2], 5
        %595 = vst.msk [vmem:[%s594] ss:$8 sm:$0x3] %vm524, %v593
        %596 = vst.msk [vmem:[%s594] ss:$8 sm:$0x0] %vm524, %v593
        %s597 = sadd.s32 %s510, 6
        %s598 = sld [smem:[#allocation4 + %s597]]
        %s599 = sshra.s32 %s598, 3
        %s600 = sand.u32 %s598, 7
        %s601 = sshra.s32 %s598, 3
        %s602 = sand.u32 %s598, 7
        %s603 = smul.u32 %s599, 2
        %s604 = smul.u32 %s603, 8
        %s605 = sadd.s32 %s604, %s602
        %s606 = scalar_lea.vmem %s4, %s605
        %v607 = vld [vmem:[%s606] ss:$8 sm:$0x3]
        %s608 = scalar_lea.vmem [#allocation2], 6
        %609 = vst.msk [vmem:[%s608] ss:$8 sm:$0x3] %vm524, %v607
        %610 = vst.msk [vmem:[%s608] ss:$8 sm:$0x0] %vm524, %v607
        %s611 = sadd.s32 %s510, 7
        %s612 = sld [smem:[#allocation4 + %s611]]
        %s613 = sshra.s32 %s612, 3
        %s614 = sand.u32 %s612, 7
        %s615 = sshra.s32 %s612, 3
        %s616 = sand.u32 %s612, 7
        %s617 = smul.u32 %s613, 2
        %s618 = smul.u32 %s617, 8
        %s619 = sadd.s32 %s618, %s616
        %s620 = scalar_lea.vmem %s4, %s619
        %v621 = vld [vmem:[%s620] ss:$8 sm:$0x3]
        %s622 = scalar_lea.vmem [#allocation2], 7
        %623 = vst.msk [vmem:[%s622] ss:$8 sm:$0x3] %vm524, %v621
        %624 = vst.msk [vmem:[%s622] ss:$8 sm:$0x0] %vm524, %v621
        %s625 = sadd.s32 %s510, 8
        %s626 = sld [smem:[#allocation4 + %s625]]
        %s627 = sshra.s32 %s626, 3
        %s628 = sand.u32 %s626, 7
        %s629 = sshra.s32 %s626, 3
        %s630 = sand.u32 %s626, 7
        %s631 = smul.u32 %s627, 2
        %s632 = smul.u32 %s631, 8
        %s633 = sadd.s32 %s632, %s630
        %s634 = scalar_lea.vmem %s4, %s633
        %v635 = vld [vmem:[%s634] ss:$8 sm:$0x3]
        %s636 = scalar_lea.vmem [#allocation2], 16
        %637 = vst.msk [vmem:[%s636] ss:$8 sm:$0x3] %vm524, %v635
        %638 = vst.msk [vmem:[%s636] ss:$8 sm:$0x0] %vm524, %v635
        %s639 = sadd.s32 %s510, 9
        %s640 = sld [smem:[#allocation4 + %s639]]
        %s641 = sshra.s32 %s640, 3
        %s642 = sand.u32 %s640, 7
        %s643 = sshra.s32 %s640, 3
        %s644 = sand.u32 %s640, 7
        %s645 = smul.u32 %s641, 2
        %s646 = smul.u32 %s645, 8
        %s647 = sadd.s32 %s646, %s644
        %s648 = scalar_lea.vmem %s4, %s647
        %v649 = vld [vmem:[%s648] ss:$8 sm:$0x3]
        %s650 = scalar_lea.vmem [#allocation2], 17
        %651 = vst.msk [vmem:[%s650] ss:$8 sm:$0x3] %vm524, %v649
        %652 = vst.msk [vmem:[%s650] ss:$8 sm:$0x0] %vm524, %v649
        %s653 = sadd.s32 %s510, 10
        %s654 = sld [smem:[#allocation4 + %s653]]
        %s655 = sshra.s32 %s654, 3
        %s656 = sand.u32 %s654, 7
        %s657 = sshra.s32 %s654, 3
        %s658 = sand.u32 %s654, 7
        %s659 = smul.u32 %s655, 2
        %s660 = smul.u32 %s659, 8
        %s661 = sadd.s32 %s660, %s658
        %s662 = scalar_lea.vmem %s4, %s661
        %v663 = vld [vmem:[%s662] ss:$8 sm:$0x3]
        %s664 = scalar_lea.vmem [#allocation2], 18
        %665 = vst.msk [vmem:[%s664] ss:$8 sm:$0x3] %vm524, %v663
        %666 = vst.msk [vmem:[%s664] ss:$8 sm:$0x0] %vm524, %v663
        %s667 = sadd.s32 %s510, 11
        %s668 = sld [smem:[#allocation4 + %s667]]
        %s669 = sshra.s32 %s668, 3
        %s670 = sand.u32 %s668, 7
        %s671 = sshra.s32 %s668, 3
        %s672 = sand.u32 %s668, 7
        %s673 = smul.u32 %s669, 2
        %s674 = smul.u32 %s673, 8
        %s675 = sadd.s32 %s674, %s672
        %s676 = scalar_lea.vmem %s4, %s675
        %v677 = vld [vmem:[%s676] ss:$8 sm:$0x3]
        %s678 = scalar_lea.vmem [#allocation2], 19
        %679 = vst.msk [vmem:[%s678] ss:$8 sm:$0x3] %vm524, %v677
        %680 = vst.msk [vmem:[%s678] ss:$8 sm:$0x0] %vm524, %v677
        %s681 = sadd.s32 %s510, 12
        %s682 = sld [smem:[#allocation4 + %s681]]
        %s683 = sshra.s32 %s682, 3
        %s684 = sand.u32 %s682, 7
        %s685 = sshra.s32 %s682, 3
        %s686 = sand.u32 %s682, 7
        %s687 = smul.u32 %s683, 2
        %s688 = smul.u32 %s687, 8
        %s689 = sadd.s32 %s688, %s686
        %s690 = scalar_lea.vmem %s4, %s689
        %v691 = vld [vmem:[%s690] ss:$8 sm:$0x3]
        %s692 = scalar_lea.vmem [#allocation2], 20
        %693 = vst.msk [vmem:[%s692] ss:$8 sm:$0x3] %vm524, %v691
        %694 = vst.msk [vmem:[%s692] ss:$8 sm:$0x0] %vm524, %v691
        %s695 = sadd.s32 %s510, 13
        %s696 = sld [smem:[#allocation4 + %s695]]
        %s697 = sshra.s32 %s696, 3
        %s698 = sand.u32 %s696, 7
        %s699 = sshra.s32 %s696, 3
        %s700 = sand.u32 %s696, 7
        %s701 = smul.u32 %s697, 2
        %s702 = smul.u32 %s701, 8
        %s703 = sadd.s32 %s702, %s700
        %s704 = scalar_lea.vmem %s4, %s703
        %v705 = vld [vmem:[%s704] ss:$8 sm:$0x3]
        %s706 = scalar_lea.vmem [#allocation2], 21
        %707 = vst.msk [vmem:[%s706] ss:$8 sm:$0x3] %vm524, %v705
        %708 = vst.msk [vmem:[%s706] ss:$8 sm:$0x0] %vm524, %v705
        %s709 = sadd.s32 %s510, 14
        %s710 = sld [smem:[#allocation4 + %s709]]
        %s711 = sshra.s32 %s710, 3
        %s712 = sand.u32 %s710, 7
        %s713 = sshra.s32 %s710, 3
        %s714 = sand.u32 %s710, 7
        %s715 = smul.u32 %s711, 2
        %s716 = smul.u32 %s715, 8
        %s717 = sadd.s32 %s716, %s714
        %s718 = scalar_lea.vmem %s4, %s717
        %v719 = vld [vmem:[%s718] ss:$8 sm:$0x3]
        %s720 = scalar_lea.vmem [#allocation2], 22
        %721 = vst.msk [vmem:[%s720] ss:$8 sm:$0x3] %vm524, %v719
        %722 = vst.msk [vmem:[%s720] ss:$8 sm:$0x0] %vm524, %v719
        %s723 = sadd.s32 %s510, 15
        %s724 = sld [smem:[#allocation4 + %s723]]
        %s725 = sshra.s32 %s724, 3
        %s726 = sand.u32 %s724, 7
        %s727 = sshra.s32 %s724, 3
        %s728 = sand.u32 %s724, 7
        %s729 = smul.u32 %s725, 2
        %s730 = smul.u32 %s729, 8
        %s731 = sadd.s32 %s730, %s728
        %s732 = scalar_lea.vmem %s4, %s731
        %v733 = vld [vmem:[%s732] ss:$8 sm:$0x3]
        %s734 = scalar_lea.vmem [#allocation2], 23
        %735 = vst.msk [vmem:[%s734] ss:$8 sm:$0x3] %vm524, %v733
        %736 = vst.msk [vmem:[%s734] ss:$8 sm:$0x0] %vm524, %v733
        %s737 = sadd.s32 %s510, 16
        %s738 = sld [smem:[#allocation4 + %s737]]
        %s739 = sshra.s32 %s738, 3
        %s740 = sand.u32 %s738, 7
        %s741 = sshra.s32 %s738, 3
        %s742 = sand.u32 %s738, 7
        %s743 = smul.u32 %s739, 2
        %s744 = smul.u32 %s743, 8
        %s745 = sadd.s32 %s744, %s742
        %s746 = scalar_lea.vmem %s4, %s745
        %v747 = vld [vmem:[%s746] ss:$8 sm:$0x3]
        %s748 = scalar_lea.vmem [#allocation2], 32
        %749 = vst.msk [vmem:[%s748] ss:$8 sm:$0x3] %vm524, %v747
        %750 = vst.msk [vmem:[%s748] ss:$8 sm:$0x0] %vm524, %v747
        %s751 = sadd.s32 %s510, 17
        %s752 = sld [smem:[#allocation4 + %s751]]
        %s753 = sshra.s32 %s752, 3
        %s754 = sand.u32 %s752, 7
        %s755 = sshra.s32 %s752, 3
        %s756 = sand.u32 %s752, 7
        %s757 = smul.u32 %s753, 2
        %s758 = smul.u32 %s757, 8
        %s759 = sadd.s32 %s758, %s756
        %s760 = scalar_lea.vmem %s4, %s759
        %v761 = vld [vmem:[%s760] ss:$8 sm:$0x3]
        %s762 = scalar_lea.vmem [#allocation2], 33
        %763 = vst.msk [vmem:[%s762] ss:$8 sm:$0x3] %vm524, %v761
        %764 = vst.msk [vmem:[%s762] ss:$8 sm:$0x0] %vm524, %v761
        %s765 = sadd.s32 %s510, 18
        %s766 = sld [smem:[#allocation4 + %s765]]
        %s767 = sshra.s32 %s766, 3
        %s768 = sand.u32 %s766, 7
        %s769 = sshra.s32 %s766, 3
        %s770 = sand.u32 %s766, 7
        %s771 = smul.u32 %s767, 2
        %s772 = smul.u32 %s771, 8
        %s773 = sadd.s32 %s772, %s770
        %s774 = scalar_lea.vmem %s4, %s773
        %v775 = vld [vmem:[%s774] ss:$8 sm:$0x3]
        %s776 = scalar_lea.vmem [#allocation2], 34
        %777 = vst.msk [vmem:[%s776] ss:$8 sm:$0x3] %vm524, %v775
        %778 = vst.msk [vmem:[%s776] ss:$8 sm:$0x0] %vm524, %v775
        %s779 = sadd.s32 %s510, 19
        %s780 = sld [smem:[#allocation4 + %s779]]
        %s781 = sshra.s32 %s780, 3
        %s782 = sand.u32 %s780, 7
        %s783 = sshra.s32 %s780, 3
        %s784 = sand.u32 %s780, 7
        %s785 = smul.u32 %s781, 2
        %s786 = smul.u32 %s785, 8
        %s787 = sadd.s32 %s786, %s784
        %s788 = scalar_lea.vmem %s4, %s787
        %v789 = vld [vmem:[%s788] ss:$8 sm:$0x3]
        %s790 = scalar_lea.vmem [#allocation2], 35
        %791 = vst.msk [vmem:[%s790] ss:$8 sm:$0x3] %vm524, %v789
        %792 = vst.msk [vmem:[%s790] ss:$8 sm:$0x0] %vm524, %v789
        %s793 = sadd.s32 %s510, 20
        %s794 = sld [smem:[#allocation4 + %s793]]
        %s795 = sshra.s32 %s794, 3
        %s796 = sand.u32 %s794, 7
        %s797 = sshra.s32 %s794, 3
        %s798 = sand.u32 %s794, 7
        %s799 = smul.u32 %s795, 2
        %s800 = smul.u32 %s799, 8
        %s801 = sadd.s32 %s800, %s798
        %s802 = scalar_lea.vmem %s4, %s801
        %v803 = vld [vmem:[%s802] ss:$8 sm:$0x3]
        %s804 = scalar_lea.vmem [#allocation2], 36
        %805 = vst.msk [vmem:[%s804] ss:$8 sm:$0x3] %vm524, %v803
        %806 = vst.msk [vmem:[%s804] ss:$8 sm:$0x0] %vm524, %v803
        %s807 = sadd.s32 %s510, 21
        %s808 = sld [smem:[#allocation4 + %s807]]
        %s809 = sshra.s32 %s808, 3
        %s810 = sand.u32 %s808, 7
        %s811 = sshra.s32 %s808, 3
        %s812 = sand.u32 %s808, 7
        %s813 = smul.u32 %s809, 2
        %s814 = smul.u32 %s813, 8
        %s815 = sadd.s32 %s814, %s812
        %s816 = scalar_lea.vmem %s4, %s815
        %v817 = vld [vmem:[%s816] ss:$8 sm:$0x3]
        %s818 = scalar_lea.vmem [#allocation2], 37
        %819 = vst.msk [vmem:[%s818] ss:$8 sm:$0x3] %vm524, %v817
        %820 = vst.msk [vmem:[%s818] ss:$8 sm:$0x0] %vm524, %v817
        %s821 = sadd.s32 %s510, 22
        %s822 = sld [smem:[#allocation4 + %s821]]
        %s823 = sshra.s32 %s822, 3
        %s824 = sand.u32 %s822, 7
        %s825 = sshra.s32 %s822, 3
        %s826 = sand.u32 %s822, 7
        %s827 = smul.u32 %s823, 2
        %s828 = smul.u32 %s827, 8
        %s829 = sadd.s32 %s828, %s826
        %s830 = scalar_lea.vmem %s4, %s829
        %v831 = vld [vmem:[%s830] ss:$8 sm:$0x3]
        %s832 = scalar_lea.vmem [#allocation2], 38
        %833 = vst.msk [vmem:[%s832] ss:$8 sm:$0x3] %vm524, %v831
        %834 = vst.msk [vmem:[%s832] ss:$8 sm:$0x0] %vm524, %v831
        %s835 = sadd.s32 %s510, 23
        %s836 = sld [smem:[#allocation4 + %s835]]
        %s837 = sshra.s32 %s836, 3
        %s838 = sand.u32 %s836, 7
        %s839 = sshra.s32 %s836, 3
        %s840 = sand.u32 %s836, 7
        %s841 = smul.u32 %s837, 2
        %s842 = smul.u32 %s841, 8
        %s843 = sadd.s32 %s842, %s840
        %s844 = scalar_lea.vmem %s4, %s843
        %v845 = vld [vmem:[%s844] ss:$8 sm:$0x3]
        %s846 = scalar_lea.vmem [#allocation2], 39
        %847 = vst.msk [vmem:[%s846] ss:$8 sm:$0x3] %vm524, %v845
        %848 = vst.msk [vmem:[%s846] ss:$8 sm:$0x0] %vm524, %v845
        %s849 = sadd.s32 %s510, 24
        %s850 = sld [smem:[#allocation4 + %s849]]
        %s851 = sshra.s32 %s850, 3
        %s852 = sand.u32 %s850, 7
        %s853 = sshra.s32 %s850, 3
        %s854 = sand.u32 %s850, 7
        %s855 = smul.u32 %s851, 2
        %s856 = smul.u32 %s855, 8
        %s857 = sadd.s32 %s856, %s854
        %s858 = scalar_lea.vmem %s4, %s857
        %v859 = vld [vmem:[%s858] ss:$8 sm:$0x3]
        %s860 = scalar_lea.vmem [#allocation2], 48
        %861 = vst.msk [vmem:[%s860] ss:$8 sm:$0x3] %vm524, %v859
        %862 = vst.msk [vmem:[%s860] ss:$8 sm:$0x0] %vm524, %v859
        %s863 = sadd.s32 %s510, 25
        %s864 = sld [smem:[#allocation4 + %s863]]
        %s865 = sshra.s32 %s864, 3
        %s866 = sand.u32 %s864, 7
        %s867 = sshra.s32 %s864, 3
        %s868 = sand.u32 %s864, 7
        %s869 = smul.u32 %s865, 2
        %s870 = smul.u32 %s869, 8
        %s871 = sadd.s32 %s870, %s868
        %s872 = scalar_lea.vmem %s4, %s871
        %v873 = vld [vmem:[%s872] ss:$8 sm:$0x3]
        %s874 = scalar_lea.vmem [#allocation2], 49
        %875 = vst.msk [vmem:[%s874] ss:$8 sm:$0x3] %vm524, %v873
        %876 = vst.msk [vmem:[%s874] ss:$8 sm:$0x0] %vm524, %v873
        %s877 = sadd.s32 %s510, 26
        %s878 = sld [smem:[#allocation4 + %s877]]
        %s879 = sshra.s32 %s878, 3
        %s880 = sand.u32 %s878, 7
        %s881 = sshra.s32 %s878, 3
        %s882 = sand.u32 %s878, 7
        %s883 = smul.u32 %s879, 2
        %s884 = smul.u32 %s883, 8
        %s885 = sadd.s32 %s884, %s882
        %s886 = scalar_lea.vmem %s4, %s885
        %v887 = vld [vmem:[%s886] ss:$8 sm:$0x3]
        %s888 = scalar_lea.vmem [#allocation2], 50
        %889 = vst.msk [vmem:[%s888] ss:$8 sm:$0x3] %vm524, %v887
        %890 = vst.msk [vmem:[%s888] ss:$8 sm:$0x0] %vm524, %v887
        %s891 = sadd.s32 %s510, 27
        %s892 = sld [smem:[#allocation4 + %s891]]
        %s893 = sshra.s32 %s892, 3
        %s894 = sand.u32 %s892, 7
        %s895 = sshra.s32 %s892, 3
        %s896 = sand.u32 %s892, 7
        %s897 = smul.u32 %s893, 2
        %s898 = smul.u32 %s897, 8
        %s899 = sadd.s32 %s898, %s896
        %s900 = scalar_lea.vmem %s4, %s899
        %v901 = vld [vmem:[%s900] ss:$8 sm:$0x3]
        %s902 = scalar_lea.vmem [#allocation2], 51
        %903 = vst.msk [vmem:[%s902] ss:$8 sm:$0x3] %vm524, %v901
        %904 = vst.msk [vmem:[%s902] ss:$8 sm:$0x0] %vm524, %v901
        %s905 = sadd.s32 %s510, 28
        %s906 = sld [smem:[#allocation4 + %s905]]
        %s907 = sshra.s32 %s906, 3
        %s908 = sand.u32 %s906, 7
        %s909 = sshra.s32 %s906, 3
        %s910 = sand.u32 %s906, 7
        %s911 = smul.u32 %s907, 2
        %s912 = smul.u32 %s911, 8
        %s913 = sadd.s32 %s912, %s910
        %s914 = scalar_lea.vmem %s4, %s913
        %v915 = vld [vmem:[%s914] ss:$8 sm:$0x3]
        %s916 = scalar_lea.vmem [#allocation2], 52
        %917 = vst.msk [vmem:[%s916] ss:$8 sm:$0x3] %vm524, %v915
        %918 = vst.msk [vmem:[%s916] ss:$8 sm:$0x0] %vm524, %v915
        %s919 = sadd.s32 %s510, 29
        %s920 = sld [smem:[#allocation4 + %s919]]
        %s921 = sshra.s32 %s920, 3
        %s922 = sand.u32 %s920, 7
        %s923 = sshra.s32 %s920, 3
        %s924 = sand.u32 %s920, 7
        %s925 = smul.u32 %s921, 2
        %s926 = smul.u32 %s925, 8
        %s927 = sadd.s32 %s926, %s924
        %s928 = scalar_lea.vmem %s4, %s927
        %v929 = vld [vmem:[%s928] ss:$8 sm:$0x3]
        %s930 = scalar_lea.vmem [#allocation2], 53
        %931 = vst.msk [vmem:[%s930] ss:$8 sm:$0x3] %vm524, %v929
        %932 = vst.msk [vmem:[%s930] ss:$8 sm:$0x0] %vm524, %v929
        %s933 = sadd.s32 %s510, 30
        %s934 = sld [smem:[#allocation4 + %s933]]
        %s935 = sshra.s32 %s934, 3
        %s936 = sand.u32 %s934, 7
        %s937 = sshra.s32 %s934, 3
        %s938 = sand.u32 %s934, 7
        %s939 = smul.u32 %s935, 2
        %s940 = smul.u32 %s939, 8
        %s941 = sadd.s32 %s940, %s938
        %s942 = scalar_lea.vmem %s4, %s941
        %v943 = vld [vmem:[%s942] ss:$8 sm:$0x3]
        %s944 = scalar_lea.vmem [#allocation2], 54
        %945 = vst.msk [vmem:[%s944] ss:$8 sm:$0x3] %vm524, %v943
        %946 = vst.msk [vmem:[%s944] ss:$8 sm:$0x0] %vm524, %v943
        %s947 = sadd.s32 %s510, 31
        %s948 = sld [smem:[#allocation4 + %s947]]
        %s949 = sshra.s32 %s948, 3
        %s950 = sand.u32 %s948, 7
        %s951 = sshra.s32 %s948, 3
        %s952 = sand.u32 %s948, 7
        %s953 = smul.u32 %s949, 2
        %s954 = smul.u32 %s953, 8
        %s955 = sadd.s32 %s954, %s952
        %s956 = scalar_lea.vmem %s4, %s955
        %v957 = vld [vmem:[%s956] ss:$8 sm:$0x3]
        %s958 = scalar_lea.vmem [#allocation2], 55
        %959 = vst.msk [vmem:[%s958] ss:$8 sm:$0x3] %vm524, %v957
        %960 = vst.msk [vmem:[%s958] ss:$8 sm:$0x0] %vm524, %v957
        %s961 = sadd.s32 %s510, 32
        %s962 = sld [smem:[#allocation4 + %s961]]
        %s963 = sshra.s32 %s962, 3
        %s964 = sand.u32 %s962, 7
        %s965 = sshra.s32 %s962, 3
        %s966 = sand.u32 %s962, 7
        %s967 = smul.u32 %s963, 2
        %s968 = smul.u32 %s967, 8
        %s969 = sadd.s32 %s968, %s966
        %s970 = scalar_lea.vmem %s4, %s969
        %v971 = vld [vmem:[%s970] ss:$8 sm:$0x3]
        %s972 = scalar_lea.vmem [#allocation2], 64
        %973 = vst.msk [vmem:[%s972] ss:$8 sm:$0x3] %vm524, %v971
        %974 = vst.msk [vmem:[%s972] ss:$8 sm:$0x0] %vm524, %v971
        %s975 = sadd.s32 %s510, 33
        %s976 = sld [smem:[#allocation4 + %s975]]
        %s977 = sshra.s32 %s976, 3
        %s978 = sand.u32 %s976, 7
        %s979 = sshra.s32 %s976, 3
        %s980 = sand.u32 %s976, 7
        %s981 = smul.u32 %s977, 2
        %s982 = smul.u32 %s981, 8
        %s983 = sadd.s32 %s982, %s980
        %s984 = scalar_lea.vmem %s4, %s983
        %v985 = vld [vmem:[%s984] ss:$8 sm:$0x3]
        %s986 = scalar_lea.vmem [#allocation2], 65
        %987 = vst.msk [vmem:[%s986] ss:$8 sm:$0x3] %vm524, %v985
        %988 = vst.msk [vmem:[%s986] ss:$8 sm:$0x0] %vm524, %v985
        %s989 = sadd.s32 %s510, 34
        %s990 = sld [smem:[#allocation4 + %s989]]
        %s991 = sshra.s32 %s990, 3
        %s992 = sand.u32 %s990, 7
        %s993 = sshra.s32 %s990, 3
        %s994 = sand.u32 %s990, 7
        %s995 = smul.u32 %s991, 2
        %s996 = smul.u32 %s995, 8
        %s997 = sadd.s32 %s996, %s994
        %s998 = scalar_lea.vmem %s4, %s997
        %v999 = vld [vmem:[%s998] ss:$8 sm:$0x3]
        %s1000 = scalar_lea.vmem [#allocation2], 66
        %1001 = vst.msk [vmem:[%s1000] ss:$8 sm:$0x3] %vm524, %v999
        %1002 = vst.msk [vmem:[%s1000] ss:$8 sm:$0x0] %vm524, %v999
        %s1003 = sadd.s32 %s510, 35
        %s1004 = sld [smem:[#allocation4 + %s1003]]
        %s1005 = sshra.s32 %s1004, 3
        %s1006 = sand.u32 %s1004, 7
        %s1007 = sshra.s32 %s1004, 3
        %s1008 = sand.u32 %s1004, 7
        %s1009 = smul.u32 %s1005, 2
        %s1010 = smul.u32 %s1009, 8
        %s1011 = sadd.s32 %s1010, %s1008
        %s1012 = scalar_lea.vmem %s4, %s1011
        %v1013 = vld [vmem:[%s1012] ss:$8 sm:$0x3]
        %s1014 = scalar_lea.vmem [#allocation2], 67
        %1015 = vst.msk [vmem:[%s1014] ss:$8 sm:$0x3] %vm524, %v1013
        %1016 = vst.msk [vmem:[%s1014] ss:$8 sm:$0x0] %vm524, %v1013
        %s1017 = sadd.s32 %s510, 36
        %s1018 = sld [smem:[#allocation4 + %s1017]]
        %s1019 = sshra.s32 %s1018, 3
        %s1020 = sand.u32 %s1018, 7
        %s1021 = sshra.s32 %s1018, 3
        %s1022 = sand.u32 %s1018, 7
        %s1023 = smul.u32 %s1019, 2
        %s1024 = smul.u32 %s1023, 8
        %s1025 = sadd.s32 %s1024, %s1022
        %s1026 = scalar_lea.vmem %s4, %s1025
        %v1027 = vld [vmem:[%s1026] ss:$8 sm:$0x3]
        %s1028 = scalar_lea.vmem [#allocation2], 68
        %1029 = vst.msk [vmem:[%s1028] ss:$8 sm:$0x3] %vm524, %v1027
        %1030 = vst.msk [vmem:[%s1028] ss:$8 sm:$0x0] %vm524, %v1027
        %s1031 = sadd.s32 %s510, 37
        %s1032 = sld [smem:[#allocation4 + %s1031]]
        %s1033 = sshra.s32 %s1032, 3
        %s1034 = sand.u32 %s1032, 7
        %s1035 = sshra.s32 %s1032, 3
        %s1036 = sand.u32 %s1032, 7
        %s1037 = smul.u32 %s1033, 2
        %s1038 = smul.u32 %s1037, 8
        %s1039 = sadd.s32 %s1038, %s1036
        %s1040 = scalar_lea.vmem %s4, %s1039
        %v1041 = vld [vmem:[%s1040] ss:$8 sm:$0x3]
        %s1042 = scalar_lea.vmem [#allocation2], 69
        %1043 = vst.msk [vmem:[%s1042] ss:$8 sm:$0x3] %vm524, %v1041
        %1044 = vst.msk [vmem:[%s1042] ss:$8 sm:$0x0] %vm524, %v1041
        %s1045 = sadd.s32 %s510, 38
        %s1046 = sld [smem:[#allocation4 + %s1045]]
        %s1047 = sshra.s32 %s1046, 3
        %s1048 = sand.u32 %s1046, 7
        %s1049 = sshra.s32 %s1046, 3
        %s1050 = sand.u32 %s1046, 7
        %s1051 = smul.u32 %s1047, 2
        %s1052 = smul.u32 %s1051, 8
        %s1053 = sadd.s32 %s1052, %s1050
        %s1054 = scalar_lea.vmem %s4, %s1053
        %v1055 = vld [vmem:[%s1054] ss:$8 sm:$0x3]
        %s1056 = scalar_lea.vmem [#allocation2], 70
        %1057 = vst.msk [vmem:[%s1056] ss:$8 sm:$0x3] %vm524, %v1055
        %1058 = vst.msk [vmem:[%s1056] ss:$8 sm:$0x0] %vm524, %v1055
        %s1059 = sadd.s32 %s510, 39
        %s1060 = sld [smem:[#allocation4 + %s1059]]
        %s1061 = sshra.s32 %s1060, 3
        %s1062 = sand.u32 %s1060, 7
        %s1063 = sshra.s32 %s1060, 3
        %s1064 = sand.u32 %s1060, 7
        %s1065 = smul.u32 %s1061, 2
        %s1066 = smul.u32 %s1065, 8
        %s1067 = sadd.s32 %s1066, %s1064
        %s1068 = scalar_lea.vmem %s4, %s1067
        %v1069 = vld [vmem:[%s1068] ss:$8 sm:$0x3]
        %s1070 = scalar_lea.vmem [#allocation2], 71
        %1071 = vst.msk [vmem:[%s1070] ss:$8 sm:$0x3] %vm524, %v1069
        %1072 = vst.msk [vmem:[%s1070] ss:$8 sm:$0x0] %vm524, %v1069
        %s1073 = sadd.s32 %s510, 40
        %s1074 = sld [smem:[#allocation4 + %s1073]]
        %s1075 = sshra.s32 %s1074, 3
        %s1076 = sand.u32 %s1074, 7
        %s1077 = sshra.s32 %s1074, 3
        %s1078 = sand.u32 %s1074, 7
        %s1079 = smul.u32 %s1075, 2
        %s1080 = smul.u32 %s1079, 8
        %s1081 = sadd.s32 %s1080, %s1078
        %s1082 = scalar_lea.vmem %s4, %s1081
        %v1083 = vld [vmem:[%s1082] ss:$8 sm:$0x3]
        %s1084 = scalar_lea.vmem [#allocation2], 80
        %1085 = vst.msk [vmem:[%s1084] ss:$8 sm:$0x3] %vm524, %v1083
        %1086 = vst.msk [vmem:[%s1084] ss:$8 sm:$0x0] %vm524, %v1083
        %s1087 = sadd.s32 %s510, 41
        %s1088 = sld [smem:[#allocation4 + %s1087]]
        %s1089 = sshra.s32 %s1088, 3
        %s1090 = sand.u32 %s1088, 7
        %s1091 = sshra.s32 %s1088, 3
        %s1092 = sand.u32 %s1088, 7
        %s1093 = smul.u32 %s1089, 2
        %s1094 = smul.u32 %s1093, 8
        %s1095 = sadd.s32 %s1094, %s1092
        %s1096 = scalar_lea.vmem %s4, %s1095
        %v1097 = vld [vmem:[%s1096] ss:$8 sm:$0x3]
        %s1098 = scalar_lea.vmem [#allocation2], 81
        %1099 = vst.msk [vmem:[%s1098] ss:$8 sm:$0x3] %vm524, %v1097
        %1100 = vst.msk [vmem:[%s1098] ss:$8 sm:$0x0] %vm524, %v1097
        %s1101 = sadd.s32 %s510, 42
        %s1102 = sld [smem:[#allocation4 + %s1101]]
        %s1103 = sshra.s32 %s1102, 3
        %s1104 = sand.u32 %s1102, 7
        %s1105 = sshra.s32 %s1102, 3
        %s1106 = sand.u32 %s1102, 7
        %s1107 = smul.u32 %s1103, 2
        %s1108 = smul.u32 %s1107, 8
        %s1109 = sadd.s32 %s1108, %s1106
        %s1110 = scalar_lea.vmem %s4, %s1109
        %v1111 = vld [vmem:[%s1110] ss:$8 sm:$0x3]
        %s1112 = scalar_lea.vmem [#allocation2], 82
        %1113 = vst.msk [vmem:[%s1112] ss:$8 sm:$0x3] %vm524, %v1111
        %1114 = vst.msk [vmem:[%s1112] ss:$8 sm:$0x0] %vm524, %v1111
        %s1115 = sadd.s32 %s510, 43
        %s1116 = sld [smem:[#allocation4 + %s1115]]
        %s1117 = sshra.s32 %s1116, 3
        %s1118 = sand.u32 %s1116, 7
        %s1119 = sshra.s32 %s1116, 3
        %s1120 = sand.u32 %s1116, 7
        %s1121 = smul.u32 %s1117, 2
        %s1122 = smul.u32 %s1121, 8
        %s1123 = sadd.s32 %s1122, %s1120
        %s1124 = scalar_lea.vmem %s4, %s1123
        %v1125 = vld [vmem:[%s1124] ss:$8 sm:$0x3]
        %s1126 = scalar_lea.vmem [#allocation2], 83
        %1127 = vst.msk [vmem:[%s1126] ss:$8 sm:$0x3] %vm524, %v1125
        %1128 = vst.msk [vmem:[%s1126] ss:$8 sm:$0x0] %vm524, %v1125
        %s1129 = sadd.s32 %s510, 44
        %s1130 = sld [smem:[#allocation4 + %s1129]]
        %s1131 = sshra.s32 %s1130, 3
        %s1132 = sand.u32 %s1130, 7
        %s1133 = sshra.s32 %s1130, 3
        %s1134 = sand.u32 %s1130, 7
        %s1135 = smul.u32 %s1131, 2
        %s1136 = smul.u32 %s1135, 8
        %s1137 = sadd.s32 %s1136, %s1134
        %s1138 = scalar_lea.vmem %s4, %s1137
        %v1139 = vld [vmem:[%s1138] ss:$8 sm:$0x3]
        %s1140 = scalar_lea.vmem [#allocation2], 84
        %1141 = vst.msk [vmem:[%s1140] ss:$8 sm:$0x3] %vm524, %v1139
        %1142 = vst.msk [vmem:[%s1140] ss:$8 sm:$0x0] %vm524, %v1139
        %s1143 = sadd.s32 %s510, 45
        %s1144 = sld [smem:[#allocation4 + %s1143]]
        %s1145 = sshra.s32 %s1144, 3
        %s1146 = sand.u32 %s1144, 7
        %s1147 = sshra.s32 %s1144, 3
        %s1148 = sand.u32 %s1144, 7
        %s1149 = smul.u32 %s1145, 2
        %s1150 = smul.u32 %s1149, 8
        %s1151 = sadd.s32 %s1150, %s1148
        %s1152 = scalar_lea.vmem %s4, %s1151
        %v1153 = vld [vmem:[%s1152] ss:$8 sm:$0x3]
        %s1154 = scalar_lea.vmem [#allocation2], 85
        %1155 = vst.msk [vmem:[%s1154] ss:$8 sm:$0x3] %vm524, %v1153
        %1156 = vst.msk [vmem:[%s1154] ss:$8 sm:$0x0] %vm524, %v1153
        %s1157 = sadd.s32 %s510, 46
        %s1158 = sld [smem:[#allocation4 + %s1157]]
        %s1159 = sshra.s32 %s1158, 3
        %s1160 = sand.u32 %s1158, 7
        %s1161 = sshra.s32 %s1158, 3
        %s1162 = sand.u32 %s1158, 7
        %s1163 = smul.u32 %s1159, 2
        %s1164 = smul.u32 %s1163, 8
        %s1165 = sadd.s32 %s1164, %s1162
        %s1166 = scalar_lea.vmem %s4, %s1165
        %v1167 = vld [vmem:[%s1166] ss:$8 sm:$0x3]
        %s1168 = scalar_lea.vmem [#allocation2], 86
        %1169 = vst.msk [vmem:[%s1168] ss:$8 sm:$0x3] %vm524, %v1167
        %1170 = vst.msk [vmem:[%s1168] ss:$8 sm:$0x0] %vm524, %v1167
        %s1171 = sadd.s32 %s510, 47
        %s1172 = sld [smem:[#allocation4 + %s1171]]
        %s1173 = sshra.s32 %s1172, 3
        %s1174 = sand.u32 %s1172, 7
        %s1175 = sshra.s32 %s1172, 3
        %s1176 = sand.u32 %s1172, 7
        %s1177 = smul.u32 %s1173, 2
        %s1178 = smul.u32 %s1177, 8
        %s1179 = sadd.s32 %s1178, %s1176
        %s1180 = scalar_lea.vmem %s4, %s1179
        %v1181 = vld [vmem:[%s1180] ss:$8 sm:$0x3]
        %s1182 = scalar_lea.vmem [#allocation2], 87
        %1183 = vst.msk [vmem:[%s1182] ss:$8 sm:$0x3] %vm524, %v1181
        %1184 = vst.msk [vmem:[%s1182] ss:$8 sm:$0x0] %vm524, %v1181
        %s1185 = sadd.s32 %s510, 48
        %s1186 = sld [smem:[#allocation4 + %s1185]]
        %s1187 = sshra.s32 %s1186, 3
        %s1188 = sand.u32 %s1186, 7
        %s1189 = sshra.s32 %s1186, 3
        %s1190 = sand.u32 %s1186, 7
        %s1191 = smul.u32 %s1187, 2
        %s1192 = smul.u32 %s1191, 8
        %s1193 = sadd.s32 %s1192, %s1190
        %s1194 = scalar_lea.vmem %s4, %s1193
        %v1195 = vld [vmem:[%s1194] ss:$8 sm:$0x3]
        %s1196 = scalar_lea.vmem [#allocation2], 96
        %1197 = vst.msk [vmem:[%s1196] ss:$8 sm:$0x3] %vm524, %v1195
        %1198 = vst.msk [vmem:[%s1196] ss:$8 sm:$0x0] %vm524, %v1195
        %s1199 = sadd.s32 %s510, 49
        %s1200 = sld [smem:[#allocation4 + %s1199]]
        %s1201 = sshra.s32 %s1200, 3
        %s1202 = sand.u32 %s1200, 7
        %s1203 = sshra.s32 %s1200, 3
        %s1204 = sand.u32 %s1200, 7
        %s1205 = smul.u32 %s1201, 2
        %s1206 = smul.u32 %s1205, 8
        %s1207 = sadd.s32 %s1206, %s1204
        %s1208 = scalar_lea.vmem %s4, %s1207
        %v1209 = vld [vmem:[%s1208] ss:$8 sm:$0x3]
        %s1210 = scalar_lea.vmem [#allocation2], 97
        %1211 = vst.msk [vmem:[%s1210] ss:$8 sm:$0x3] %vm524, %v1209
        %1212 = vst.msk [vmem:[%s1210] ss:$8 sm:$0x0] %vm524, %v1209
        %s1213 = sadd.s32 %s510, 50
        %s1214 = sld [smem:[#allocation4 + %s1213]]
        %s1215 = sshra.s32 %s1214, 3
        %s1216 = sand.u32 %s1214, 7
        %s1217 = sshra.s32 %s1214, 3
        %s1218 = sand.u32 %s1214, 7
        %s1219 = smul.u32 %s1215, 2
        %s1220 = smul.u32 %s1219, 8
        %s1221 = sadd.s32 %s1220, %s1218
        %s1222 = scalar_lea.vmem %s4, %s1221
        %v1223 = vld [vmem:[%s1222] ss:$8 sm:$0x3]
        %s1224 = scalar_lea.vmem [#allocation2], 98
        %1225 = vst.msk [vmem:[%s1224] ss:$8 sm:$0x3] %vm524, %v1223
        %1226 = vst.msk [vmem:[%s1224] ss:$8 sm:$0x0] %vm524, %v1223
        %s1227 = sadd.s32 %s510, 51
        %s1228 = sld [smem:[#allocation4 + %s1227]]
        %s1229 = sshra.s32 %s1228, 3
        %s1230 = sand.u32 %s1228, 7
        %s1231 = sshra.s32 %s1228, 3
        %s1232 = sand.u32 %s1228, 7
        %s1233 = smul.u32 %s1229, 2
        %s1234 = smul.u32 %s1233, 8
        %s1235 = sadd.s32 %s1234, %s1232
        %s1236 = scalar_lea.vmem %s4, %s1235
        %v1237 = vld [vmem:[%s1236] ss:$8 sm:$0x3]
        %s1238 = scalar_lea.vmem [#allocation2], 99
        %1239 = vst.msk [vmem:[%s1238] ss:$8 sm:$0x3] %vm524, %v1237
        %1240 = vst.msk [vmem:[%s1238] ss:$8 sm:$0x0] %vm524, %v1237
        %s1241 = sadd.s32 %s510, 52
        %s1242 = sld [smem:[#allocation4 + %s1241]]
        %s1243 = sshra.s32 %s1242, 3
        %s1244 = sand.u32 %s1242, 7
        %s1245 = sshra.s32 %s1242, 3
        %s1246 = sand.u32 %s1242, 7
        %s1247 = smul.u32 %s1243, 2
        %s1248 = smul.u32 %s1247, 8
        %s1249 = sadd.s32 %s1248, %s1246
        %s1250 = scalar_lea.vmem %s4, %s1249
        %v1251 = vld [vmem:[%s1250] ss:$8 sm:$0x3]
        %s1252 = scalar_lea.vmem [#allocation2], 100
        %1253 = vst.msk [vmem:[%s1252] ss:$8 sm:$0x3] %vm524, %v1251
        %1254 = vst.msk [vmem:[%s1252] ss:$8 sm:$0x0] %vm524, %v1251
        %s1255 = sadd.s32 %s510, 53
        %s1256 = sld [smem:[#allocation4 + %s1255]]
        %s1257 = sshra.s32 %s1256, 3
        %s1258 = sand.u32 %s1256, 7
        %s1259 = sshra.s32 %s1256, 3
        %s1260 = sand.u32 %s1256, 7
        %s1261 = smul.u32 %s1257, 2
        %s1262 = smul.u32 %s1261, 8
        %s1263 = sadd.s32 %s1262, %s1260
        %s1264 = scalar_lea.vmem %s4, %s1263
        %v1265 = vld [vmem:[%s1264] ss:$8 sm:$0x3]
        %s1266 = scalar_lea.vmem [#allocation2], 101
        %1267 = vst.msk [vmem:[%s1266] ss:$8 sm:$0x3] %vm524, %v1265
        %1268 = vst.msk [vmem:[%s1266] ss:$8 sm:$0x0] %vm524, %v1265
        %s1269 = sadd.s32 %s510, 54
        %s1270 = sld [smem:[#allocation4 + %s1269]]
        %s1271 = sshra.s32 %s1270, 3
        %s1272 = sand.u32 %s1270, 7
        %s1273 = sshra.s32 %s1270, 3
        %s1274 = sand.u32 %s1270, 7
        %s1275 = smul.u32 %s1271, 2
        %s1276 = smul.u32 %s1275, 8
        %s1277 = sadd.s32 %s1276, %s1274
        %s1278 = scalar_lea.vmem %s4, %s1277
        %v1279 = vld [vmem:[%s1278] ss:$8 sm:$0x3]
        %s1280 = scalar_lea.vmem [#allocation2], 102
        %1281 = vst.msk [vmem:[%s1280] ss:$8 sm:$0x3] %vm524, %v1279
        %1282 = vst.msk [vmem:[%s1280] ss:$8 sm:$0x0] %vm524, %v1279
        %s1283 = sadd.s32 %s510, 55
        %s1284 = sld [smem:[#allocation4 + %s1283]]
        %s1285 = sshra.s32 %s1284, 3
        %s1286 = sand.u32 %s1284, 7
        %s1287 = sshra.s32 %s1284, 3
        %s1288 = sand.u32 %s1284, 7
        %s1289 = smul.u32 %s1285, 2
        %s1290 = smul.u32 %s1289, 8
        %s1291 = sadd.s32 %s1290, %s1288
        %s1292 = scalar_lea.vmem %s4, %s1291
        %v1293 = vld [vmem:[%s1292] ss:$8 sm:$0x3]
        %s1294 = scalar_lea.vmem [#allocation2], 103
        %1295 = vst.msk [vmem:[%s1294] ss:$8 sm:$0x3] %vm524, %v1293
        %1296 = vst.msk [vmem:[%s1294] ss:$8 sm:$0x0] %vm524, %v1293
        %s1297 = sadd.s32 %s510, 56
        %s1298 = sld [smem:[#allocation4 + %s1297]]
        %s1299 = sshra.s32 %s1298, 3
        %s1300 = sand.u32 %s1298, 7
        %s1301 = sshra.s32 %s1298, 3
        %s1302 = sand.u32 %s1298, 7
        %s1303 = smul.u32 %s1299, 2
        %s1304 = smul.u32 %s1303, 8
        %s1305 = sadd.s32 %s1304, %s1302
        %s1306 = scalar_lea.vmem %s4, %s1305
        %v1307 = vld [vmem:[%s1306] ss:$8 sm:$0x3]
        %s1308 = scalar_lea.vmem [#allocation2], 112
        %1309 = vst.msk [vmem:[%s1308] ss:$8 sm:$0x3] %vm524, %v1307
        %1310 = vst.msk [vmem:[%s1308] ss:$8 sm:$0x0] %vm524, %v1307
        %s1311 = sadd.s32 %s510, 57
        %s1312 = sld [smem:[#allocation4 + %s1311]]
        %s1313 = sshra.s32 %s1312, 3
        %s1314 = sand.u32 %s1312, 7
        %s1315 = sshra.s32 %s1312, 3
        %s1316 = sand.u32 %s1312, 7
        %s1317 = smul.u32 %s1313, 2
        %s1318 = smul.u32 %s1317, 8
        %s1319 = sadd.s32 %s1318, %s1316
        %s1320 = scalar_lea.vmem %s4, %s1319
        %v1321 = vld [vmem:[%s1320] ss:$8 sm:$0x3]
        %s1322 = scalar_lea.vmem [#allocation2], 113
        %1323 = vst.msk [vmem:[%s1322] ss:$8 sm:$0x3] %vm524, %v1321
        %1324 = vst.msk [vmem:[%s1322] ss:$8 sm:$0x0] %vm524, %v1321
        %s1325 = sadd.s32 %s510, 58
        %s1326 = sld [smem:[#allocation4 + %s1325]]
        %s1327 = sshra.s32 %s1326, 3
        %s1328 = sand.u32 %s1326, 7
        %s1329 = sshra.s32 %s1326, 3
        %s1330 = sand.u32 %s1326, 7
        %s1331 = smul.u32 %s1327, 2
        %s1332 = smul.u32 %s1331, 8
        %s1333 = sadd.s32 %s1332, %s1330
        %s1334 = scalar_lea.vmem %s4, %s1333
        %v1335 = vld [vmem:[%s1334] ss:$8 sm:$0x3]
        %s1336 = scalar_lea.vmem [#allocation2], 114
        %1337 = vst.msk [vmem:[%s1336] ss:$8 sm:$0x3] %vm524, %v1335
        %1338 = vst.msk [vmem:[%s1336] ss:$8 sm:$0x0] %vm524, %v1335
        %s1339 = sadd.s32 %s510, 59
        %s1340 = sld [smem:[#allocation4 + %s1339]]
        %s1341 = sshra.s32 %s1340, 3
        %s1342 = sand.u32 %s1340, 7
        %s1343 = sshra.s32 %s1340, 3
        %s1344 = sand.u32 %s1340, 7
        %s1345 = smul.u32 %s1341, 2
        %s1346 = smul.u32 %s1345, 8
        %s1347 = sadd.s32 %s1346, %s1344
        %s1348 = scalar_lea.vmem %s4, %s1347
        %v1349 = vld [vmem:[%s1348] ss:$8 sm:$0x3]
        %s1350 = scalar_lea.vmem [#allocation2], 115
        %1351 = vst.msk [vmem:[%s1350] ss:$8 sm:$0x3] %vm524, %v1349
        %1352 = vst.msk [vmem:[%s1350] ss:$8 sm:$0x0] %vm524, %v1349
        %s1353 = sadd.s32 %s510, 60
        %s1354 = sld [smem:[#allocation4 + %s1353]]
        %s1355 = sshra.s32 %s1354, 3
        %s1356 = sand.u32 %s1354, 7
        %s1357 = sshra.s32 %s1354, 3
        %s1358 = sand.u32 %s1354, 7
        %s1359 = smul.u32 %s1355, 2
        %s1360 = smul.u32 %s1359, 8
        %s1361 = sadd.s32 %s1360, %s1358
        %s1362 = scalar_lea.vmem %s4, %s1361
        %v1363 = vld [vmem:[%s1362] ss:$8 sm:$0x3]
        %s1364 = scalar_lea.vmem [#allocation2], 116
        %1365 = vst.msk [vmem:[%s1364] ss:$8 sm:$0x3] %vm524, %v1363
        %1366 = vst.msk [vmem:[%s1364] ss:$8 sm:$0x0] %vm524, %v1363
        %s1367 = sadd.s32 %s510, 61
        %s1368 = sld [smem:[#allocation4 + %s1367]]
        %s1369 = sshra.s32 %s1368, 3
        %s1370 = sand.u32 %s1368, 7
        %s1371 = sshra.s32 %s1368, 3
        %s1372 = sand.u32 %s1368, 7
        %s1373 = smul.u32 %s1369, 2
        %s1374 = smul.u32 %s1373, 8
        %s1375 = sadd.s32 %s1374, %s1372
        %s1376 = scalar_lea.vmem %s4, %s1375
        %v1377 = vld [vmem:[%s1376] ss:$8 sm:$0x3]
        %s1378 = scalar_lea.vmem [#allocation2], 117
        %1379 = vst.msk [vmem:[%s1378] ss:$8 sm:$0x3] %vm524, %v1377
        %1380 = vst.msk [vmem:[%s1378] ss:$8 sm:$0x0] %vm524, %v1377
        %s1381 = sadd.s32 %s510, 62
        %s1382 = sld [smem:[#allocation4 + %s1381]]
        %s1383 = sshra.s32 %s1382, 3
        %s1384 = sand.u32 %s1382, 7
        %s1385 = sshra.s32 %s1382, 3
        %s1386 = sand.u32 %s1382, 7
        %s1387 = smul.u32 %s1383, 2
        %s1388 = smul.u32 %s1387, 8
        %s1389 = sadd.s32 %s1388, %s1386
        %s1390 = scalar_lea.vmem %s4, %s1389
        %v1391 = vld [vmem:[%s1390] ss:$8 sm:$0x3]
        %s1392 = scalar_lea.vmem [#allocation2], 118
        %1393 = vst.msk [vmem:[%s1392] ss:$8 sm:$0x3] %vm524, %v1391
        %1394 = vst.msk [vmem:[%s1392] ss:$8 sm:$0x0] %vm524, %v1391
        %s1395 = sadd.s32 %s510, 63
        %s1396 = sld [smem:[#allocation4 + %s1395]]
        %s1397 = sshra.s32 %s1396, 3
        %s1398 = sand.u32 %s1396, 7
        %s1399 = sshra.s32 %s1396, 3
        %s1400 = sand.u32 %s1396, 7
        %s1401 = smul.u32 %s1397, 2
        %s1402 = smul.u32 %s1401, 8
        %s1403 = sadd.s32 %s1402, %s1400
        %s1404 = scalar_lea.vmem %s4, %s1403
        %v1405 = vld [vmem:[%s1404] ss:$8 sm:$0x3]
        %s1406 = scalar_lea.vmem [#allocation2], 119
        %1407 = vst.msk [vmem:[%s1406] ss:$8 sm:$0x3] %vm524, %v1405
        %1408 = vst.msk [vmem:[%s1406] ss:$8 sm:$0x0] %vm524, %v1405
        %v1409 = vld [vmem:[#allocation2] sm:$0xff]
        %v1410 = vld [vmem:[#allocation2 + $0x8] sm:$0xff]
        %v1411 = vld [vmem:[#allocation2 + $0x10] sm:$0xff]
        %v1412 = vld [vmem:[#allocation2 + $0x18] sm:$0xff]
        %v1413 = vld [vmem:[#allocation2 + $0x20] sm:$0xff]
        %v1414 = vld [vmem:[#allocation2 + $0x28] sm:$0xff]
        %v1415 = vld [vmem:[#allocation2 + $0x30] sm:$0xff]
        %v1416 = vld [vmem:[#allocation2 + $0x38] sm:$0xff]
        %v1417 = vld [vmem:[#allocation2 + $0x40] sm:$0xff]
        %v1418 = vld [vmem:[#allocation2 + $0x48] sm:$0xff]
        %v1419 = vld [vmem:[#allocation2 + $0x50] sm:$0xff]
        %v1420 = vld [vmem:[#allocation2 + $0x58] sm:$0xff]
        %v1421 = vld [vmem:[#allocation2 + $0x60] sm:$0xff]
        %v1422 = vld [vmem:[#allocation2 + $0x68] sm:$0xff]
        %v1423 = vld [vmem:[#allocation2 + $0x70] sm:$0xff]
        %v1424 = vld [vmem:[#allocation2 + $0x78] sm:$0xff]
        %v1425 = vmul.f32 %v1409, %v472
        %v1426 = vmul.f32 %v1411, %v476
        %v1427 = vmul.f32 %v1413, %v482
        %v1428 = vmul.f32 %v1415, %v486
        %v1429 = vmul.f32 %v1417, %v492
        %v1430 = vmul.f32 %v1419, %v496
        %v1431 = vmul.f32 %v1421, %v502
        %v1432 = vmul.f32 %v1423, %v506
        %v1433 = vmul.f32 %v1410, %v474
        %v1434 = vmul.f32 %v1412, %v478
        %v1435 = vmul.f32 %v1414, %v484
        %v1436 = vmul.f32 %v1416, %v488
        %v1437 = vmul.f32 %v1418, %v494
        %v1438 = vmul.f32 %v1420, %v498
        %v1439 = vmul.f32 %v1422, %v504
        %v1440 = vmul.f32 %v1424, %v508
        %v1441 = vsub.f32 %v1425, %v1433
        %v1442 = vsub.f32 %v1426, %v1434
        %v1443 = vsub.f32 %v1427, %v1435
        %v1444 = vsub.f32 %v1428, %v1436
        %v1445 = vsub.f32 %v1429, %v1437
        %v1446 = vsub.f32 %v1430, %v1438
        %v1447 = vsub.f32 %v1431, %v1439
        %v1448 = vsub.f32 %v1432, %v1440
        %v1449 = vmul.f32 %v1409, %v474
        %v1450 = vmul.f32 %v1411, %v478
        %v1451 = vmul.f32 %v1413, %v484
        %v1452 = vmul.f32 %v1415, %v488
        %v1453 = vmul.f32 %v1417, %v494
        %v1454 = vmul.f32 %v1419, %v498
        %v1455 = vmul.f32 %v1421, %v504
        %v1456 = vmul.f32 %v1423, %v508
        %v1457 = vmul.f32 %v1410, %v472
        %v1458 = vmul.f32 %v1412, %v476
        %v1459 = vmul.f32 %v1414, %v482
        %v1460 = vmul.f32 %v1416, %v486
        %v1461 = vmul.f32 %v1418, %v492
        %v1462 = vmul.f32 %v1420, %v496
        %v1463 = vmul.f32 %v1422, %v502
        %v1464 = vmul.f32 %v1424, %v506
        %v1465 = vadd.f32 %v1449, %v1457
        %v1466 = vadd.f32 %v1450, %v1458
        %v1467 = vadd.f32 %v1451, %v1459
        %v1468 = vadd.f32 %v1452, %v1460
        %v1469 = vadd.f32 %v1453, %v1461
        %v1470 = vadd.f32 %v1454, %v1462
        %v1471 = vadd.f32 %v1455, %v1463
        %v1472 = vadd.f32 %v1456, %v1464
        %v1473 = vld [vmem:[%s4] sm:$0xff]
        %v1474 = vld [vmem:[%s4 + $0x8] sm:$0xff]
        %v1475 = vld [vmem:[%s4 + $0x10] sm:$0xff]
        %v1476 = vld [vmem:[%s4 + $0x18] sm:$0xff]
        %v1477 = vld [vmem:[%s4 + $0x20] sm:$0xff]
        %v1478 = vld [vmem:[%s4 + $0x28] sm:$0xff]
        %v1479 = vld [vmem:[%s4 + $0x30] sm:$0xff]
        %v1480 = vld [vmem:[%s4 + $0x38] sm:$0xff]
        %v1481 = vld [vmem:[%s4 + $0x40] sm:$0xff]
        %v1482 = vld [vmem:[%s4 + $0x48] sm:$0xff]
        %v1483 = vld [vmem:[%s4 + $0x50] sm:$0xff]
        %v1484 = vld [vmem:[%s4 + $0x58] sm:$0xff]
        %v1485 = vld [vmem:[%s4 + $0x60] sm:$0xff]
        %v1486 = vld [vmem:[%s4 + $0x68] sm:$0xff]
        %v1487 = vld [vmem:[%s4 + $0x70] sm:$0xff]
        %v1488 = vld [vmem:[%s4 + $0x78] sm:$0xff]
        %v1489 = vld [vmem:[%s4 + $0x80] sm:$0xff]
        %v1490 = vld [vmem:[%s4 + $0x88] sm:$0xff]
        %v1491 = vld [vmem:[%s4 + $0x90] sm:$0xff]
        %v1492 = vld [vmem:[%s4 + $0x98] sm:$0xff]
        %v1493 = vld [vmem:[%s4 + $0xa0] sm:$0xff]
        %v1494 = vld [vmem:[%s4 + $0xa8] sm:$0xff]
        %v1495 = vld [vmem:[%s4 + $0xb0] sm:$0xff]
        %v1496 = vld [vmem:[%s4 + $0xb8] sm:$0xff]
        %v1497 = vld [vmem:[%s4 + $0xc0] sm:$0xff]
        %v1498 = vld [vmem:[%s4 + $0xc8] sm:$0xff]
        %v1499 = vld [vmem:[%s4 + $0xd0] sm:$0xff]
        %v1500 = vld [vmem:[%s4 + $0xd8] sm:$0xff]
        %v1501 = vld [vmem:[%s4 + $0xe0] sm:$0xff]
        %v1502 = vld [vmem:[%s4 + $0xe8] sm:$0xff]
        %v1503 = vld [vmem:[%s4 + $0xf0] sm:$0xff]
        %v1504 = vld [vmem:[%s4 + $0xf8] sm:$0xff]
        %v1505 = vld [vmem:[%s4 + $0x100] sm:$0xff]
        %v1506 = vld [vmem:[%s4 + $0x108] sm:$0xff]
        %v1507 = vld [vmem:[%s4 + $0x110] sm:$0xff]
        %v1508 = vld [vmem:[%s4 + $0x118] sm:$0xff]
        %v1509 = vld [vmem:[%s4 + $0x120] sm:$0xff]
        %v1510 = vld [vmem:[%s4 + $0x128] sm:$0xff]
        %v1511 = vld [vmem:[%s4 + $0x130] sm:$0xff]
        %v1512 = vld [vmem:[%s4 + $0x138] sm:$0xff]
        %v1513 = vld [vmem:[%s4 + $0x140] sm:$0xff]
        %v1514 = vld [vmem:[%s4 + $0x148] sm:$0xff]
        %v1515 = vld [vmem:[%s4 + $0x150] sm:$0xff]
        %v1516 = vld [vmem:[%s4 + $0x158] sm:$0xff]
        %v1517 = vld [vmem:[%s4 + $0x160] sm:$0xff]
        %v1518 = vld [vmem:[%s4 + $0x168] sm:$0xff]
        %v1519 = vld [vmem:[%s4 + $0x170] sm:$0xff]
        %v1520 = vld [vmem:[%s4 + $0x178] sm:$0xff]
        %v1521 = vld [vmem:[%s4 + $0x180] sm:$0xff]
        %v1522 = vld [vmem:[%s4 + $0x188] sm:$0xff]
        %v1523 = vld [vmem:[%s4 + $0x190] sm:$0xff]
        %v1524 = vld [vmem:[%s4 + $0x198] sm:$0xff]
        %v1525 = vld [vmem:[%s4 + $0x1a0] sm:$0xff]
        %v1526 = vld [vmem:[%s4 + $0x1a8] sm:$0xff]
        %v1527 = vld [vmem:[%s4 + $0x1b0] sm:$0xff]
        %v1528 = vld [vmem:[%s4 + $0x1b8] sm:$0xff]
        %v1529 = vld [vmem:[%s4 + $0x1c0] sm:$0xff]
        %v1530 = vld [vmem:[%s4 + $0x1c8] sm:$0xff]
        %v1531 = vld [vmem:[%s4 + $0x1d0] sm:$0xff]
        %v1532 = vld [vmem:[%s4 + $0x1d8] sm:$0xff]
        %v1533 = vld [vmem:[%s4 + $0x1e0] sm:$0xff]
        %v1534 = vld [vmem:[%s4 + $0x1e8] sm:$0xff]
        %v1535 = vld [vmem:[%s4 + $0x1f0] sm:$0xff]
        %v1536 = vld [vmem:[%s4 + $0x1f8] sm:$0xff]
        %v1537 = vld [vmem:[%s4 + $0x200] sm:$0xff]
        %v1538 = vld [vmem:[%s4 + $0x208] sm:$0xff]
        %v1539 = vld [vmem:[%s4 + $0x210] sm:$0xff]
        %v1540 = vld [vmem:[%s4 + $0x218] sm:$0xff]
        %v1541 = vld [vmem:[%s4 + $0x220] sm:$0xff]
        %v1542 = vld [vmem:[%s4 + $0x228] sm:$0xff]
        %v1543 = vld [vmem:[%s4 + $0x230] sm:$0xff]
        %v1544 = vld [vmem:[%s4 + $0x238] sm:$0xff]
        %v1545 = vld [vmem:[%s4 + $0x240] sm:$0xff]
        %v1546 = vld [vmem:[%s4 + $0x248] sm:$0xff]
        %v1547 = vld [vmem:[%s4 + $0x250] sm:$0xff]
        %v1548 = vld [vmem:[%s4 + $0x258] sm:$0xff]
        %v1549 = vld [vmem:[%s4 + $0x260] sm:$0xff]
        %v1550 = vld [vmem:[%s4 + $0x268] sm:$0xff]
        %v1551 = vld [vmem:[%s4 + $0x270] sm:$0xff]
        %v1552 = vld [vmem:[%s4 + $0x278] sm:$0xff]
        %v1553 = vld [vmem:[%s4 + $0x280] sm:$0xff]
        %v1554 = vld [vmem:[%s4 + $0x288] sm:$0xff]
        %v1555 = vld [vmem:[%s4 + $0x290] sm:$0xff]
        %v1556 = vld [vmem:[%s4 + $0x298] sm:$0xff]
        %v1557 = vld [vmem:[%s4 + $0x2a0] sm:$0xff]
        %v1558 = vld [vmem:[%s4 + $0x2a8] sm:$0xff]
        %v1559 = vld [vmem:[%s4 + $0x2b0] sm:$0xff]
        %v1560 = vld [vmem:[%s4 + $0x2b8] sm:$0xff]
        %v1561 = vld [vmem:[%s4 + $0x2c0] sm:$0xff]
        %v1562 = vld [vmem:[%s4 + $0x2c8] sm:$0xff]
        %v1563 = vld [vmem:[%s4 + $0x2d0] sm:$0xff]
        %v1564 = vld [vmem:[%s4 + $0x2d8] sm:$0xff]
        %v1565 = vld [vmem:[%s4 + $0x2e0] sm:$0xff]
        %v1566 = vld [vmem:[%s4 + $0x2e8] sm:$0xff]
        %v1567 = vld [vmem:[%s4 + $0x2f0] sm:$0xff]
        %v1568 = vld [vmem:[%s4 + $0x2f8] sm:$0xff]
        %1569 = vmatprep.subr.mxu0 %v1474
        %1570 = vmatpush1.xpose.msra.mxu0 %v1473
        %1571 = vmatprep.subr.mxu0 %v1476
        %1572 = vmatpush1.xpose.msra.mxu0 %v1475
        %1573 = vmatprep.subr.mxu0 %v1478
        %1574 = vmatpush1.xpose.msra.mxu0 %v1477
        %1575 = vmatprep.subr.mxu0 %v1480
        %1576 = vmatpush1.xpose.msra.mxu0 %v1479
        %1577 = vmatprep.subr.mxu0 %v1482
        %1578 = vmatpush1.xpose.msra.mxu0 %v1481
        %1579 = vmatprep.subr.mxu0 %v1484
        %1580 = vmatpush1.xpose.msra.mxu0 %v1483
        %1581 = vmatprep.subr.mxu0 %v1486
        %1582 = vmatpush1.xpose.msra.mxu0 %v1485
        %1583 = vmatprep.subr.mxu0 %v1488
        %1584 = vmatpush1.xpose.msra.mxu0 %v1487
        %1585 = vmatprep.subr.mxu0 %v1490
        %1586 = vmatpush1.xpose.msra.mxu0 %v1489
        %1587 = vmatprep.subr.mxu0 %v1492
        %1588 = vmatpush1.xpose.msra.mxu0 %v1491
        %1589 = vmatprep.subr.mxu0 %v1494
        %1590 = vmatpush1.xpose.msra.mxu0 %v1493
        %1591 = vmatprep.subr.mxu0 %v1496
        %1592 = vmatpush1.xpose.msra.mxu0 %v1495
        %1593 = vmatprep.subr.mxu0 %v1498
        %1594 = vmatpush1.xpose.msra.mxu0 %v1497
        %1595 = vmatprep.subr.mxu0 %v1500
        %1596 = vmatpush1.xpose.msra.mxu0 %v1499
        %1597 = vmatprep.subr.mxu0 %v1502
        %1598 = vmatpush1.xpose.msra.mxu0 %v1501
        %1599 = vmatprep.subr.mxu0 %v1504
        %1600 = vmatpush1.xpose.msra.mxu0 %v1503
        %1601 = vmatprep.subr.mxu0 %v1506
        %1602 = vmatpush1.xpose.msra.mxu0 %v1505
        %1603 = vmatprep.subr.mxu0 %v1508
        %1604 = vmatpush1.xpose.msra.mxu0 %v1507
        %1605 = vmatprep.subr.mxu0 %v1510
        %1606 = vmatpush1.xpose.msra.mxu0 %v1509
        %1607 = vmatprep.subr.mxu0 %v1512
        %1608 = vmatpush1.xpose.msra.mxu0 %v1511
        %1609 = vmatprep.subr.mxu0 %v1514
        %1610 = vmatpush1.xpose.msra.mxu0 %v1513
        %1611 = vmatprep.subr.mxu0 %v1516
        %1612 = vmatpush1.xpose.msra.mxu0 %v1515
        %1613 = vmatprep.subr.mxu0 %v1518
        %1614 = vmatpush1.xpose.msra.mxu0 %v1517
        %1615 = vmatprep.subr.mxu0 %v1520
        %1616 = vmatpush1.xpose.msra.mxu0 %v1519
        %1617 = vmatprep.subr.mxu0 %v1522
        %1618 = vmatpush1.xpose.msra.mxu0 %v1521
        %1619 = vmatprep.subr.mxu0 %v1524
        %1620 = vmatpush1.xpose.msra.mxu0 %v1523
        %1621 = vmatprep.subr.mxu0 %v1526
        %1622 = vmatpush1.xpose.msra.mxu0 %v1525
        %1623 = vmatprep.subr.mxu0 %v1528
        %1624 = vmatpush1.xpose.msra.mxu0 %v1527
        %1625 = vmatprep.subr.mxu0 %v1530
        %1626 = vmatpush1.xpose.msra.mxu0 %v1529
        %1627 = vmatprep.subr.mxu0 %v1532
        %1628 = vmatpush1.xpose.msra.mxu0 %v1531
        %1629 = vmatprep.subr.mxu0 %v1534
        %1630 = vmatpush1.xpose.msra.mxu0 %v1533
        %1631 = vmatprep.subr.mxu0 %v1536
        %1632 = vmatpush1.xpose.msra.mxu0 %v1535
        %1633 = vmatprep.mubr.f32.mxu0 %v1465
        %1634 = vmatmul.mubr.f32.gmra.mrb[0].mxu0 %v1441
        %v1635 = vpop.f32.mrb[0].mxu0
        %v1636 = vadd.f32 0.0, %v1635
        %v1637 = vpop.f32.mrb[0].mxu0
        %v1638 = vadd.f32 0.0, %v1637
        %1639 = vmatprep.mubr.f32.mxu0 %v1466
        %1640 = vmatmul.mubr.f32.gmra.mrb[0].mxu0 %v1442
        %v1641 = vpop.f32.mrb[0].mxu0
        %v1642 = vadd.f32 0.0, %v1641
        %v1643 = vpop.f32.mrb[0].mxu0
        %v1644 = vadd.f32 0.0, %v1643
        %1645 = vmatprep.mubr.f32.mxu0 %v1467
        %1646 = vmatmul.mubr.f32.gmra.mrb[0].mxu0 %v1443
        %v1647 = vpop.f32.mrb[0].mxu0
        %v1648 = vadd.f32 0.0, %v1647
        %v1649 = vpop.f32.mrb[0].mxu0
        %v1650 = vadd.f32 0.0, %v1649
        %1651 = vmatprep.mubr.f32.mxu0 %v1468
        %1652 = vmatmul.mubr.f32.gmra.mrb[0].mxu0 %v1444
        %v1653 = vpop.f32.mrb[0].mxu0
        %v1654 = vadd.f32 0.0, %v1653
        %v1655 = vpop.f32.mrb[0].mxu0
        %v1656 = vadd.f32 0.0, %v1655
        %1657 = vmatprep.mubr.f32.mxu0 %v1469
        %1658 = vmatmul.mubr.f32.gmra.mrb[0].mxu0 %v1445
        %v1659 = vpop.f32.mrb[0].mxu0
        %v1660 = vadd.f32 0.0, %v1659
        %v1661 = vpop.f32.mrb[0].mxu0
        %v1662 = vadd.f32 0.0, %v1661
        %1663 = vmatprep.mubr.f32.mxu0 %v1470
        %1664 = vmatmul.mubr.f32.gmra.mrb[0].mxu0 %v1446
        %v1665 = vpop.f32.mrb[0].mxu0
        %v1666 = vadd.f32 0.0, %v1665
        %v1667 = vpop.f32.mrb[0].mxu0
        %v1668 = vadd.f32 0.0, %v1667
        %1669 = vmatprep.mubr.f32.mxu0 %v1471
        %1670 = vmatmul.mubr.f32.gmra.mrb[0].mxu0 %v1447
        %v1671 = vpop.f32.mrb[0].mxu0
        %v1672 = vadd.f32 0.0, %v1671
        %v1673 = vpop.f32.mrb[0].mxu0
        %v1674 = vadd.f32 0.0, %v1673
        %1675 = vmatprep.mubr.f32.mxu0 %v1472
        %1676 = vmatmul.mubr.f32.gmra.mrb[0].mxu0 %v1448
        %v1677 = vpop.f32.mrb[0].mxu0
        %v1678 = vadd.f32 0.0, %v1677
        %v1679 = vpop.f32.mrb[0].mxu0
        %v1680 = vadd.f32 0.0, %v1679
        %1681 = vdwg.mxu0
        %1682 = vmatprep.subr.mxu0 %v1538
        %1683 = vmatpush1.xpose.msra.mxu0 %v1537
        %1684 = vmatprep.subr.mxu0 %v1540
        %1685 = vmatpush1.xpose.msra.mxu0 %v1539
        %1686 = vmatprep.subr.mxu0 %v1542
        %1687 = vmatpush1.xpose.msra.mxu0 %v1541
        %1688 = vmatprep.subr.mxu0 %v1544
        %1689 = vmatpush1.xpose.msra.mxu0 %v1543
        %1690 = vmatprep.subr.mxu0 %v1546
        %1691 = vmatpush1.xpose.msra.mxu0 %v1545
        %1692 = vmatprep.subr.mxu0 %v1548
        %1693 = vmatpush1.xpose.msra.mxu0 %v1547
        %1694 = vmatprep.subr.mxu0 %v1550
        %1695 = vmatpush1.xpose.msra.mxu0 %v1549
        %1696 = vmatprep.subr.mxu0 %v1552
        %1697 = vmatpush1.xpose.msra.mxu0 %v1551
        %1698 = vmatprep.subr.mxu0 %v1554
        %1699 = vmatpush1.xpose.msra.mxu0 %v1553
        %1700 = vmatprep.subr.mxu0 %v1556
        %1701 = vmatpush1.xpose.msra.mxu0 %v1555
        %1702 = vmatprep.subr.mxu0 %v1558
        %1703 = vmatpush1.xpose.msra.mxu0 %v1557
        %1704 = vmatprep.subr.mxu0 %v1560
        %1705 = vmatpush1.xpose.msra.mxu0 %v1559
        %1706 = vmatprep.subr.mxu0 %v1562
        %1707 = vmatpush1.xpose.msra.mxu0 %v1561
        %1708 = vmatprep.subr.mxu0 %v1564
        %1709 = vmatpush1.xpose.msra.mxu0 %v1563
        %1710 = vmatprep.subr.mxu0 %v1566
        %1711 = vmatpush1.xpose.msra.mxu0 %v1565
        %1712 = vmatprep.subr.mxu0 %v1568
        %1713 = vmatpush1.xpose.msra.mxu0 %v1567
        %1714 = vmatprep.subr.mxu0 0.0
        %1715 = vmatpush1.xpose.msra.mxu0 0.0
        %1716 = vmatprep.subr.mxu0 0.0
        %1717 = vmatpush1.xpose.msra.mxu0 0.0
        %1718 = vmatprep.subr.mxu0 0.0
        %1719 = vmatpush1.xpose.msra.mxu0 0.0
        %1720 = vmatprep.subr.mxu0 0.0
        %1721 = vmatpush1.xpose.msra.mxu0 0.0
        %1722 = vmatprep.subr.mxu0 0.0
        %1723 = vmatpush1.xpose.msra.mxu0 0.0
        %1724 = vmatprep.subr.mxu0 0.0
        %1725 = vmatpush1.xpose.msra.mxu0 0.0
        %1726 = vmatprep.subr.mxu0 0.0
        %1727 = vmatpush1.xpose.msra.mxu0 0.0
        %1728 = vmatprep.subr.mxu0 0.0
        %1729 = vmatpush1.xpose.msra.mxu0 0.0
        %1730 = vmatprep.subr.mxu0 0.0
        %1731 = vmatpush1.xpose.msra.mxu0 0.0
        %1732 = vmatprep.subr.mxu0 0.0
        %1733 = vmatpush1.xpose.msra.mxu0 0.0
        %1734 = vmatprep.subr.mxu0 0.0
        %1735 = vmatpush1.xpose.msra.mxu0 0.0
        %1736 = vmatprep.subr.mxu0 0.0
        %1737 = vmatpush1.xpose.msra.mxu0 0.0
        %1738 = vmatprep.subr.mxu0 0.0
        %1739 = vmatpush1.xpose.msra.mxu0 0.0
        %1740 = vmatprep.subr.mxu0 0.0
        %1741 = vmatpush1.xpose.msra.mxu0 0.0
        %1742 = vmatprep.subr.mxu0 0.0
        %1743 = vmatpush1.xpose.msra.mxu0 0.0
        %1744 = vmatprep.subr.mxu0 0.0
        %1745 = vmatpush1.xpose.msra.mxu0 0.0
        %1746 = vmatprep.mubr.f32.mxu0 %v1465
        %1747 = vmatmul.mubr.f32.gmra.mrb[0].mxu0 %v1441
        %v1748 = vpop.f32.mrb[0].mxu0
        %v1749 = vadd.f32 0.0, %v1748
        %v1750 = vpop.f32.mrb[0].mxu0
        %1751 = vmatprep.mubr.f32.mxu0 %v1466
        %1752 = vmatmul.mubr.f32.gmra.mrb[0].mxu0 %v1442
        %v1753 = vpop.f32.mrb[0].mxu0
        %v1754 = vadd.f32 0.0, %v1753
        %v1755 = vpop.f32.mrb[0].mxu0
        %1756 = vmatprep.mubr.f32.mxu0 %v1467
        %1757 = vmatmul.mubr.f32.gmra.mrb[0].mxu0 %v1443
        %v1758 = vpop.f32.mrb[0].mxu0
        %v1759 = vadd.f32 0.0, %v1758
        %v1760 = vpop.f32.mrb[0].mxu0
        %1761 = vmatprep.mubr.f32.mxu0 %v1468
        %1762 = vmatmul.mubr.f32.gmra.mrb[0].mxu0 %v1444
        %v1763 = vpop.f32.mrb[0].mxu0
        %v1764 = vadd.f32 0.0, %v1763
        %v1765 = vpop.f32.mrb[0].mxu0
        %1766 = vmatprep.mubr.f32.mxu0 %v1469
        %1767 = vmatmul.mubr.f32.gmra.mrb[0].mxu0 %v1445
        %v1768 = vpop.f32.mrb[0].mxu0
        %v1769 = vadd.f32 0.0, %v1768
        %v1770 = vpop.f32.mrb[0].mxu0
        %1771 = vmatprep.mubr.f32.mxu0 %v1470
        %1772 = vmatmul.mubr.f32.gmra.mrb[0].mxu0 %v1446
        %v1773 = vpop.f32.mrb[0].mxu0
        %v1774 = vadd.f32 0.0, %v1773
        %v1775 = vpop.f32.mrb[0].mxu0
        %1776 = vmatprep.mubr.f32.mxu0 %v1471
        %1777 = vmatmul.mubr.f32.gmra.mrb[0].mxu0 %v1447
        %v1778 = vpop.f32.mrb[0].mxu0
        %v1779 = vadd.f32 0.0, %v1778
        %v1780 = vpop.f32.mrb[0].mxu0
        %1781 = vmatprep.mubr.f32.mxu0 %v1472
        %1782 = vmatmul.mubr.f32.gmra.mrb[0].mxu0 %v1448
        %v1783 = vpop.f32.mrb[0].mxu0
        %v1784 = vadd.f32 0.0, %v1783
        %v1785 = vpop.f32.mrb[0].mxu0
        %1786 = vdwg.mxu0
        %1787 = vst [vmem:[%s200] sm:$0xff] %v1636
        %1788 = vst [vmem:[%s200 + $0x8] sm:$0xff] %v1638
        %1789 = vst [vmem:[%s200 + $0x10] sm:$0xff] %v1749
        %1790 = vst [vmem:[%s200 + $0x18] sm:$0xff] %v1642
        %1791 = vst [vmem:[%s200 + $0x20] sm:$0xff] %v1644
        %1792 = vst [vmem:[%s200 + $0x28] sm:$0xff] %v1754
        %1793 = vst [vmem:[%s200 + $0x30] sm:$0xff] %v1648
        %1794 = vst [vmem:[%s200 + $0x38] sm:$0xff] %v1650
        %1795 = vst [vmem:[%s200 + $0x40] sm:$0xff] %v1759
        %1796 = vst [vmem:[%s200 + $0x48] sm:$0xff] %v1654
        %1797 = vst [vmem:[%s200 + $0x50] sm:$0xff] %v1656
        %1798 = vst [vmem:[%s200 + $0x58] sm:$0xff] %v1764
        %1799 = vst [vmem:[%s200 + $0x60] sm:$0xff] %v1660
        %1800 = vst [vmem:[%s200 + $0x68] sm:$0xff] %v1662
        %1801 = vst [vmem:[%s200 + $0x70] sm:$0xff] %v1769
        %1802 = vst [vmem:[%s200 + $0x78] sm:$0xff] %v1666
        %1803 = vst [vmem:[%s200 + $0x80] sm:$0xff] %v1668
        %1804 = vst [vmem:[%s200 + $0x88] sm:$0xff] %v1774
        %1805 = vst [vmem:[%s200 + $0x90] sm:$0xff] %v1672
        %1806 = vst [vmem:[%s200 + $0x98] sm:$0xff] %v1674
        %1807 = vst [vmem:[%s200 + $0xa0] sm:$0xff] %v1779
        %1808 = vst [vmem:[%s200 + $0xa8] sm:$0xff] %v1678
        %1809 = vst [vmem:[%s200 + $0xb0] sm:$0xff] %v1680
        %1810 = vst [vmem:[%s200 + $0xb8] sm:$0xff] %v1784
        %s1811 = sand.u32 %s122, 1
        %s1812 = scalar_lea.sflag [#allocation6], %s1811
        %s1813 = sand.u32 %s122, 1
        %s1814 = smul.addr %s1813, 192
        %s1815 = scalar_lea.vmem [#allocation5], %s1814
        // Predicated region
        $region37: #{qa_embedkgqa_forward.1} parent=35 // pred_check
          %p1816 = pneg %p132
        $region38: #{qa_embedkgqa_forward.1} parent=35 // pred_check_branch
          %1818 = sbr.rel (%p1816) target = $region40
        $region39: #{qa_embedkgqa_forward.1} parent=35 // pred_region
          %s1819 = smul.u32 8, %s25
          %s1821 = ssub.s32 3072, 3072
          %1822 = vsyncadd %s1812, %s1821
          %s1823 = smul.addr %s1819, 3
          %s1824 = smul.addr %s1823, 128
          %s1825 = scalar_lea.hbm %s5, %s1824
          %s1826 = sshll.u32 %s1815, 4
          %s1827 = int_to_ptr.vmem [resolvable:$true] %s1826
          %1832 = dma.vmem_to_hbm [thread:$0]  %s1827, 3072, %s1825, %s1812, 384, 384, 24
        $region40: #{qa_embedkgqa_forward.1} parent=35 // pred_fallthru
          _
      $region36: #{qa_embedkgqa_forward.1} parent=5 // pred_fallthru
        _
      %p1833 = scmp.le.s32.totalorder 2, %s20
      // Predicated region
      $region41: #{qa_embedkgqa_forward.1} parent=5 // pred_check
        %p1834 = pneg %p1833
      $region42: #{qa_embedkgqa_forward.1} parent=5 // pred_check_branch
        %1836 = sbr.rel (%p1834) target = $region44
      $region43: #{qa_embedkgqa_forward.1} parent=5 // pred_region
        %s1837 = ssub.s32 %s20, 2
        // Predicated region
        $region45: #{qa_embedkgqa_forward.1} parent=43 // pred_check
          %p1838 = pneg %p138
        $region46: #{qa_embedkgqa_forward.1} parent=43 // pred_check_branch
          %1840 = sbr.rel (%p1838) target = $region48
        $region47: #{qa_embedkgqa_forward.1} parent=43 // pred_region
          %s1841 = sand.u32 %s123, 1
          %s1842 = scalar_lea.sflag [#allocation6], %s1841
          %s1843 = sand.u32 %s123, 1
          %s1844 = smul.addr %s1843, 192
          %s1845 = scalar_lea.vmem [#allocation5], %s1844
          %1846 = dma.done %s1842, 3072
        $region48: #{qa_embedkgqa_forward.1} parent=43 // pred_fallthru
          _
      $region44: #{qa_embedkgqa_forward.1} parent=5 // pred_fallthru
        _
    $region6: #{qa_embedkgqa_forward.1} parent=1 // loop_footer
      %s24 = sadd.s32 1, %s20
    $region7: #{qa_embedkgqa_forward.1} parent=1 // loop_footer_branch
      %19 = sbr.rel target = $region3
    $region8: #{qa_embedkgqa_forward.1} parent=1 // loop_exit
      _
    %1847 = vsyncpa [#allocation6], 1
    %s1848 = scalar_lea.sflag [#allocation6], 1
    %1849 = vsyncpa %s1848, 1

</llo_original>
